<compile_context>
chip_gen: v6e
topology: v6e:2x2x1
jax: 0.10.0
libtpu: 0.0.40
codegen_flags: <defaults>
</compile_context>

<pallas_src>
import math

import jax
import jax.numpy as jnp
import numpy as np
from jax import lax
from jax.experimental import pallas as pl
from jax.experimental.pallas import tpu as pltpu

EPS = 1e-5      # PyTorch BatchNorm default
LANE = 128      # TPU lane width
SUBLANE = 8     # f32 sublane width


def _round_up(x, m):
    return (x + m - 1) // m * m


def _pad_to(a, shape):
    pads = [(0, t - s) for s, t in zip(a.shape, shape)]
    return jnp.pad(a, pads) if any(p for _, p in pads) else a


# ---------------------------------------------------------------------------
# Fused kernel (one batch element per grid step):
#   expand 1x1 (MXU, bf16, BN1 scale pre-folded) + bias + ReLU -> VMEM scratch
#   depthwise KxK (VPU mults, XLU rolls for W-shift; BN2 scale pre-folded)
#   squeeze-excite (pool -> 1x1 -> ReLU -> 1x1 -> sigmoid)
#   SE scale + 1x1 projection (MXU, bf16, BN3 scale pre-folded) + bias
# ---------------------------------------------------------------------------
def _mbconv_kernel(x_ref, w1_ref, b1_ref,
                   wdw_ref, b2_ref,
                   wse1_ref, bse1_ref, wse2_ref, bse2_ref,
                   wp_ref, b3_ref,
                   o_ref, xs_scr):
    # x_ref   : (1, H, W, Cin)          one batch element, NHWC, f32
    # w1_ref  : (Cin, Cmid_p)    bf16   expand 1x1 conv (BN1 scale folded in)
    # b1      : (1, Cmid_p)      f32    folded BN1 shift
    # wdw_ref : (K*K, 1, Cmid_p) f32    depthwise taps (BN2 scale folded in)
    # b2      : (1, Cmid_p)      f32    folded BN2 shift
    # wse1    : (Cmid_p, Sc_p)   bf16 ; bse1: (1, Sc_p)   f32
    # wse2    : (Sc_p, Cmid_p)   bf16 ; bse2: (1, Cmid_p) f32
    # wp_ref  : (Cmid_p, Cout_p) bf16   projection 1x1 conv (BN3 scale folded)
    # b3      : (1, Cout_p)      f32    folded BN3 shift
    # o_ref   : (1, H, W, Cout)         unpadded output channels
    # xs_scr  : VMEM (H + 2*pad, Ws, Cmid_p) f32   zero-padded expansion image
    H, W, Cout = o_ref.shape[1], o_ref.shape[2], o_ref.shape[3]
    Cin = x_ref.shape[3]
    Hs, Ws, Cmid_p = xs_scr.shape
    Cout_p = wp_ref.shape[1]
    KK = wdw_ref.shape[0]
    K = int(math.isqrt(KK))
    pad = K // 2
    L = H * Ws                       # flattened rows of one row band

    # ---- halo zeroing (interior rows/cols are fully overwritten below) ------
    # Zeroed every grid step: under megacore sharding each core owns its own
    # scratch instance, so a program_id(0)==0 guard would be wrong; the halo is
    # small (2*pad rows + (Ws-W) columns), so this is cheap.
    if pad > 0:
        xs_scr[0:pad, :, :] = jnp.zeros((pad, Ws, Cmid_p), xs_scr.dtype)
        xs_scr[pad + H:Hs, :, :] = jnp.zeros((Hs - pad - H, Ws, Cmid_p),
                                             xs_scr.dtype)
    if Ws > W:
        xs_scr[pad:pad + H, W:Ws, :] = jnp.zeros((H, Ws - W, Cmid_p),
                                                 xs_scr.dtype)

    # ---- stage 1: expand 1x1 conv (bf16 MXU) + BN1 bias + ReLU --------------
    x2d = x_ref[0].reshape(H * W, Cin).astype(jnp.bfloat16)
    e = jnp.dot(x2d, w1_ref[...], preferred_element_type=jnp.float32)
    e = jnp.maximum(e + b1_ref[...], 0.0)                        # (H*W, Cmid_p)

    # Interior store is sublane-aligned: column offset 0, W % 8 == 0.
    xs_scr[pad:pad + H, 0:W, :] = e.reshape(H, W, Cmid_p)

    # ---- stage 2: depthwise KxK conv + BN2 bias + ReLU ----------------------
    # H-shifts: free slices of the scratch's leading axis.  W-shifts: XLU rolls
    # of the flattened (H*Ws, Cmid_p) band — no unaligned sublane slices.  Roll
    # wrap-around always lands in zero-padding columns or in columns >= W that
    # are masked to zero below (Ws >= W + 2*pad).
    wdw = wdw_ref[...]                                            # (KK, 1, Cmid_p)
    b2 = b2_ref[...]
    acc = jnp.zeros((L, Cmid_p), jnp.float32)
    for dh in range(K):
        band = xs_scr[dh:dh + H, :, :].reshape(L, Cmid_p)
        for dw in range(K):
            shift = (pad - dw) % L
            shifted = pltpu.roll(band, shift, axis=0) if shift else band
            acc = acc + shifted * wdw[dh * K + dw]

    # Keep the lane-padded (H, Ws, .) band; zero the columns >= W once so the
    # SE pool is exact (those columns otherwise hold roll garbage / ReLU(b2)).
    d = jnp.maximum(acc + b2, 0.0).reshape(H, Ws, Cmid_p)
    col = lax.broadcasted_iota(jnp.int32, (1, Ws, 1), 1)
    d = jnp.where(col < W, d, 0.0)
    d2 = d.reshape(L, Cmid_p)                                     # (H*Ws, Cmid_p)

    # ---- squeeze-excite -----------------------------------------------------
    pooled = jnp.sum(d2, axis=0, keepdims=True) * (1.0 / (H * W))  # (1, Cmid_p)
    se = jnp.dot(pooled.astype(jnp.bfloat16), wse1_ref[...],
                 preferred_element_type=jnp.float32)
    se = jnp.maximum(se + bse1_ref[...], 0.0)                     # (1, Sc_p)
    se = jnp.dot(se.astype(jnp.bfloat16), wse2_ref[...],
                 preferred_element_type=jnp.float32)
    se = jax.nn.sigmoid(se + bse2_ref[...])                       # (1, Cmid_p)

    # ---- SE scale + 1x1 projection (bf16 MXU) + BN3 bias --------------------
    dse = (d2 * se).astype(jnp.bfloat16)                          # (H*Ws, Cmid_p)
    y = jnp.dot(dse, wp_ref[...], preferred_element_type=jnp.float32)
    y = (y + b3_ref[...]).reshape(H, Ws, Cout_p)
    # Narrow slice only at the output store (Cout-wide masked stores; far less
    # HBM writeback than a lane-padded Cout_p=128 output).
    o_ref[0] = y[:, :W, :Cout].astype(o_ref.dtype)


# ---------------------------------------------------------------------------
# Wrappers
# ---------------------------------------------------------------------------
def mbconv2d_forward_nhwc(x_nhwc, p):
    """MBConv2d forward, NHWC in / NHWC out (preferred layout for chaining)."""
    N, H, W, Cin = x_nhwc.shape
    Cmid = p['w1'].shape[1]
    Cout = p['wp'].shape[1]
    Sc = p['wse1'].shape[1]
    K = p['wdw'].shape[0]
    pad = K // 2

    # TODO(synk): support W not multiple of 8 via masked remainder columns.
    assert W % SUBLANE == 0, "W must be a multiple of 8 for this kernel"

    Cmid_p = _round_up(Cmid, LANE)
    Cout_p = _round_up(Cout, LANE)
    Sc_p = _round_up(Sc, LANE)
    Hs = H + 2 * pad
    Ws = _round_up(W + 2 * pad, SUBLANE)

    def fold_bn(gamma, beta, mean, var):
        scale = gamma / jnp.sqrt(var + EPS)
        return scale, beta - mean * scale

    s1, b1 = fold_bn(*p['bn1'])
    s2, b2 = fold_bn(*p['bn2'])
    s3, b3 = fold_bn(*p['bn3'])

    bf16 = jnp.bfloat16
    # BN scales folded into the weights in f32 BEFORE the bf16 cast.  Lane
    # padding is inert: padded columns of weights/taps/biases are zero.
    w1_p = _pad_to(p['w1'] * s1[None, :], (Cin, Cmid_p)).astype(bf16)
    wdw_f = (p['wdw'] * s2[None, None, :]).reshape(K * K, 1, Cmid)
    wdw_p = _pad_to(wdw_f, (K * K, 1, Cmid_p))
    wse1_p = _pad_to(p['wse1'], (Cmid_p, Sc_p)).astype(bf16)
    wse2_p = _pad_to(p['wse2'], (Sc_p, Cmid_p)).astype(bf16)
    wp_p = _pad_to(p['wp'] * s3[None, :], (Cmid_p, Cout_p)).astype(bf16)

    b1_p = _pad_to(b1[None, :], (1, Cmid_p))
    b2_p = _pad_to(b2[None, :], (1, Cmid_p))
    bse1_p = _pad_to(p['bse1'][None, :], (1, Sc_p))
    bse2_p = _pad_to(p['bse2'][None, :], (1, Cmid_p))
    b3_p = _pad_to(b3[None, :], (1, Cout_p))

    x = x_nhwc.astype(jnp.float32)

    # Explicit VMEM budget: double-buffered tiles + scratch + live temporaries.
    vmem_est = (
        2 * H * W * Cin * 4                           # input tile (x2 buffers)
        + 2 * H * W * Cout * 4                        # output tile (x2 buffers)
        + Hs * Ws * Cmid_p * 4                        # padded expansion scratch
        + 6 * H * Ws * Cmid_p * 4                     # acc / d / dse live values
        + 2 * (Cin + Cout_p + 2 * Sc_p) * Cmid_p * 2  # bf16 weight tiles
        + 2 * (K * K + 8) * max(Cmid_p, Cout_p) * 4   # taps + BN shifts
    )
    # Generation-aware scoped-VMEM cap: physical capacity minus headroom for
    # Mosaic internal scratch (~112 MiB on v5e/v6e, ~48 MiB on v7x).
    try:
        vmem_cap = int(pltpu.get_tpu_info().vmem_capacity_bytes)
    except Exception:  # pragma: no cover - non-TPU tracing fallback
        vmem_cap = 128 << 20
    vmem_budget = max(32 << 20, vmem_cap - (16 << 20))
    vmem_limit = int(min(max(2 * vmem_est, 32 << 20), vmem_budget))

    out = pl.pallas_call(
        _mbconv_kernel,
        out_shape=jax.ShapeDtypeStruct((N, H, W, Cout), jnp.float32),
        grid=(N,),
        in_specs=[
            pl.BlockSpec((1, H, W, Cin), lambda n: (n, 0, 0, 0)),
            pl.BlockSpec((Cin, Cmid_p), lambda n: (0, 0)),
            pl.BlockSpec((1, Cmid_p), lambda n: (0, 0)),
            pl.BlockSpec((K * K, 1, Cmid_p), lambda n: (0, 0, 0)),
            pl.BlockSpec((1, Cmid_p), lambda n: (0, 0)),
            pl.BlockSpec((Cmid_p, Sc_p), lambda n: (0, 0)),
            pl.BlockSpec((1, Sc_p), lambda n: (0, 0)),
            pl.BlockSpec((Sc_p, Cmid_p), lambda n: (0, 0)),
            pl.BlockSpec((1, Cmid_p), lambda n: (0, 0)),
            pl.BlockSpec((Cmid_p, Cout_p), lambda n: (0, 0)),
            pl.BlockSpec((1, Cout_p), lambda n: (0, 0)),
        ],
        out_specs=pl.BlockSpec((1, H, W, Cout), lambda n: (n, 0, 0, 0)),
        scratch_shapes=[pltpu.VMEM((Hs, Ws, Cmid_p), jnp.float32)],
        compiler_params=pltpu.CompilerParams(
            dimension_semantics=("parallel",),     # batch across TCs (v7x)
            vmem_limit_bytes=vmem_limit,
        ),
    )(x, w1_p, b1_p, wdw_p, b2_p,
      wse1_p, bse1_p, wse2_p, bse2_p, wp_p, b3_p)
    return out


def mbconv2d_forward(x_nchw, p):
    """MBConv2d forward. Input NCHW (PyTorch layout), output NCHW.

    For chained layers prefer mbconv2d_forward_nhwc to skip the two boundary
    transposes (each is a full HBM read+write).
    """
    x = jnp.transpose(x_nchw, (0, 2, 3, 1))        # NHWC
    out = mbconv2d_forward_nhwc(x, p)
    return jnp.transpose(out, (0, 3, 1, 2))        # back to NCHW


# ---------------------------------------------------------------------------
# Deterministic parameter init (shapes match the PyTorch module __init__)
# ---------------------------------------------------------------------------
def init_params(key, cin, cout, expand_ratio=2, kernel_size=3, se_ratio=0.3):
    cmid = cin * expand_ratio
    sc = max(1, int(cin * se_ratio))
    ks = jax.random.split(key, 10)

    def nrm(k, shape, s=0.1):
        return jax.random.normal(k, shape, jnp.float32) * s

    def bn_params(k, dim):
        k1, k2, k3, k4 = jax.random.split(k, 4)
        gamma = jax.random.uniform(k1, (dim,), jnp.float32, 0.5, 1.5)
        beta = nrm(k2, (dim,))
        mean = nrm(k3, (dim,))
        var = jax.random.uniform(k4, (dim,), jnp.float32, 0.5, 1.5)
        return (gamma, beta, mean, var)

    return dict(
        w1=nrm(ks[0], (cin, cmid)),                        # expand_conv (Cin, Cmid)
        bn1=bn_params(ks[1], cmid),
        wdw=nrm(ks[2], (kernel_size, kernel_size, cmid)),  # depthwise taps (K,K,Cmid)
        bn2=bn_params(ks[3], cmid),
        wse1=nrm(ks[4], (cmid, sc)),                       # se reduce
        bse1=nrm(ks[5], (sc,)),
        wse2=nrm(ks[6], (sc, cmid)),                       # se expand
        bse2=nrm(ks[7], (cmid,)),
        wp=nrm(ks[8], (cmid, cout)),                       # project_conv (Cmid, Cout)
        bn3=bn_params(ks[9], cout),
    )


# ---------------------------------------------------------------------------
# Pure-JAX reference (f32, for correctness check)
# ---------------------------------------------------------------------------
def reference_forward(x, p):
    def bn(y, gamma, beta, mean, var):
        inv = 1.0 / jnp.sqrt(var + EPS)
        return (y - mean[None, :, None, None]) * inv[None, :, None, None] \
            * gamma[None, :, None, None] + beta[None, :, None, None]

    def conv1x1(y, w):  # w: (Cin, Cout)
        return lax.conv_general_dilated(
            y, jnp.transpose(w, (1, 0))[:, :, None, None], (1, 1), 'VALID',
            dimension_numbers=('NCHW', 'OIHW', 'NCHW'))

    e = jax.nn.relu(bn(conv1x1(x, p['w1']), *p['bn1']))
    K = p['wdw'].shape[0]
    wdw = jnp.transpose(p['wdw'], (2, 0, 1))[:, None, :, :]  # (Cmid,1,K,K)
    d = lax.conv_general_dilated(
        e, wdw, (1, 1), [(K // 2, K // 2), (K // 2, K // 2)],
        dimension_numbers=('NCHW', 'OIHW', 'NCHW'),
        feature_group_count=e.shape[1])
    d = jax.nn.relu(bn(d, *p['bn2']))
    pooled = jnp.mean(d, axis=(2, 3), keepdims=True)
    s = jax.nn.relu(conv1x1(pooled, p['wse1']) + p['bse1'][None, :, None, None])
    s = jax.nn.sigmoid(conv1x1(s, p['wse2']) + p['bse2'][None, :, None, None])
    return bn(conv1x1(d * s, p['wp']), *p['bn3'])


if __name__ == "__main__":
    key = jax.random.PRNGKey(0)
    kx, kp = jax.random.split(key)
    N, Cin, H, W = 2, 4, 16, 16
    Cout = 8

    x = jax.random.normal(kx, (N, Cin, H, W), jnp.float32)
    params = init_params(kp, Cin, Cout, expand_ratio=2, kernel_size=3, se_ratio=0.3)

    fwd = jax.jit(mbconv2d_forward)
    out = jax.block_until_ready(fwd(x, params))
    assert out.shape == (N, Cout, H, W)

    ref = reference_forward(x, params)
    # Tolerance accounts for bf16 MXU inputs (f32 accumulation) vs f32 reference.
    np.testing.assert_allclose(np.asarray(out), np.asarray(ref), atol=2e-2, rtol=2e-2)

    print("KERNEL_OK")
</pallas_src>

<mosaic_0001>
module attributes {stable_mosaic.version = 11 : i64} {
  func.func @_mbconv_kernel(%arg0: i32, %arg1: memref<1x16x16x4xf32, #tpu.memory_space<vmem>>, %arg2: memref<4x128xbf16, #tpu.memory_space<vmem>>, %arg3: memref<1x128xf32, #tpu.memory_space<vmem>>, %arg4: memref<9x1x128xf32, #tpu.memory_space<vmem>>, %arg5: memref<1x128xf32, #tpu.memory_space<vmem>>, %arg6: memref<128x128xbf16, #tpu.memory_space<vmem>>, %arg7: memref<1x128xf32, #tpu.memory_space<vmem>>, %arg8: memref<128x128xbf16, #tpu.memory_space<vmem>>, %arg9: memref<1x128xf32, #tpu.memory_space<vmem>>, %arg10: memref<128x128xbf16, #tpu.memory_space<vmem>>, %arg11: memref<1x128xf32, #tpu.memory_space<vmem>>, %arg12: memref<1x16x16x8xf32, #tpu.memory_space<vmem>>, %arg13: memref<18x24x128xf32, #tpu.memory_space<vmem>>) attributes {dimension_semantics = [#tpu.dimension_semantics<parallel>], iteration_bounds = array<i64: 2>, scalar_prefetch = 0 : i64, scratch_operands = 1 : i64, tpu.core_type = #tpu.core_type<tc>, window_params = [{transform_indices = @transform_0, window_bounds = array<i64: 1, 16, 16, 4>}, {pipeline_mode = #tpu.pipeline_mode<synchronous>, transform_indices = @transform_1, window_bounds = array<i64: 4, 128>}, {pipeline_mode = #tpu.pipeline_mode<synchronous>, transform_indices = @transform_2, window_bounds = array<i64: 1, 128>}, {pipeline_mode = #tpu.pipeline_mode<synchronous>, transform_indices = @transform_3, window_bounds = array<i64: 9, 1, 128>}, {pipeline_mode = #tpu.pipeline_mode<synchronous>, transform_indices = @transform_4, window_bounds = array<i64: 1, 128>}, {pipeline_mode = #tpu.pipeline_mode<synchronous>, transform_indices = @transform_5, window_bounds = array<i64: 128, 128>}, {pipeline_mode = #tpu.pipeline_mode<synchronous>, transform_indices = @transform_6, window_bounds = array<i64: 1, 128>}, {pipeline_mode = #tpu.pipeline_mode<synchronous>, transform_indices = @transform_7, window_bounds = array<i64: 128, 128>}, {pipeline_mode = #tpu.pipeline_mode<synchronous>, transform_indices = @transform_8, window_bounds = array<i64: 1, 128>}, {pipeline_mode = #tpu.pipeline_mode<synchronous>, transform_indices = @transform_9, window_bounds = array<i64: 128, 128>}, {pipeline_mode = #tpu.pipeline_mode<synchronous>, transform_indices = @transform_10, window_bounds = array<i64: 1, 128>}, {transform_indices = @transform_11, window_bounds = array<i64: 1, 16, 16, 8>}]} {
    %cst = arith.constant 0.000000e+00 : f32
    %0 = vector.broadcast %cst : f32 to vector<1x24x128xf32>
    %c0 = arith.constant 0 : index
    %c0_0 = arith.constant 0 : index
    %c0_1 = arith.constant 0 : index
    %1 = vector.load %arg13[%c0, %c0_0, %c0_1] : memref<18x24x128xf32, #tpu.memory_space<vmem>>, vector<1x24x128xf32>
    tpu.vector_store %arg13[%c0, %c0_0, %c0_1], %0 {strides = array<i32>} : memref<18x24x128xf32, #tpu.memory_space<vmem>>, vector<1x24x128xf32>,
    %cst_2 = arith.constant 0.000000e+00 : f32
    %2 = vector.broadcast %cst_2 : f32 to vector<1x24x128xf32>
    %c17 = arith.constant 17 : index
    %c0_3 = arith.constant 0 : index
    %c0_4 = arith.constant 0 : index
    %3 = vector.load %arg13[%c17, %c0_3, %c0_4] : memref<18x24x128xf32, #tpu.memory_space<vmem>>, vector<1x24x128xf32>
    tpu.vector_store %arg13[%c17, %c0_3, %c0_4], %2 {strides = array<i32>} : memref<18x24x128xf32, #tpu.memory_space<vmem>>, vector<1x24x128xf32>,
    %cst_5 = arith.constant 0.000000e+00 : f32
    %4 = vector.broadcast %cst_5 : f32 to vector<16x8x128xf32>
    %c1 = arith.constant 1 : index
    %c16 = arith.constant 16 : index
    %c0_6 = arith.constant 0 : index
    %5 = vector.load %arg13[%c1, %c16, %c0_6] : memref<18x24x128xf32, #tpu.memory_space<vmem>>, vector<16x8x128xf32>
    tpu.vector_store %arg13[%c1, %c16, %c0_6], %4 {strides = array<i32>} : memref<18x24x128xf32, #tpu.memory_space<vmem>>, vector<16x8x128xf32>,
    %c0_7 = arith.constant 0 : index
    %c0_8 = arith.constant 0 : index
    %c0_9 = arith.constant 0 : index
    %c0_10 = arith.constant 0 : index
    %6 = vector.load %arg1[%c0_7, %c0_8, %c0_9, %c0_10] : memref<1x16x16x4xf32, #tpu.memory_space<vmem>>, vector<1x16x16x4xf32>
    %7 = vector.shape_cast %6 : vector<1x16x16x4xf32> to vector<16x16x4xf32>
    %8 = vector.shape_cast %7 : vector<16x16x4xf32> to vector<256x4xf32>
    %9 = arith.truncf %8 : vector<256x4xf32> to vector<256x4xbf16>
    %c0_11 = arith.constant 0 : index
    %c0_12 = arith.constant 0 : index
    %10 = vector.load %arg2[%c0_11, %c0_12] : memref<4x128xbf16, #tpu.memory_space<vmem>>, vector<4x128xbf16>
    %cst_13 = arith.constant dense<0.000000e+00> : vector<256x128xf32>
    %11 = tpu.matmul %9, %10, %cst_13 {dimension_numbers = #tpu.dot_dimension_numbers<[1], [0], [0], [1], [0, 0, 1, 1], [], []>} : vector<256x4xbf16>, vector<4x128xbf16>, vector<256x128xf32> -> vector<256x128xf32>
    %c0_14 = arith.constant 0 : index
    %c0_15 = arith.constant 0 : index
    %12 = vector.load %arg3[%c0_14, %c0_15] : memref<1x128xf32, #tpu.memory_space<vmem>>, vector<1x128xf32>
    %13 = vector.broadcast %12 : vector<1x128xf32> to vector<256x128xf32>
    %14 = arith.addf %11, %13 : vector<256x128xf32>
    %cst_16 = arith.constant 0.000000e+00 : f32
    %15 = vector.broadcast %cst_16 : f32 to vector<256x128xf32>
    %16 = arith.maximumf %14, %15 : vector<256x128xf32>
    %17 = vector.shape_cast %16 : vector<256x128xf32> to vector<16x16x128xf32>
    %c1_17 = arith.constant 1 : index
    %c0_18 = arith.constant 0 : index
    %c0_19 = arith.constant 0 : index
    %18 = vector.load %arg13[%c1_17, %c0_18, %c0_19] : memref<18x24x128xf32, #tpu.memory_space<vmem>>, vector<16x16x128xf32>
    tpu.vector_store %arg13[%c1_17, %c0_18, %c0_19], %17 {strides = array<i32>} : memref<18x24x128xf32, #tpu.memory_space<vmem>>, vector<16x16x128xf32>,
    %c0_20 = arith.constant 0 : index
    %c0_21 = arith.constant 0 : index
    %c0_22 = arith.constant 0 : index
    %19 = vector.load %arg4[%c0_20, %c0_21, %c0_22] : memref<9x1x128xf32, #tpu.memory_space<vmem>>, vector<9x1x128xf32>
    %c0_23 = arith.constant 0 : index
    %c0_24 = arith.constant 0 : index
    %20 = vector.load %arg5[%c0_23, %c0_24] : memref<1x128xf32, #tpu.memory_space<vmem>>, vector<1x128xf32>
    %cst_25 = arith.constant 0.000000e+00 : f32
    %21 = vector.broadcast %cst_25 : f32 to vector<384x128xf32>
    %c0_26 = arith.constant 0 : index
    %c0_27 = arith.constant 0 : index
    %c0_28 = arith.constant 0 : index
    %22 = vector.load %arg13[%c0_26, %c0_27, %c0_28] : memref<18x24x128xf32, #tpu.memory_space<vmem>>, vector<16x24x128xf32>
    %23 = vector.shape_cast %22 : vector<16x24x128xf32> to vector<384x128xf32>
    %c1_i32 = arith.constant 1 : i32
    %24 = tpu.dynamic_rotate %23 by %c1_i32 dim 0 : vector<384x128xf32>, i32 -> vector<384x128xf32>
    %25 = vector.extract_strided_slice %19 {offsets = [0, 0, 0], sizes = [1, 1, 128], strides = [1, 1, 1]} : vector<9x1x128xf32> to vector<1x1x128xf32>
    %26 = vector.shape_cast %25 : vector<1x1x128xf32> to vector<1x128xf32>
    %27 = vector.broadcast %26 : vector<1x128xf32> to vector<384x128xf32>
    %28 = arith.mulf %24, %27 : vector<384x128xf32>
    %29 = arith.addf %21, %28 : vector<384x128xf32>
    %30 = vector.extract_strided_slice %19 {offsets = [1, 0, 0], sizes = [1, 1, 128], strides = [1, 1, 1]} : vector<9x1x128xf32> to vector<1x1x128xf32>
    %31 = vector.shape_cast %30 : vector<1x1x128xf32> to vector<1x128xf32>
    %32 = vector.broadcast %31 : vector<1x128xf32> to vector<384x128xf32>
    %33 = arith.mulf %23, %32 : vector<384x128xf32>
    %34 = arith.addf %29, %33 : vector<384x128xf32>
    %c383_i32 = arith.constant 383 : i32
    %35 = tpu.dynamic_rotate %23 by %c383_i32 dim 0 : vector<384x128xf32>, i32 -> vector<384x128xf32>
    %36 = vector.extract_strided_slice %19 {offsets = [2, 0, 0], sizes = [1, 1, 128], strides = [1, 1, 1]} : vector<9x1x128xf32> to vector<1x1x128xf32>
    %37 = vector.shape_cast %36 : vector<1x1x128xf32> to vector<1x128xf32>
    %38 = vector.broadcast %37 : vector<1x128xf32> to vector<384x128xf32>
    %39 = arith.mulf %35, %38 : vector<384x128xf32>
    %40 = arith.addf %34, %39 : vector<384x128xf32>
    %c1_29 = arith.constant 1 : index
    %c0_30 = arith.constant 0 : index
    %c0_31 = arith.constant 0 : index
    %41 = vector.load %arg13[%c1_29, %c0_30, %c0_31] : memref<18x24x128xf32, #tpu.memory_space<vmem>>, vector<16x24x128xf32>
    %42 = vector.shape_cast %41 : vector<16x24x128xf32> to vector<384x128xf32>
    %c1_i32_32 = arith.constant 1 : i32
    %43 = tpu.dynamic_rotate %42 by %c1_i32_32 dim 0 : vector<384x128xf32>, i32 -> vector<384x128xf32>
    %44 = vector.extract_strided_slice %19 {offsets = [3, 0, 0], sizes = [1, 1, 128], strides = [1, 1, 1]} : vector<9x1x128xf32> to vector<1x1x128xf32>
    %45 = vector.shape_cast %44 : vector<1x1x128xf32> to vector<1x128xf32>
    %46 = vector.broadcast %45 : vector<1x128xf32> to vector<384x128xf32>
    %47 = arith.mulf %43, %46 : vector<384x128xf32>
    %48 = arith.addf %40, %47 : vector<384x128xf32>
    %49 = vector.extract_strided_slice %19 {offsets = [4, 0, 0], sizes = [1, 1, 128], strides = [1, 1, 1]} : vector<9x1x128xf32> to vector<1x1x128xf32>
    %50 = vector.shape_cast %49 : vector<1x1x128xf32> to vector<1x128xf32>
    %51 = vector.broadcast %50 : vector<1x128xf32> to vector<384x128xf32>
    %52 = arith.mulf %42, %51 : vector<384x128xf32>
    %53 = arith.addf %48, %52 : vector<384x128xf32>
    %c383_i32_33 = arith.constant 383 : i32
    %54 = tpu.dynamic_rotate %42 by %c383_i32_33 dim 0 : vector<384x128xf32>, i32 -> vector<384x128xf32>
    %55 = vector.extract_strided_slice %19 {offsets = [5, 0, 0], sizes = [1, 1, 128], strides = [1, 1, 1]} : vector<9x1x128xf32> to vector<1x1x128xf32>
    %56 = vector.shape_cast %55 : vector<1x1x128xf32> to vector<1x128xf32>
    %57 = vector.broadcast %56 : vector<1x128xf32> to vector<384x128xf32>
    %58 = arith.mulf %54, %57 : vector<384x128xf32>
    %59 = arith.addf %53, %58 : vector<384x128xf32>
    %c2 = arith.constant 2 : index
    %c0_34 = arith.constant 0 : index
    %c0_35 = arith.constant 0 : index
    %60 = vector.load %arg13[%c2, %c0_34, %c0_35] : memref<18x24x128xf32, #tpu.memory_space<vmem>>, vector<16x24x128xf32>
    %61 = vector.shape_cast %60 : vector<16x24x128xf32> to vector<384x128xf32>
    %c1_i32_36 = arith.constant 1 : i32
    %62 = tpu.dynamic_rotate %61 by %c1_i32_36 dim 0 : vector<384x128xf32>, i32 -> vector<384x128xf32>
    %63 = vector.extract_strided_slice %19 {offsets = [6, 0, 0], sizes = [1, 1, 128], strides = [1, 1, 1]} : vector<9x1x128xf32> to vector<1x1x128xf32>
    %64 = vector.shape_cast %63 : vector<1x1x128xf32> to vector<1x128xf32>
    %65 = vector.broadcast %64 : vector<1x128xf32> to vector<384x128xf32>
    %66 = arith.mulf %62, %65 : vector<384x128xf32>
    %67 = arith.addf %59, %66 : vector<384x128xf32>
    %68 = vector.extract_strided_slice %19 {offsets = [7, 0, 0], sizes = [1, 1, 128], strides = [1, 1, 1]} : vector<9x1x128xf32> to vector<1x1x128xf32>
    %69 = vector.shape_cast %68 : vector<1x1x128xf32> to vector<1x128xf32>
    %70 = vector.broadcast %69 : vector<1x128xf32> to vector<384x128xf32>
    %71 = arith.mulf %61, %70 : vector<384x128xf32>
    %72 = arith.addf %67, %71 : vector<384x128xf32>
    %c383_i32_37 = arith.constant 383 : i32
    %73 = tpu.dynamic_rotate %61 by %c383_i32_37 dim 0 : vector<384x128xf32>, i32 -> vector<384x128xf32>
    %74 = vector.extract_strided_slice %19 {offsets = [8, 0, 0], sizes = [1, 1, 128], strides = [1, 1, 1]} : vector<9x1x128xf32> to vector<1x1x128xf32>
    %75 = vector.shape_cast %74 : vector<1x1x128xf32> to vector<1x128xf32>
    %76 = vector.broadcast %75 : vector<1x128xf32> to vector<384x128xf32>
    %77 = arith.mulf %73, %76 : vector<384x128xf32>
    %78 = arith.addf %72, %77 : vector<384x128xf32>
    %79 = vector.broadcast %20 : vector<1x128xf32> to vector<384x128xf32>
    %80 = arith.addf %78, %79 : vector<384x128xf32>
    %cst_38 = arith.constant 0.000000e+00 : f32
    %81 = vector.broadcast %cst_38 : f32 to vector<384x128xf32>
    %82 = arith.maximumf %80, %81 : vector<384x128xf32>
    %83 = vector.shape_cast %82 : vector<384x128xf32> to vector<16x24x128xf32>
    %84 = tpu.iota {dimensions = array<i32: 1>} : vector<1x24x1xi32>
    %c16_i32 = arith.constant 16 : i32
    %85 = vector.broadcast %c16_i32 : i32 to vector<1x24x1xi32>
    %86 = arith.cmpi slt, %84, %85 : vector<1x24x1xi32>
    %cst_39 = arith.constant 0.000000e+00 : f32
    %87 = vector.shape_cast %86 : vector<1x24x1xi1> to vector<1x24x1xi1>
    %88 = vector.broadcast %87 : vector<1x24x1xi1> to vector<16x24x128xi1>
    %89 = vector.broadcast %cst_39 : f32 to vector<16x24x128xf32>
    %90 = arith.select %88, %83, %89 : vector<16x24x128xi1>, vector<16x24x128xf32>
    %91 = vector.shape_cast %90 : vector<16x24x128xf32> to vector<384x128xf32>
    %cst_40 = arith.constant dense<0.000000e+00> : vector<128xf32>
    %92 = vector.multi_reduction <add>, %91, %cst_40 [0] : vector<384x128xf32> to vector<128xf32>
    %93 = vector.shape_cast %92 : vector<128xf32> to vector<1x128xf32>
    %cst_41 = arith.constant 3.906250e-03 : f32
    %94 = vector.broadcast %cst_41 : f32 to vector<1x128xf32>
    %95 = arith.mulf %93, %94 : vector<1x128xf32>
    %96 = arith.truncf %95 : vector<1x128xf32> to vector<1x128xbf16>
    %c0_42 = arith.constant 0 : index
    %c0_43 = arith.constant 0 : index
    %97 = vector.load %arg6[%c0_42, %c0_43] : memref<128x128xbf16, #tpu.memory_space<vmem>>, vector<128x128xbf16>
    %cst_44 = arith.constant dense<0.000000e+00> : vector<1x128xf32>
    %98 = tpu.matmul %96, %97, %cst_44 {dimension_numbers = #tpu.dot_dimension_numbers<[1], [0], [0], [1], [0, 0, 1, 1], [], []>} : vector<1x128xbf16>, vector<128x128xbf16>, vector<1x128xf32> -> vector<1x128xf32>
    %c0_45 = arith.constant 0 : index
    %c0_46 = arith.constant 0 : index
    %99 = vector.load %arg7[%c0_45, %c0_46] : memref<1x128xf32, #tpu.memory_space<vmem>>, vector<1x128xf32>
    %100 = arith.addf %98, %99 : vector<1x128xf32>
    %cst_47 = arith.constant 0.000000e+00 : f32
    %101 = vector.broadcast %cst_47 : f32 to vector<1x128xf32>
    %102 = arith.maximumf %100, %101 : vector<1x128xf32>
    %103 = arith.truncf %102 : vector<1x128xf32> to vector<1x128xbf16>
    %c0_48 = arith.constant 0 : index
    %c0_49 = arith.constant 0 : index
    %104 = vector.load %arg8[%c0_48, %c0_49] : memref<128x128xbf16, #tpu.memory_space<vmem>>, vector<128x128xbf16>
    %cst_50 = arith.constant dense<0.000000e+00> : vector<1x128xf32>
    %105 = tpu.matmul %103, %104, %cst_50 {dimension_numbers = #tpu.dot_dimension_numbers<[1], [0], [0], [1], [0, 0, 1, 1], [], []>} : vector<1x128xbf16>, vector<128x128xbf16>, vector<1x128xf32> -> vector<1x128xf32>
    %c0_51 = arith.constant 0 : index
    %c0_52 = arith.constant 0 : index
    %106 = vector.load %arg9[%c0_51, %c0_52] : memref<1x128xf32, #tpu.memory_space<vmem>>, vector<1x128xf32>
    %107 = arith.addf %105, %106 : vector<1x128xf32>
    %108 = arith.negf %107 : vector<1x128xf32>
    %109 = math.exp %108 : vector<1x128xf32>
    %cst_53 = arith.constant 1.000000e+00 : f32
    %110 = vector.broadcast %cst_53 : f32 to vector<1x128xf32>
    %111 = arith.addf %110, %109 : vector<1x128xf32>
    %112 = arith.divf %110, %111 : vector<1x128xf32>
    %113 = vector.broadcast %112 : vector<1x128xf32> to vector<384x128xf32>
    %114 = arith.mulf %91, %113 : vector<384x128xf32>
    %115 = arith.truncf %114 : vector<384x128xf32> to vector<384x128xbf16>
    %c0_54 = arith.constant 0 : index
    %c0_55 = arith.constant 0 : index
    %116 = vector.load %arg10[%c0_54, %c0_55] : memref<128x128xbf16, #tpu.memory_space<vmem>>, vector<128x128xbf16>
    %cst_56 = arith.constant dense<0.000000e+00> : vector<384x128xf32>
    %117 = tpu.matmul %115, %116, %cst_56 {dimension_numbers = #tpu.dot_dimension_numbers<[1], [0], [0], [1], [0, 0, 1, 1], [], []>} : vector<384x128xbf16>, vector<128x128xbf16>, vector<384x128xf32> -> vector<384x128xf32>
    %c0_57 = arith.constant 0 : index
    %c0_58 = arith.constant 0 : index
    %118 = vector.load %arg11[%c0_57, %c0_58] : memref<1x128xf32, #tpu.memory_space<vmem>>, vector<1x128xf32>
    %119 = vector.broadcast %118 : vector<1x128xf32> to vector<384x128xf32>
    %120 = arith.addf %117, %119 : vector<384x128xf32>
    %121 = vector.shape_cast %120 : vector<384x128xf32> to vector<16x24x128xf32>
    %122 = vector.extract_strided_slice %121 {offsets = [0, 0, 0], sizes = [16, 16, 8], strides = [1, 1, 1]} : vector<16x24x128xf32> to vector<16x16x8xf32>
    %c0_59 = arith.constant 0 : index
    %c0_60 = arith.constant 0 : index
    %c0_61 = arith.constant 0 : index
    %c0_62 = arith.constant 0 : index
    %123 = vector.load %arg12[%c0_59, %c0_60, %c0_61, %c0_62] : memref<1x16x16x8xf32, #tpu.memory_space<vmem>>, vector<1x16x16x8xf32>
    %124 = vector.shape_cast %123 : vector<1x16x16x8xf32> to vector<16x16x8xf32>
    %125 = vector.shape_cast %122 : vector<16x16x8xf32> to vector<1x16x16x8xf32>
    tpu.vector_store %arg12[%c0_59, %c0_60, %c0_61, %c0_62], %125 {strides = array<i32>} : memref<1x16x16x8xf32, #tpu.memory_space<vmem>>, vector<1x16x16x8xf32>,
    return
  }
  func.func @transform_0(%arg0: i32) -> (i32, i32, i32, i32) {
    %c0_i32 = arith.constant 0 : i32
    %c0_i32_0 = arith.constant 0 : i32
    %c0_i32_1 = arith.constant 0 : i32
    %c0_i32_2 = arith.constant 0 : i32
    return %arg0, %c0_i32, %c0_i32_0, %c0_i32_1 : i32, i32, i32, i32
  }
  func.func @transform_1(%arg0: i32) -> (i32, i32) {
    %c0_i32 = arith.constant 0 : i32
    %c0_i32_0 = arith.constant 0 : i32
    %c0_i32_1 = arith.constant 0 : i32
    return %c0_i32, %c0_i32_0 : i32, i32
  }
  func.func @transform_2(%arg0: i32) -> (i32, i32) {
    %c0_i32 = arith.constant 0 : i32
    %c0_i32_0 = arith.constant 0 : i32
    %c0_i32_1 = arith.constant 0 : i32
    return %c0_i32, %c0_i32_0 : i32, i32
  }
  func.func @transform_3(%arg0: i32) -> (i32, i32, i32) {
    %c0_i32 = arith.constant 0 : i32
    %c0_i32_0 = arith.constant 0 : i32
    %c0_i32_1 = arith.constant 0 : i32
    %c0_i32_2 = arith.constant 0 : i32
    return %c0_i32, %c0_i32_0, %c0_i32_1 : i32, i32, i32
  }
  func.func @transform_4(%arg0: i32) -> (i32, i32) {
    %c0_i32 = arith.constant 0 : i32
    %c0_i32_0 = arith.constant 0 : i32
    %c0_i32_1 = arith.constant 0 : i32
    return %c0_i32, %c0_i32_0 : i32, i32
  }
  func.func @transform_5(%arg0: i32) -> (i32, i32) {
    %c0_i32 = arith.constant 0 : i32
    %c0_i32_0 = arith.constant 0 : i32
    %c0_i32_1 = arith.constant 0 : i32
    return %c0_i32, %c0_i32_0 : i32, i32
  }
  func.func @transform_6(%arg0: i32) -> (i32, i32) {
    %c0_i32 = arith.constant 0 : i32
    %c0_i32_0 = arith.constant 0 : i32
    %c0_i32_1 = arith.constant 0 : i32
    return %c0_i32, %c0_i32_0 : i32, i32
  }
  func.func @transform_7(%arg0: i32) -> (i32, i32) {
    %c0_i32 = arith.constant 0 : i32
    %c0_i32_0 = arith.constant 0 : i32
    %c0_i32_1 = arith.constant 0 : i32
    return %c0_i32, %c0_i32_0 : i32, i32
  }
  func.func @transform_8(%arg0: i32) -> (i32, i32) {
    %c0_i32 = arith.constant 0 : i32
    %c0_i32_0 = arith.constant 0 : i32
    %c0_i32_1 = arith.constant 0 : i32
    return %c0_i32, %c0_i32_0 : i32, i32
  }
  func.func @transform_9(%arg0: i32) -> (i32, i32) {
    %c0_i32 = arith.constant 0 : i32
    %c0_i32_0 = arith.constant 0 : i32
    %c0_i32_1 = arith.constant 0 : i32
    return %c0_i32, %c0_i32_0 : i32, i32
  }
  func.func @transform_10(%arg0: i32) -> (i32, i32) {
    %c0_i32 = arith.constant 0 : i32
    %c0_i32_0 = arith.constant 0 : i32
    %c0_i32_1 = arith.constant 0 : i32
    return %c0_i32, %c0_i32_0 : i32, i32
  }
  func.func @transform_11(%arg0: i32) -> (i32, i32, i32, i32) {
    %c0_i32 = arith.constant 0 : i32
    %c0_i32_0 = arith.constant 0 : i32
    %c0_i32_1 = arith.constant 0 : i32
    %c0_i32_2 = arith.constant 0 : i32
    return %arg0, %c0_i32, %c0_i32_0, %c0_i32_1 : i32, i32, i32, i32
  }
}

</mosaic_0001>

<llo_original>
// kernel: mbconv2d_forward.1
$region0: #{mbconv2d_forward.1}
  #allocation0 [shape = 'u32[]', space=smem, size = 0x4, offset = 0x4, fixed_abs, tag = 'smem constant byte address 0x4 - core index']
  #allocation1 [shape = 'u32[144,128]{1,0:T(1,128)}', space=vmem, size = 0x12000, scoped, tag = 'internal scratch']
  #allocation2 [shape = 'f32[18,24,128]{2,1,0:T(8,128)}', space=vmem, size = 0x36000, scoped, tag = 'scratch operand']
  %s0 = inlined_call_operand.vmem [shape: f32[2,16,16,4], index: 0, kind: input, shape index: {}]
  %s1 = inlined_call_operand.vmem [shape: bf16[4,128], index: 1, kind: input, shape index: {}]
  %s2 = inlined_call_operand.vmem [shape: f32[1,128], index: 2, kind: input, shape index: {}]
  %s3 = inlined_call_operand.vmem [shape: f32[9,1,128], index: 3, kind: input, shape index: {}]
  %s4 = inlined_call_operand.vmem [shape: f32[1,128], index: 4, kind: input, shape index: {}]
  %s5 = inlined_call_operand.vmem [shape: bf16[128,128], index: 5, kind: input, shape index: {}]
  %s6 = inlined_call_operand.vmem [shape: f32[1,128], index: 6, kind: input, shape index: {}]
  %s7 = inlined_call_operand.vmem [shape: bf16[128,128], index: 7, kind: input, shape index: {}]
  %s8 = inlined_call_operand.vmem [shape: f32[1,128], index: 8, kind: input, shape index: {}]
  %s9 = inlined_call_operand.vmem [shape: bf16[128,128], index: 9, kind: input, shape index: {}]
  %s10 = inlined_call_operand.vmem [shape: f32[1,128], index: 10, kind: input, shape index: {}]
  %s11 = inlined_call_operand.vmem [shape: f32[2,16,16,8], index: 11, kind: output, shape index: {}]
  %s12 = sld [smem:[#allocation0]]
  $region77: #{mbconv2d_forward.1} parent=0
    _
  %s14 = ssub.s32 1, %s12
  %s15 = scalar_select 0, %s14, %s12
  loop: start=0, step=1, limit=4
  $region2: #{mbconv2d_forward.1} parent=0 // loop_pre_header
    _
  $region3: #{mbconv2d_forward.1} parent=0 // loop_header
    %s17 = sphi 0, %s21
    %p18 = scmp.ge.s32.totalorder %s17, 4
    %s27 = sphi 0, %s29
    %s30 = sphi 0, %s27
    %s31 = sphi 0, %s30
    %s47 = sphi 0, %s31
    %s51 = sphi 0, %s51
    %s53 = sphi 0, %s51
    %s54 = sphi 0, %s53
    %s68 = sphi 0, %s54
    %s72 = sphi 0, %s72
    %s74 = sphi 0, %s72
    %s75 = sphi 0, %s74
    %s89 = sphi 0, %s75
    %s93 = sphi 0, %s93
    %s95 = sphi 0, %s93
    %s96 = sphi 0, %s95
    %s110 = sphi 0, %s96
    %s114 = sphi 0, %s114
    %s116 = sphi 0, %s114
    %s117 = sphi 0, %s116
    %s131 = sphi 0, %s117
    %s135 = sphi 0, %s135
    %s137 = sphi 0, %s135
    %s138 = sphi 0, %s137
    %s152 = sphi 0, %s138
    %s156 = sphi 0, %s156
    %s158 = sphi 0, %s156
    %s159 = sphi 0, %s158
    %s173 = sphi 0, %s159
    %s177 = sphi 0, %s177
    %s179 = sphi 0, %s177
    %s180 = sphi 0, %s179
    %s194 = sphi 0, %s180
    %s198 = sphi 0, %s198
    %s200 = sphi 0, %s198
    %s201 = sphi 0, %s200
    %s215 = sphi 0, %s201
    %s219 = sphi 0, %s219
    %s221 = sphi 0, %s219
    %s222 = sphi 0, %s221
    %s236 = sphi 0, %s222
    %s240 = sphi 0, %s240
    %s242 = sphi 0, %s240
    %s243 = sphi 0, %s242
    %s257 = sphi 0, %s243
    %s263 = sphi 0, %s265
    %s266 = sphi 0, %s263
    %s267 = sphi 0, %s266
    %s283 = sphi 0, %s267
  $region4: #{mbconv2d_forward.1} parent=0 // loop_header_branch
    %20 = sbr.rel (%p18) target = $region8
  $region5: #{mbconv2d_forward.1} parent=0 // loop_body
    %s22 = ssub.s32 %s17, 1
    %s23 = ssub.s32 %s17, 2
    %s24 = sadd.s32 %s17, 1
    %s25 = ssub.s32 %s17, %s24
    %p26 = scmp.eq.s32.totalorder %s25, 0
    %s28 = sadd.s32 %s27, 1
    %s29 = scalar_select %p26, %s27, %s28
    %p32 = pneg %p26
    %p33 = scmp.eq.s32.totalorder %s17, 1
    %p34 = por %p32, %p33
    %p35 = scmp.ne.s32.totalorder %s27, %s30
    %p36 = scmp.eq.s32.totalorder %s17, 0
    %p37 = por %p35, %p36
    %p38 = scmp.ne.s32.totalorder %s27, %s30
    %p39 = scmp.eq.s32.totalorder %s22, 1
    %p40 = por %p38, %p39
    %p41 = scmp.ne.s32.totalorder %s30, %s31
    %p42 = scmp.eq.s32.totalorder %s22, 0
    %p43 = por %p41, %p42
    %p44 = scmp.ne.s32.totalorder %s30, %s31
    %p45 = scmp.eq.s32.totalorder %s23, 1
    %p46 = por %p44, %p45
    %p48 = scmp.ne.s32.totalorder %s31, %s47
    %p49 = scmp.eq.s32.totalorder %s23, 0
    %p50 = por %p48, %p49
    %s52 = sadd.s32 %s51, 1
    %p55 = scmp.eq.s32.totalorder %s17, 1
    %p56 = scmp.ne.s32.totalorder %s51, %s53
    %p57 = scmp.eq.s32.totalorder %s17, 0
    %p58 = por %p56, %p57
    %p59 = scmp.ne.s32.totalorder %s51, %s53
    %p60 = scmp.eq.s32.totalorder %s22, 1
    %p61 = por %p59, %p60
    %p62 = scmp.ne.s32.totalorder %s53, %s54
    %p63 = scmp.eq.s32.totalorder %s22, 0
    %p64 = por %p62, %p63
    %p65 = scmp.ne.s32.totalorder %s53, %s54
    %p66 = scmp.eq.s32.totalorder %s23, 1
    %p67 = por %p65, %p66
    %p69 = scmp.ne.s32.totalorder %s54, %s68
    %p70 = scmp.eq.s32.totalorder %s23, 0
    %p71 = por %p69, %p70
    %s73 = sadd.s32 %s72, 1
    %p76 = scmp.eq.s32.totalorder %s17, 1
    %p77 = scmp.ne.s32.totalorder %s72, %s74
    %p78 = scmp.eq.s32.totalorder %s17, 0
    %p79 = por %p77, %p78
    %p80 = scmp.ne.s32.totalorder %s72, %s74
    %p81 = scmp.eq.s32.totalorder %s22, 1
    %p82 = por %p80, %p81
    %p83 = scmp.ne.s32.totalorder %s74, %s75
    %p84 = scmp.eq.s32.totalorder %s22, 0
    %p85 = por %p83, %p84
    %p86 = scmp.ne.s32.totalorder %s74, %s75
    %p87 = scmp.eq.s32.totalorder %s23, 1
    %p88 = por %p86, %p87
    %p90 = scmp.ne.s32.totalorder %s75, %s89
    %p91 = scmp.eq.s32.totalorder %s23, 0
    %p92 = por %p90, %p91
    %s94 = sadd.s32 %s93, 1
    %p97 = scmp.eq.s32.totalorder %s17, 1
    %p98 = scmp.ne.s32.totalorder %s93, %s95
    %p99 = scmp.eq.s32.totalorder %s17, 0
    %p100 = por %p98, %p99
    %p101 = scmp.ne.s32.totalorder %s93, %s95
    %p102 = scmp.eq.s32.totalorder %s22, 1
    %p103 = por %p101, %p102
    %p104 = scmp.ne.s32.totalorder %s95, %s96
    %p105 = scmp.eq.s32.totalorder %s22, 0
    %p106 = por %p104, %p105
    %p107 = scmp.ne.s32.totalorder %s95, %s96
    %p108 = scmp.eq.s32.totalorder %s23, 1
    %p109 = por %p107, %p108
    %p111 = scmp.ne.s32.totalorder %s96, %s110
    %p112 = scmp.eq.s32.totalorder %s23, 0
    %p113 = por %p111, %p112
    %s115 = sadd.s32 %s114, 1
    %p118 = scmp.eq.s32.totalorder %s17, 1
    %p119 = scmp.ne.s32.totalorder %s114, %s116
    %p120 = scmp.eq.s32.totalorder %s17, 0
    %p121 = por %p119, %p120
    %p122 = scmp.ne.s32.totalorder %s114, %s116
    %p123 = scmp.eq.s32.totalorder %s22, 1
    %p124 = por %p122, %p123
    %p125 = scmp.ne.s32.totalorder %s116, %s117
    %p126 = scmp.eq.s32.totalorder %s22, 0
    %p127 = por %p125, %p126
    %p128 = scmp.ne.s32.totalorder %s116, %s117
    %p129 = scmp.eq.s32.totalorder %s23, 1
    %p130 = por %p128, %p129
    %p132 = scmp.ne.s32.totalorder %s117, %s131
    %p133 = scmp.eq.s32.totalorder %s23, 0
    %p134 = por %p132, %p133
    %s136 = sadd.s32 %s135, 1
    %p139 = scmp.eq.s32.totalorder %s17, 1
    %p140 = scmp.ne.s32.totalorder %s135, %s137
    %p141 = scmp.eq.s32.totalorder %s17, 0
    %p142 = por %p140, %p141
    %p143 = scmp.ne.s32.totalorder %s135, %s137
    %p144 = scmp.eq.s32.totalorder %s22, 1
    %p145 = por %p143, %p144
    %p146 = scmp.ne.s32.totalorder %s137, %s138
    %p147 = scmp.eq.s32.totalorder %s22, 0
    %p148 = por %p146, %p147
    %p149 = scmp.ne.s32.totalorder %s137, %s138
    %p150 = scmp.eq.s32.totalorder %s23, 1
    %p151 = por %p149, %p150
    %p153 = scmp.ne.s32.totalorder %s138, %s152
    %p154 = scmp.eq.s32.totalorder %s23, 0
    %p155 = por %p153, %p154
    %s157 = sadd.s32 %s156, 1
    %p160 = scmp.eq.s32.totalorder %s17, 1
    %p161 = scmp.ne.s32.totalorder %s156, %s158
    %p162 = scmp.eq.s32.totalorder %s17, 0
    %p163 = por %p161, %p162
    %p164 = scmp.ne.s32.totalorder %s156, %s158
    %p165 = scmp.eq.s32.totalorder %s22, 1
    %p166 = por %p164, %p165
    %p167 = scmp.ne.s32.totalorder %s158, %s159
    %p168 = scmp.eq.s32.totalorder %s22, 0
    %p169 = por %p167, %p168
    %p170 = scmp.ne.s32.totalorder %s158, %s159
    %p171 = scmp.eq.s32.totalorder %s23, 1
    %p172 = por %p170, %p171
    %p174 = scmp.ne.s32.totalorder %s159, %s173
    %p175 = scmp.eq.s32.totalorder %s23, 0
    %p176 = por %p174, %p175
    %s178 = sadd.s32 %s177, 1
    %p181 = scmp.eq.s32.totalorder %s17, 1
    %p182 = scmp.ne.s32.totalorder %s177, %s179
    %p183 = scmp.eq.s32.totalorder %s17, 0
    %p184 = por %p182, %p183
    %p185 = scmp.ne.s32.totalorder %s177, %s179
    %p186 = scmp.eq.s32.totalorder %s22, 1
    %p187 = por %p185, %p186
    %p188 = scmp.ne.s32.totalorder %s179, %s180
    %p189 = scmp.eq.s32.totalorder %s22, 0
    %p190 = por %p188, %p189
    %p191 = scmp.ne.s32.totalorder %s179, %s180
    %p192 = scmp.eq.s32.totalorder %s23, 1
    %p193 = por %p191, %p192
    %p195 = scmp.ne.s32.totalorder %s180, %s194
    %p196 = scmp.eq.s32.totalorder %s23, 0
    %p197 = por %p195, %p196
    %s199 = sadd.s32 %s198, 1
    %p202 = scmp.eq.s32.totalorder %s17, 1
    %p203 = scmp.ne.s32.totalorder %s198, %s200
    %p204 = scmp.eq.s32.totalorder %s17, 0
    %p205 = por %p203, %p204
    %p206 = scmp.ne.s32.totalorder %s198, %s200
    %p207 = scmp.eq.s32.totalorder %s22, 1
    %p208 = por %p206, %p207
    %p209 = scmp.ne.s32.totalorder %s200, %s201
    %p210 = scmp.eq.s32.totalorder %s22, 0
    %p211 = por %p209, %p210
    %p212 = scmp.ne.s32.totalorder %s200, %s201
    %p213 = scmp.eq.s32.totalorder %s23, 1
    %p214 = por %p212, %p213
    %p216 = scmp.ne.s32.totalorder %s201, %s215
    %p217 = scmp.eq.s32.totalorder %s23, 0
    %p218 = por %p216, %p217
    %s220 = sadd.s32 %s219, 1
    %p223 = scmp.eq.s32.totalorder %s17, 1
    %p224 = scmp.ne.s32.totalorder %s219, %s221
    %p225 = scmp.eq.s32.totalorder %s17, 0
    %p226 = por %p224, %p225
    %p227 = scmp.ne.s32.totalorder %s219, %s221
    %p228 = scmp.eq.s32.totalorder %s22, 1
    %p229 = por %p227, %p228
    %p230 = scmp.ne.s32.totalorder %s221, %s222
    %p231 = scmp.eq.s32.totalorder %s22, 0
    %p232 = por %p230, %p231
    %p233 = scmp.ne.s32.totalorder %s221, %s222
    %p234 = scmp.eq.s32.totalorder %s23, 1
    %p235 = por %p233, %p234
    %p237 = scmp.ne.s32.totalorder %s222, %s236
    %p238 = scmp.eq.s32.totalorder %s23, 0
    %p239 = por %p237, %p238
    %s241 = sadd.s32 %s240, 1
    %p244 = scmp.eq.s32.totalorder %s17, 1
    %p245 = scmp.ne.s32.totalorder %s240, %s242
    %p246 = scmp.eq.s32.totalorder %s17, 0
    %p247 = por %p245, %p246
    %p248 = scmp.ne.s32.totalorder %s240, %s242
    %p249 = scmp.eq.s32.totalorder %s22, 1
    %p250 = por %p248, %p249
    %p251 = scmp.ne.s32.totalorder %s242, %s243
    %p252 = scmp.eq.s32.totalorder %s22, 0
    %p253 = por %p251, %p252
    %p254 = scmp.ne.s32.totalorder %s242, %s243
    %p255 = scmp.eq.s32.totalorder %s23, 1
    %p256 = por %p254, %p255
    %p258 = scmp.ne.s32.totalorder %s243, %s257
    %p259 = scmp.eq.s32.totalorder %s23, 0
    %p260 = por %p258, %p259
    %s261 = ssub.s32 %s17, %s24
    %p262 = scmp.eq.s32.totalorder %s261, 0
    %s264 = sadd.s32 %s263, 1
    %s265 = scalar_select %p262, %s263, %s264
    %p268 = pneg %p262
    %p269 = scmp.eq.s32.totalorder %s17, 1
    %p270 = por %p268, %p269
    %p271 = scmp.ne.s32.totalorder %s263, %s266
    %p272 = scmp.eq.s32.totalorder %s17, 0
    %p273 = por %p271, %p272
    %p274 = scmp.ne.s32.totalorder %s263, %s266
    %p275 = scmp.eq.s32.totalorder %s22, 1
    %p276 = por %p274, %p275
    %p277 = scmp.ne.s32.totalorder %s266, %s267
    %p278 = scmp.eq.s32.totalorder %s22, 0
    %p279 = por %p277, %p278
    %p280 = scmp.ne.s32.totalorder %s266, %s267
    %p281 = scmp.eq.s32.totalorder %s23, 1
    %p282 = por %p280, %p281
    %p284 = scmp.ne.s32.totalorder %s267, %s283
    %p285 = scmp.eq.s32.totalorder %s23, 0
    %p286 = por %p284, %p285
    %p287 = scmp.le.s32.totalorder 1, %s17
    %p288 = scmp.lt.s32.totalorder %s17, 3
    %p289 = pnand %p287, %p288
    %p290 = pneg %p289
    // Predicated region
    $region9: #{mbconv2d_forward.1} parent=5 // pred_check
      _
    $region10: #{mbconv2d_forward.1} parent=5 // pred_check_branch
      %292 = sbr.rel (%p289) target = $region12
    $region11: #{mbconv2d_forward.1} parent=5 // pred_region
      %s293 = ssub.s32 %s17, 1
      // Predicated region
      $region13: #{mbconv2d_forward.1} parent=11 // pred_check
        %p294 = pneg %p64
      $region14: #{mbconv2d_forward.1} parent=11 // pred_check_branch
        %296 = sbr.rel (%p294) target = $region16
      $region15: #{mbconv2d_forward.1} parent=11 // pred_region
        _
      $region16: #{mbconv2d_forward.1} parent=11 // pred_fallthru
        _
      // Predicated region
      $region17: #{mbconv2d_forward.1} parent=11 // pred_check
        %p297 = pneg %p85
      $region18: #{mbconv2d_forward.1} parent=11 // pred_check_branch
        %299 = sbr.rel (%p297) target = $region20
      $region19: #{mbconv2d_forward.1} parent=11 // pred_region
        _
      $region20: #{mbconv2d_forward.1} parent=11 // pred_fallthru
        _
      // Predicated region
      $region21: #{mbconv2d_forward.1} parent=11 // pred_check
        %p300 = pneg %p106
      $region22: #{mbconv2d_forward.1} parent=11 // pred_check_branch
        %302 = sbr.rel (%p300) target = $region24
      $region23: #{mbconv2d_forward.1} parent=11 // pred_region
        _
      $region24: #{mbconv2d_forward.1} parent=11 // pred_fallthru
        _
      // Predicated region
      $region25: #{mbconv2d_forward.1} parent=11 // pred_check
        %p303 = pneg %p127
      $region26: #{mbconv2d_forward.1} parent=11 // pred_check_branch
        %305 = sbr.rel (%p303) target = $region28
      $region27: #{mbconv2d_forward.1} parent=11 // pred_region
        _
      $region28: #{mbconv2d_forward.1} parent=11 // pred_fallthru
        _
      // Predicated region
      $region29: #{mbconv2d_forward.1} parent=11 // pred_check
        %p306 = pneg %p148
      $region30: #{mbconv2d_forward.1} parent=11 // pred_check_branch
        %308 = sbr.rel (%p306) target = $region32
      $region31: #{mbconv2d_forward.1} parent=11 // pred_region
        _
      $region32: #{mbconv2d_forward.1} parent=11 // pred_fallthru
        _
      // Predicated region
      $region33: #{mbconv2d_forward.1} parent=11 // pred_check
        %p309 = pneg %p169
      $region34: #{mbconv2d_forward.1} parent=11 // pred_check_branch
        %311 = sbr.rel (%p309) target = $region36
      $region35: #{mbconv2d_forward.1} parent=11 // pred_region
        _
      $region36: #{mbconv2d_forward.1} parent=11 // pred_fallthru
        _
      // Predicated region
      $region37: #{mbconv2d_forward.1} parent=11 // pred_check
        %p312 = pneg %p190
      $region38: #{mbconv2d_forward.1} parent=11 // pred_check_branch
        %314 = sbr.rel (%p312) target = $region40
      $region39: #{mbconv2d_forward.1} parent=11 // pred_region
        _
      $region40: #{mbconv2d_forward.1} parent=11 // pred_fallthru
        _
      // Predicated region
      $region41: #{mbconv2d_forward.1} parent=11 // pred_check
        %p315 = pneg %p211
      $region42: #{mbconv2d_forward.1} parent=11 // pred_check_branch
        %317 = sbr.rel (%p315) target = $region44
      $region43: #{mbconv2d_forward.1} parent=11 // pred_region
        _
      $region44: #{mbconv2d_forward.1} parent=11 // pred_fallthru
        _
      // Predicated region
      $region45: #{mbconv2d_forward.1} parent=11 // pred_check
        %p318 = pneg %p232
      $region46: #{mbconv2d_forward.1} parent=11 // pred_check_branch
        %320 = sbr.rel (%p318) target = $region48
      $region47: #{mbconv2d_forward.1} parent=11 // pred_region
        _
      $region48: #{mbconv2d_forward.1} parent=11 // pred_fallthru
        _
      // Predicated region
      $region49: #{mbconv2d_forward.1} parent=11 // pred_check
        %p321 = pneg %p253
      $region50: #{mbconv2d_forward.1} parent=11 // pred_check_branch
        %323 = sbr.rel (%p321) target = $region52
      $region51: #{mbconv2d_forward.1} parent=11 // pred_region
        _
      $region52: #{mbconv2d_forward.1} parent=11 // pred_fallthru
        _
    $region12: #{mbconv2d_forward.1} parent=5 // pred_fallthru
      _
    %p324 = scmp.lt.s32.totalorder %s17, 2
    // Predicated region
    $region53: #{mbconv2d_forward.1} parent=5 // pred_check
      %p325 = pneg %p324
    $region54: #{mbconv2d_forward.1} parent=5 // pred_check_branch
      %327 = sbr.rel (%p325) target = $region56
    $region55: #{mbconv2d_forward.1} parent=5 // pred_region
      // Predicated region
      $region57: #{mbconv2d_forward.1} parent=55 // pred_check
        %p328 = pneg %p37
      $region58: #{mbconv2d_forward.1} parent=55 // pred_check_branch
        %330 = sbr.rel (%p328) target = $region60
      $region59: #{mbconv2d_forward.1} parent=55 // pred_region
        %p331 = scmp.lt.s32.totalorder %s17, 1
        %s332 = scalar_select %p331, %s17, 1
        %s333 = smul.addr %s332, 32
        %s334 = smul.addr %s333, 8
        %s335 = scalar_lea.vmem %s0, %s334
      $region60: #{mbconv2d_forward.1} parent=55 // pred_fallthru
        _
    $region56: #{mbconv2d_forward.1} parent=5 // pred_fallthru
      _
    %p336 = scmp.le.s32.totalorder 1, %s17
    %p337 = scmp.lt.s32.totalorder %s17, 3
    %p338 = pnand %p336, %p337
    %p339 = pneg %p338
    // Predicated region
    $region61: #{mbconv2d_forward.1} parent=5 // pred_check
      _
    $region62: #{mbconv2d_forward.1} parent=5 // pred_check_branch
      %341 = sbr.rel (%p338) target = $region64
    $region63: #{mbconv2d_forward.1} parent=5 // pred_region
      %s342 = ssub.s32 %s17, 1
      %p343 = scmp.lt.s32.totalorder %s22, 1
      %s344 = scalar_select %p343, %s22, 1
      %s345 = smul.addr %s344, 32
      %s346 = smul.addr %s345, 8
      %s347 = scalar_lea.vmem %s0, %s346
      %p348 = pneg %p43
      %p349 = pneg %p40
      %p350 = pneg %p64
      %p351 = pneg %p61
      %p352 = pneg %p85
      %p353 = pneg %p82
      %p354 = pneg %p106
      %p355 = pneg %p103
      %p356 = pneg %p127
      %p357 = pneg %p124
      %p358 = pneg %p148
      %p359 = pneg %p145
      %p360 = pneg %p169
      %p361 = pneg %p166
      %p362 = pneg %p190
      %p363 = pneg %p187
      %p364 = pneg %p211
      %p365 = pneg %p208
      %p366 = pneg %p232
      %p367 = pneg %p229
      %p368 = pneg %p253
      %p369 = pneg %p250
      %p370 = pneg %p279
      %p371 = pneg %p276
      %p372 = scmp.lt.s32.totalorder %s22, 1
      %s373 = scalar_select %p372, %s22, 1
      %s374 = smul.addr %s373, 32
      %s375 = smul.addr %s374, 8
      %s376 = scalar_lea.vmem %s11, %s375
      %p377 = scmp.lt.s32.totalorder %s22, 1
      %s378 = scalar_select %p377, %s22, 1
      %s379 = smul.addr %s378, 32
      %s380 = smul.addr %s379, 8
      %s381 = scalar_lea.vmem %s0, %s380
      %p382 = scmp.lt.s32.totalorder %s22, 1
      %s383 = scalar_select %p382, %s22, 1
      %s384 = smul.addr %s383, 32
      %s385 = smul.addr %s384, 8
      %s386 = scalar_lea.vmem %s11, %s385
      %388 = vst [vmem:[#allocation2] sm:$0xff] 0.0
      %389 = vst [vmem:[#allocation2 + $0x8] sm:$0xff] 0.0
      %390 = vst [vmem:[#allocation2 + $0x10] sm:$0xff] 0.0
      %s391 = scalar_lea.vmem [#allocation2], 408
      %392 = vst [vmem:[%s391] sm:$0xff] 0.0
      %393 = vst [vmem:[%s391 + $0x8] sm:$0xff] 0.0
      %394 = vst [vmem:[%s391 + $0x10] sm:$0xff] 0.0
      %s395 = scalar_lea.vmem [#allocation2], 24
      %396 = vst [vmem:[%s395 + $0x10] sm:$0xff] 0.0
      %397 = vst [vmem:[%s395 + $0x28] sm:$0xff] 0.0
      %398 = vst [vmem:[%s395 + $0x40] sm:$0xff] 0.0
      %399 = vst [vmem:[%s395 + $0x58] sm:$0xff] 0.0
      %400 = vst [vmem:[%s395 + $0x70] sm:$0xff] 0.0
      %401 = vst [vmem:[%s395 + $0x88] sm:$0xff] 0.0
      %402 = vst [vmem:[%s395 + $0xa0] sm:$0xff] 0.0
      %403 = vst [vmem:[%s395 + $0xb8] sm:$0xff] 0.0
      %404 = vst [vmem:[%s395 + $0xd0] sm:$0xff] 0.0
      %405 = vst [vmem:[%s395 + $0xe8] sm:$0xff] 0.0
      %406 = vst [vmem:[%s395 + $0x100] sm:$0xff] 0.0
      %407 = vst [vmem:[%s395 + $0x118] sm:$0xff] 0.0
      %408 = vst [vmem:[%s395 + $0x130] sm:$0xff] 0.0
      %409 = vst [vmem:[%s395 + $0x148] sm:$0xff] 0.0
      %410 = vst [vmem:[%s395 + $0x160] sm:$0xff] 0.0
      %411 = vst [vmem:[%s395 + $0x178] sm:$0xff] 0.0
      %v412 = vld [vmem:[%s381] sm:$0xff]
      %v413 = vld [vmem:[%s381 + $0x8] sm:$0xff]
      %v414 = vld [vmem:[%s381 + $0x10] sm:$0xff]
      %v415 = vld [vmem:[%s381 + $0x18] sm:$0xff]
      %v416 = vld [vmem:[%s381 + $0x20] sm:$0xff]
      %v417 = vld [vmem:[%s381 + $0x28] sm:$0xff]
      %v418 = vld [vmem:[%s381 + $0x30] sm:$0xff]
      %v419 = vld [vmem:[%s381 + $0x38] sm:$0xff]
      %v420 = vld [vmem:[%s381 + $0x40] sm:$0xff]
      %v421 = vld [vmem:[%s381 + $0x48] sm:$0xff]
      %v422 = vld [vmem:[%s381 + $0x50] sm:$0xff]
      %v423 = vld [vmem:[%s381 + $0x58] sm:$0xff]
      %v424 = vld [vmem:[%s381 + $0x60] sm:$0xff]
      %v425 = vld [vmem:[%s381 + $0x68] sm:$0xff]
      %v426 = vld [vmem:[%s381 + $0x70] sm:$0xff]
      %v427 = vld [vmem:[%s381 + $0x78] sm:$0xff]
      %v428 = vld [vmem:[%s381 + $0x80] sm:$0xff]
      %v429 = vld [vmem:[%s381 + $0x88] sm:$0xff]
      %v430 = vld [vmem:[%s381 + $0x90] sm:$0xff]
      %v431 = vld [vmem:[%s381 + $0x98] sm:$0xff]
      %v432 = vld [vmem:[%s381 + $0xa0] sm:$0xff]
      %v433 = vld [vmem:[%s381 + $0xa8] sm:$0xff]
      %v434 = vld [vmem:[%s381 + $0xb0] sm:$0xff]
      %v435 = vld [vmem:[%s381 + $0xb8] sm:$0xff]
      %v436 = vld [vmem:[%s381 + $0xc0] sm:$0xff]
      %v437 = vld [vmem:[%s381 + $0xc8] sm:$0xff]
      %v438 = vld [vmem:[%s381 + $0xd0] sm:$0xff]
      %v439 = vld [vmem:[%s381 + $0xd8] sm:$0xff]
      %v440 = vld [vmem:[%s381 + $0xe0] sm:$0xff]
      %v441 = vld [vmem:[%s381 + $0xe8] sm:$0xff]
      %v442 = vld [vmem:[%s381 + $0xf0] sm:$0xff]
      %v443 = vld [vmem:[%s381 + $0xf8] sm:$0xff]
      %v444 = vpack.c.bf16 %v413, %v412
      %v445 = vpack.c.bf16 %v415, %v414
      %v446 = vpack.c.bf16 %v417, %v416
      %v447 = vpack.c.bf16 %v419, %v418
      %v448 = vpack.c.bf16 %v421, %v420
      %v449 = vpack.c.bf16 %v423, %v422
      %v450 = vpack.c.bf16 %v425, %v424
      %v451 = vpack.c.bf16 %v427, %v426
      %v452 = vpack.c.bf16 %v429, %v428
      %v453 = vpack.c.bf16 %v431, %v430
      %v454 = vpack.c.bf16 %v433, %v432
      %v455 = vpack.c.bf16 %v435, %v434
      %v456 = vpack.c.bf16 %v437, %v436
      %v457 = vpack.c.bf16 %v439, %v438
      %v458 = vpack.c.bf16 %v441, %v440
      %v459 = vpack.c.bf16 %v443, %v442
      %v460 = vld [vmem:[%s1] sm:$0x3]
      %v461 = vld [vmem:[%s2] sm:$0x1]
      %v463 = vlaneseq
      %v464 = vshrl.u32 %v463, 7
      %v465 = vsub.s32 0, %v464
      %v466 = vrot.slane %v461, %v465
      %vm468 = vcmask 31744
      %v470 = vsel %vm468, %v444, 0
      %v473 = vsel %vm468, %v445, 0
      %v476 = vsel %vm468, %v446, 0
      %v479 = vsel %vm468, %v447, 0
      %v482 = vsel %vm468, %v448, 0
      %v485 = vsel %vm468, %v449, 0
      %v488 = vsel %vm468, %v450, 0
      %v491 = vsel %vm468, %v451, 0
      %v494 = vsel %vm468, %v452, 0
      %v497 = vsel %vm468, %v453, 0
      %v500 = vsel %vm468, %v454, 0
      %v503 = vsel %vm468, %v455, 0
      %v506 = vsel %vm468, %v456, 0
      %v509 = vsel %vm468, %v457, 0
      %v512 = vsel %vm468, %v458, 0
      %v515 = vsel %vm468, %v459, 0
      %vm517 = vcmask 1041408
      %v519 = vsel %vm517, %v460, 0
      %521 = vmatprep.subr.bf16.mxu0 0
      %522 = vmatpush1.bf16.msra.mxu0 0
      %523 = vmatprep.subr.bf16.mxu0 0
      %524 = vmatpush1.bf16.msra.mxu0 0
      %525 = vmatprep.subr.bf16.mxu0 0
      %526 = vmatpush1.bf16.msra.mxu0 0
      %527 = vmatprep.subr.bf16.mxu0 0
      %528 = vmatpush1.bf16.msra.mxu0 0
      %529 = vmatprep.subr.bf16.mxu0 0
      %530 = vmatpush1.bf16.msra.mxu0 0
      %531 = vmatprep.subr.bf16.mxu0 0
      %532 = vmatpush1.bf16.msra.mxu0 0
      %533 = vmatprep.subr.bf16.mxu0 0
      %534 = vmatpush1.bf16.msra.mxu0 0
      %535 = vmatprep.subr.bf16.mxu0 0
      %536 = vmatpush1.bf16.msra.mxu0 %v519
      %537 = vmatprep.subr.bf16.mxu0 0
      %538 = vmatpush2.bf16.msra.mxu0 0
      %539 = vmatprep.subr.bf16.mxu0 0
      %540 = vmatpush2.bf16.msra.mxu0 0
      %541 = vmatprep.subr.bf16.mxu0 0
      %542 = vmatpush2.bf16.msra.mxu0 0
      %543 = vmatprep.subr.bf16.mxu0 0
      %544 = vmatpush2.bf16.msra.mxu0 0
      %545 = vmatprep.subr.bf16.mxu0 0
      %546 = vmatpush2.bf16.msra.mxu0 0
      %547 = vmatprep.subr.bf16.mxu0 0
      %548 = vmatpush2.bf16.msra.mxu0 0
      %549 = vmatprep.subr.bf16.mxu0 0
      %550 = vmatpush2.bf16.msra.mxu0 0
      %551 = vmatprep.subr.bf16.mxu0 0
      %552 = vmatpush2.bf16.msra.mxu0 0
      %553 = vmatprep.mubr.bf16.mxu0 0
      %554 = vmatmul.mubr.bf16.gmra.mxu0 %v470
      %v555 = vpop.f32.mrf.mxu0
      %v556 = vadd.f32 %v466, %v555
      %v557 = vpop.f32.mrf.mxu0
      %v558 = vpop.f32.mrf.mxu0
      %v559 = vadd.f32 %v466, %v558
      %v560 = vpop.f32.mrf.mxu0
      %561 = vmatprep.mubr.bf16.mxu0 0
      %562 = vmatmul.mubr.bf16.gmra.mxu0 %v473
      %v563 = vpop.f32.mrf.mxu0
      %v564 = vadd.f32 %v466, %v563
      %v565 = vpop.f32.mrf.mxu0
      %v566 = vpop.f32.mrf.mxu0
      %v567 = vadd.f32 %v466, %v566
      %v568 = vpop.f32.mrf.mxu0
      %569 = vmatprep.mubr.bf16.mxu0 0
      %570 = vmatmul.mubr.bf16.gmra.mxu0 %v476
      %v571 = vpop.f32.mrf.mxu0
      %v572 = vadd.f32 %v466, %v571
      %v573 = vpop.f32.mrf.mxu0
      %v574 = vpop.f32.mrf.mxu0
      %v575 = vadd.f32 %v466, %v574
      %v576 = vpop.f32.mrf.mxu0
      %577 = vmatprep.mubr.bf16.mxu0 0
      %578 = vmatmul.mubr.bf16.gmra.mxu0 %v479
      %v579 = vpop.f32.mrf.mxu0
      %v580 = vadd.f32 %v466, %v579
      %v581 = vpop.f32.mrf.mxu0
      %v582 = vpop.f32.mrf.mxu0
      %v583 = vadd.f32 %v466, %v582
      %v584 = vpop.f32.mrf.mxu0
      %585 = vmatprep.mubr.bf16.mxu0 0
      %586 = vmatmul.mubr.bf16.gmra.mxu0 %v482
      %v587 = vpop.f32.mrf.mxu0
      %v588 = vadd.f32 %v466, %v587
      %v589 = vpop.f32.mrf.mxu0
      %v590 = vpop.f32.mrf.mxu0
      %v591 = vadd.f32 %v466, %v590
      %v592 = vpop.f32.mrf.mxu0
      %593 = vmatprep.mubr.bf16.mxu0 0
      %594 = vmatmul.mubr.bf16.gmra.mxu0 %v485
      %v595 = vpop.f32.mrf.mxu0
      %v596 = vadd.f32 %v466, %v595
      %v597 = vpop.f32.mrf.mxu0
      %v598 = vpop.f32.mrf.mxu0
      %v599 = vadd.f32 %v466, %v598
      %v600 = vpop.f32.mrf.mxu0
      %601 = vmatprep.mubr.bf16.mxu0 0
      %602 = vmatmul.mubr.bf16.gmra.mxu0 %v488
      %v603 = vpop.f32.mrf.mxu0
      %v604 = vadd.f32 %v466, %v603
      %v605 = vpop.f32.mrf.mxu0
      %v606 = vpop.f32.mrf.mxu0
      %v607 = vadd.f32 %v466, %v606
      %v608 = vpop.f32.mrf.mxu0
      %609 = vmatprep.mubr.bf16.mxu0 0
      %610 = vmatmul.mubr.bf16.gmra.mxu0 %v491
      %v611 = vpop.f32.mrf.mxu0
      %v612 = vadd.f32 %v466, %v611
      %v613 = vpop.f32.mrf.mxu0
      %v614 = vpop.f32.mrf.mxu0
      %v615 = vadd.f32 %v466, %v614
      %v616 = vpop.f32.mrf.mxu0
      %617 = vmatprep.mubr.bf16.mxu0 0
      %618 = vmatmul.mubr.bf16.gmra.mxu0 %v494
      %v619 = vpop.f32.mrf.mxu0
      %v620 = vadd.f32 %v466, %v619
      %v621 = vpop.f32.mrf.mxu0
      %v622 = vpop.f32.mrf.mxu0
      %v623 = vadd.f32 %v466, %v622
      %v624 = vpop.f32.mrf.mxu0
      %625 = vmatprep.mubr.bf16.mxu0 0
      %626 = vmatmul.mubr.bf16.gmra.mxu0 %v497
      %v627 = vpop.f32.mrf.mxu0
      %v628 = vadd.f32 %v466, %v627
      %v629 = vpop.f32.mrf.mxu0
      %v630 = vpop.f32.mrf.mxu0
      %v631 = vadd.f32 %v466, %v630
      %v632 = vpop.f32.mrf.mxu0
      %633 = vmatprep.mubr.bf16.mxu0 0
      %634 = vmatmul.mubr.bf16.gmra.mxu0 %v500
      %v635 = vpop.f32.mrf.mxu0
      %v636 = vadd.f32 %v466, %v635
      %v637 = vpop.f32.mrf.mxu0
      %v638 = vpop.f32.mrf.mxu0
      %v639 = vadd.f32 %v466, %v638
      %v640 = vpop.f32.mrf.mxu0
      %641 = vmatprep.mubr.bf16.mxu0 0
      %642 = vmatmul.mubr.bf16.gmra.mxu0 %v503
      %v643 = vpop.f32.mrf.mxu0
      %v644 = vadd.f32 %v466, %v643
      %v645 = vpop.f32.mrf.mxu0
      %v646 = vpop.f32.mrf.mxu0
      %v647 = vadd.f32 %v466, %v646
      %v648 = vpop.f32.mrf.mxu0
      %649 = vmatprep.mubr.bf16.mxu0 0
      %650 = vmatmul.mubr.bf16.gmra.mxu0 %v506
      %v651 = vpop.f32.mrf.mxu0
      %v652 = vadd.f32 %v466, %v651
      %v653 = vpop.f32.mrf.mxu0
      %v654 = vpop.f32.mrf.mxu0
      %v655 = vadd.f32 %v466, %v654
      %v656 = vpop.f32.mrf.mxu0
      %657 = vmatprep.mubr.bf16.mxu0 0
      %658 = vmatmul.mubr.bf16.gmra.mxu0 %v509
      %v659 = vpop.f32.mrf.mxu0
      %v660 = vadd.f32 %v466, %v659
      %v661 = vpop.f32.mrf.mxu0
      %v662 = vpop.f32.mrf.mxu0
      %v663 = vadd.f32 %v466, %v662
      %v664 = vpop.f32.mrf.mxu0
      %665 = vmatprep.mubr.bf16.mxu0 0
      %666 = vmatmul.mubr.bf16.gmra.mxu0 %v512
      %v667 = vpop.f32.mrf.mxu0
      %v668 = vadd.f32 %v466, %v667
      %v669 = vpop.f32.mrf.mxu0
      %v670 = vpop.f32.mrf.mxu0
      %v671 = vadd.f32 %v466, %v670
      %v672 = vpop.f32.mrf.mxu0
      %673 = vmatprep.mubr.bf16.mxu0 0
      %674 = vmatmul.mubr.bf16.gmra.mxu0 %v515
      %v675 = vpop.f32.mrf.mxu0
      %v676 = vadd.f32 %v466, %v675
      %v677 = vpop.f32.mrf.mxu0
      %v678 = vpop.f32.mrf.mxu0
      %v679 = vadd.f32 %v466, %v678
      %v680 = vpop.f32.mrf.mxu0
      %681 = vdwg.mxu0
      %v682 = vmax.f32 %v556, 0.0
      %v683 = vmax.f32 %v559, 0.0
      %v684 = vmax.f32 %v564, 0.0
      %v685 = vmax.f32 %v567, 0.0
      %v686 = vmax.f32 %v572, 0.0
      %v687 = vmax.f32 %v575, 0.0
      %v688 = vmax.f32 %v580, 0.0
      %v689 = vmax.f32 %v583, 0.0
      %v690 = vmax.f32 %v588, 0.0
      %v691 = vmax.f32 %v591, 0.0
      %v692 = vmax.f32 %v596, 0.0
      %v693 = vmax.f32 %v599, 0.0
      %v694 = vmax.f32 %v604, 0.0
      %v695 = vmax.f32 %v607, 0.0
      %v696 = vmax.f32 %v612, 0.0
      %v697 = vmax.f32 %v615, 0.0
      %v698 = vmax.f32 %v620, 0.0
      %v699 = vmax.f32 %v623, 0.0
      %v700 = vmax.f32 %v628, 0.0
      %v701 = vmax.f32 %v631, 0.0
      %v702 = vmax.f32 %v636, 0.0
      %v703 = vmax.f32 %v639, 0.0
      %v704 = vmax.f32 %v644, 0.0
      %v705 = vmax.f32 %v647, 0.0
      %v706 = vmax.f32 %v652, 0.0
      %v707 = vmax.f32 %v655, 0.0
      %v708 = vmax.f32 %v660, 0.0
      %v709 = vmax.f32 %v663, 0.0
      %v710 = vmax.f32 %v668, 0.0
      %v711 = vmax.f32 %v671, 0.0
      %v712 = vmax.f32 %v676, 0.0
      %v713 = vmax.f32 %v679, 0.0
      %714 = vst [vmem:[%s395] sm:$0xff] %v682
      %715 = vst [vmem:[%s395 + $0x8] sm:$0xff] %v683
      %716 = vst [vmem:[%s395 + $0x18] sm:$0xff] %v684
      %717 = vst [vmem:[%s395 + $0x20] sm:$0xff] %v685
      %718 = vst [vmem:[%s395 + $0x30] sm:$0xff] %v686
      %719 = vst [vmem:[%s395 + $0x38] sm:$0xff] %v687
      %720 = vst [vmem:[%s395 + $0x48] sm:$0xff] %v688
      %721 = vst [vmem:[%s395 + $0x50] sm:$0xff] %v689
      %722 = vst [vmem:[%s395 + $0x60] sm:$0xff] %v690
      %723 = vst [vmem:[%s395 + $0x68] sm:$0xff] %v691
      %724 = vst [vmem:[%s395 + $0x78] sm:$0xff] %v692
      %725 = vst [vmem:[%s395 + $0x80] sm:$0xff] %v693
      %726 = vst [vmem:[%s395 + $0x90] sm:$0xff] %v694
      %727 = vst [vmem:[%s395 + $0x98] sm:$0xff] %v695
      %728 = vst [vmem:[%s395 + $0xa8] sm:$0xff] %v696
      %729 = vst [vmem:[%s395 + $0xb0] sm:$0xff] %v697
      %730 = vst [vmem:[%s395 + $0xc0] sm:$0xff] %v698
      %731 = vst [vmem:[%s395 + $0xc8] sm:$0xff] %v699
      %732 = vst [vmem:[%s395 + $0xd8] sm:$0xff] %v700
      %733 = vst [vmem:[%s395 + $0xe0] sm:$0xff] %v701
      %734 = vst [vmem:[%s395 + $0xf0] sm:$0xff] %v702
      %735 = vst [vmem:[%s395 + $0xf8] sm:$0xff] %v703
      %736 = vst [vmem:[%s395 + $0x108] sm:$0xff] %v704
      %737 = vst [vmem:[%s395 + $0x110] sm:$0xff] %v705
      %738 = vst [vmem:[%s395 + $0x120] sm:$0xff] %v706
      %739 = vst [vmem:[%s395 + $0x128] sm:$0xff] %v707
      %740 = vst [vmem:[%s395 + $0x138] sm:$0xff] %v708
      %741 = vst [vmem:[%s395 + $0x140] sm:$0xff] %v709
      %742 = vst [vmem:[%s395 + $0x150] sm:$0xff] %v710
      %743 = vst [vmem:[%s395 + $0x158] sm:$0xff] %v711
      %744 = vst [vmem:[%s395 + $0x168] sm:$0xff] %v712
      %745 = vst [vmem:[%s395 + $0x170] sm:$0xff] %v713
      %v746 = vld [vmem:[%s3] sm:$0x1]
      %v747 = vld [vmem:[%s3 + $0x1] sm:$0x1]
      %v748 = vld [vmem:[%s3 + $0x2] sm:$0x1]
      %v749 = vld [vmem:[%s3 + $0x3] sm:$0x1]
      %v750 = vld [vmem:[%s3 + $0x4] sm:$0x1]
      %v751 = vld [vmem:[%s3 + $0x5] sm:$0x1]
      %v752 = vld [vmem:[%s3 + $0x6] sm:$0x1]
      %v753 = vld [vmem:[%s3 + $0x7] sm:$0x1]
      %v754 = vld [vmem:[%s3 + $0x8] sm:$0x1]
      %v755 = vld [vmem:[%s4] sm:$0x1]
      %v756 = vld [vmem:[#allocation2] sm:$0xff]
      %v757 = vld [vmem:[#allocation2 + $0x8] sm:$0xff]
      %v758 = vld [vmem:[#allocation2 + $0x10] sm:$0xff]
      %v759 = vld [vmem:[#allocation2 + $0x18] sm:$0xff]
      %v760 = vld [vmem:[#allocation2 + $0x20] sm:$0xff]
      %v761 = vld [vmem:[#allocation2 + $0x28] sm:$0xff]
      %v762 = vld [vmem:[#allocation2 + $0x30] sm:$0xff]
      %v763 = vld [vmem:[#allocation2 + $0x38] sm:$0xff]
      %v764 = vld [vmem:[#allocation2 + $0x40] sm:$0xff]
      %v765 = vld [vmem:[#allocation2 + $0x48] sm:$0xff]
      %v766 = vld [vmem:[#allocation2 + $0x50] sm:$0xff]
      %v767 = vld [vmem:[#allocation2 + $0x58] sm:$0xff]
      %v768 = vld [vmem:[#allocation2 + $0x60] sm:$0xff]
      %v769 = vld [vmem:[#allocation2 + $0x68] sm:$0xff]
      %v770 = vld [vmem:[#allocation2 + $0x70] sm:$0xff]
      %v771 = vld [vmem:[#allocation2 + $0x78] sm:$0xff]
      %v772 = vld [vmem:[#allocation2 + $0x80] sm:$0xff]
      %v773 = vld [vmem:[#allocation2 + $0x88] sm:$0xff]
      %v774 = vld [vmem:[#allocation2 + $0x90] sm:$0xff]
      %v775 = vld [vmem:[#allocation2 + $0x98] sm:$0xff]
      %v776 = vld [vmem:[#allocation2 + $0xa0] sm:$0xff]
      %v777 = vld [vmem:[#allocation2 + $0xa8] sm:$0xff]
      %v778 = vld [vmem:[#allocation2 + $0xb0] sm:$0xff]
      %v779 = vld [vmem:[#allocation2 + $0xb8] sm:$0xff]
      %v780 = vld [vmem:[#allocation2 + $0xc0] sm:$0xff]
      %v781 = vld [vmem:[#allocation2 + $0xc8] sm:$0xff]
      %v782 = vld [vmem:[#allocation2 + $0xd0] sm:$0xff]
      %v783 = vld [vmem:[#allocation2 + $0xd8] sm:$0xff]
      %v784 = vld [vmem:[#allocation2 + $0xe0] sm:$0xff]
      %v785 = vld [vmem:[#allocation2 + $0xe8] sm:$0xff]
      %v786 = vld [vmem:[#allocation2 + $0xf0] sm:$0xff]
      %v787 = vld [vmem:[#allocation2 + $0xf8] sm:$0xff]
      %v788 = vld [vmem:[#allocation2 + $0x100] sm:$0xff]
      %v789 = vld [vmem:[#allocation2 + $0x108] sm:$0xff]
      %v790 = vld [vmem:[#allocation2 + $0x110] sm:$0xff]
      %v791 = vld [vmem:[#allocation2 + $0x118] sm:$0xff]
      %v792 = vld [vmem:[#allocation2 + $0x120] sm:$0xff]
      %v793 = vld [vmem:[#allocation2 + $0x128] sm:$0xff]
      %v794 = vld [vmem:[#allocation2 + $0x130] sm:$0xff]
      %v795 = vld [vmem:[#allocation2 + $0x138] sm:$0xff]
      %v796 = vld [vmem:[#allocation2 + $0x140] sm:$0xff]
      %v797 = vld [vmem:[#allocation2 + $0x148] sm:$0xff]
      %v798 = vld [vmem:[#allocation2 + $0x150] sm:$0xff]
      %v799 = vld [vmem:[#allocation2 + $0x158] sm:$0xff]
      %v800 = vld [vmem:[#allocation2 + $0x160] sm:$0xff]
      %v801 = vld [vmem:[#allocation2 + $0x168] sm:$0xff]
      %v802 = vld [vmem:[#allocation2 + $0x170] sm:$0xff]
      %v803 = vld [vmem:[#allocation2 + $0x178] sm:$0xff]
      %v804 = vrot.slane %v756, 7
      %v805 = vrot.slane %v757, 7
      %v806 = vrot.slane %v758, 7
      %v807 = vrot.slane %v759, 7
      %v808 = vrot.slane %v760, 7
      %v809 = vrot.slane %v761, 7
      %v810 = vrot.slane %v762, 7
      %v811 = vrot.slane %v763, 7
      %v812 = vrot.slane %v764, 7
      %v813 = vrot.slane %v765, 7
      %v814 = vrot.slane %v766, 7
      %v815 = vrot.slane %v767, 7
      %v816 = vrot.slane %v768, 7
      %v817 = vrot.slane %v769, 7
      %v818 = vrot.slane %v770, 7
      %v819 = vrot.slane %v771, 7
      %v820 = vrot.slane %v772, 7
      %v821 = vrot.slane %v773, 7
      %v822 = vrot.slane %v774, 7
      %v823 = vrot.slane %v775, 7
      %v824 = vrot.slane %v776, 7
      %v825 = vrot.slane %v777, 7
      %v826 = vrot.slane %v778, 7
      %v827 = vrot.slane %v779, 7
      %v828 = vrot.slane %v780, 7
      %v829 = vrot.slane %v781, 7
      %v830 = vrot.slane %v782, 7
      %v831 = vrot.slane %v783, 7
      %v832 = vrot.slane %v784, 7
      %v833 = vrot.slane %v785, 7
      %v834 = vrot.slane %v786, 7
      %v835 = vrot.slane %v787, 7
      %v836 = vrot.slane %v788, 7
      %v837 = vrot.slane %v789, 7
      %v838 = vrot.slane %v790, 7
      %v839 = vrot.slane %v791, 7
      %v840 = vrot.slane %v792, 7
      %v841 = vrot.slane %v793, 7
      %v842 = vrot.slane %v794, 7
      %v843 = vrot.slane %v795, 7
      %v844 = vrot.slane %v796, 7
      %v845 = vrot.slane %v797, 7
      %v846 = vrot.slane %v798, 7
      %v847 = vrot.slane %v799, 7
      %v848 = vrot.slane %v800, 7
      %v849 = vrot.slane %v801, 7
      %v850 = vrot.slane %v802, 7
      %v851 = vrot.slane %v803, 7
      %v852 = vlaneseq
      %v853 = vshrl.u32 %v852, 7
      %vm854 = vcmp.lt.s32.totalorder %v853, 1
      %v855 = vsel %vm854, %v850, %v851
      %v856 = vsel %vm854, %v849, %v850
      %v857 = vsel %vm854, %v848, %v849
      %v858 = vsel %vm854, %v847, %v848
      %v859 = vsel %vm854, %v846, %v847
      %v860 = vsel %vm854, %v845, %v846
      %v861 = vsel %vm854, %v844, %v845
      %v862 = vsel %vm854, %v843, %v844
      %v863 = vsel %vm854, %v842, %v843
      %v864 = vsel %vm854, %v841, %v842
      %v865 = vsel %vm854, %v840, %v841
      %v866 = vsel %vm854, %v839, %v840
      %v867 = vsel %vm854, %v838, %v839
      %v868 = vsel %vm854, %v837, %v838
      %v869 = vsel %vm854, %v836, %v837
      %v870 = vsel %vm854, %v835, %v836
      %v871 = vsel %vm854, %v834, %v835
      %v872 = vsel %vm854, %v833, %v834
      %v873 = vsel %vm854, %v832, %v833
      %v874 = vsel %vm854, %v831, %v832
      %v875 = vsel %vm854, %v830, %v831
      %v876 = vsel %vm854, %v829, %v830
      %v877 = vsel %vm854, %v828, %v829
      %v878 = vsel %vm854, %v827, %v828
      %v879 = vsel %vm854, %v826, %v827
      %v880 = vsel %vm854, %v825, %v826
      %v881 = vsel %vm854, %v824, %v825
      %v882 = vsel %vm854, %v823, %v824
      %v883 = vsel %vm854, %v822, %v823
      %v884 = vsel %vm854, %v821, %v822
      %v885 = vsel %vm854, %v820, %v821
      %v886 = vsel %vm854, %v819, %v820
      %v887 = vsel %vm854, %v818, %v819
      %v888 = vsel %vm854, %v817, %v818
      %v889 = vsel %vm854, %v816, %v817
      %v890 = vsel %vm854, %v815, %v816
      %v891 = vsel %vm854, %v814, %v815
      %v892 = vsel %vm854, %v813, %v814
      %v893 = vsel %vm854, %v812, %v813
      %v894 = vsel %vm854, %v811, %v812
      %v895 = vsel %vm854, %v810, %v811
      %v896 = vsel %vm854, %v809, %v810
      %v897 = vsel %vm854, %v808, %v809
      %v898 = vsel %vm854, %v807, %v808
      %v899 = vsel %vm854, %v806, %v807
      %v900 = vsel %vm854, %v805, %v806
      %v901 = vsel %vm854, %v804, %v805
      %v902 = vsel %vm854, %v851, %v804
      %v904 = vlaneseq
      %v905 = vshrl.u32 %v904, 7
      %v906 = vsub.s32 0, %v905
      %v907 = vrot.slane %v746, %v906
      %v909 = vmul.f32 %v902, %v907
      %v910 = vmul.f32 %v901, %v907
      %v911 = vmul.f32 %v900, %v907
      %v912 = vmul.f32 %v899, %v907
      %v913 = vmul.f32 %v898, %v907
      %v914 = vmul.f32 %v897, %v907
      %v915 = vmul.f32 %v896, %v907
      %v916 = vmul.f32 %v895, %v907
      %v917 = vmul.f32 %v894, %v907
      %v918 = vmul.f32 %v893, %v907
      %v919 = vmul.f32 %v892, %v907
      %v920 = vmul.f32 %v891, %v907
      %v921 = vmul.f32 %v890, %v907
      %v922 = vmul.f32 %v889, %v907
      %v923 = vmul.f32 %v888, %v907
      %v924 = vmul.f32 %v887, %v907
      %v925 = vmul.f32 %v886, %v907
      %v926 = vmul.f32 %v885, %v907
      %v927 = vmul.f32 %v884, %v907
      %v928 = vmul.f32 %v883, %v907
      %v929 = vmul.f32 %v882, %v907
      %v930 = vmul.f32 %v881, %v907
      %v931 = vmul.f32 %v880, %v907
      %v932 = vmul.f32 %v879, %v907
      %v933 = vmul.f32 %v878, %v907
      %v934 = vmul.f32 %v877, %v907
      %v935 = vmul.f32 %v876, %v907
      %v936 = vmul.f32 %v875, %v907
      %v937 = vmul.f32 %v874, %v907
      %v938 = vmul.f32 %v873, %v907
      %v939 = vmul.f32 %v872, %v907
      %v940 = vmul.f32 %v871, %v907
      %v941 = vmul.f32 %v870, %v907
      %v942 = vmul.f32 %v869, %v907
      %v943 = vmul.f32 %v868, %v907
      %v944 = vmul.f32 %v867, %v907
      %v945 = vmul.f32 %v866, %v907
      %v946 = vmul.f32 %v865, %v907
      %v947 = vmul.f32 %v864, %v907
      %v948 = vmul.f32 %v863, %v907
      %v949 = vmul.f32 %v862, %v907
      %v950 = vmul.f32 %v861, %v907
      %v951 = vmul.f32 %v860, %v907
      %v952 = vmul.f32 %v859, %v907
      %v953 = vmul.f32 %v858, %v907
      %v954 = vmul.f32 %v857, %v907
      %v955 = vmul.f32 %v856, %v907
      %v956 = vmul.f32 %v855, %v907
      %v957 = vadd.f32 %v909, 0.0
      %v958 = vadd.f32 %v910, 0.0
      %v959 = vadd.f32 %v911, 0.0
      %v960 = vadd.f32 %v912, 0.0
      %v961 = vadd.f32 %v913, 0.0
      %v962 = vadd.f32 %v914, 0.0
      %v963 = vadd.f32 %v915, 0.0
      %v964 = vadd.f32 %v916, 0.0
      %v965 = vadd.f32 %v917, 0.0
      %v966 = vadd.f32 %v918, 0.0
      %v967 = vadd.f32 %v919, 0.0
      %v968 = vadd.f32 %v920, 0.0
      %v969 = vadd.f32 %v921, 0.0
      %v970 = vadd.f32 %v922, 0.0
      %v971 = vadd.f32 %v923, 0.0
      %v972 = vadd.f32 %v924, 0.0
      %v973 = vadd.f32 %v925, 0.0
      %v974 = vadd.f32 %v926, 0.0
      %v975 = vadd.f32 %v927, 0.0
      %v976 = vadd.f32 %v928, 0.0
      %v977 = vadd.f32 %v929, 0.0
      %v978 = vadd.f32 %v930, 0.0
      %v979 = vadd.f32 %v931, 0.0
      %v980 = vadd.f32 %v932, 0.0
      %v981 = vadd.f32 %v933, 0.0
      %v982 = vadd.f32 %v934, 0.0
      %v983 = vadd.f32 %v935, 0.0
      %v984 = vadd.f32 %v936, 0.0
      %v985 = vadd.f32 %v937, 0.0
      %v986 = vadd.f32 %v938, 0.0
      %v987 = vadd.f32 %v939, 0.0
      %v988 = vadd.f32 %v940, 0.0
      %v989 = vadd.f32 %v941, 0.0
      %v990 = vadd.f32 %v942, 0.0
      %v991 = vadd.f32 %v943, 0.0
      %v992 = vadd.f32 %v944, 0.0
      %v993 = vadd.f32 %v945, 0.0
      %v994 = vadd.f32 %v946, 0.0
      %v995 = vadd.f32 %v947, 0.0
      %v996 = vadd.f32 %v948, 0.0
      %v997 = vadd.f32 %v949, 0.0
      %v998 = vadd.f32 %v950, 0.0
      %v999 = vadd.f32 %v951, 0.0
      %v1000 = vadd.f32 %v952, 0.0
      %v1001 = vadd.f32 %v953, 0.0
      %v1002 = vadd.f32 %v954, 0.0
      %v1003 = vadd.f32 %v955, 0.0
      %v1004 = vadd.f32 %v956, 0.0
      %v1006 = vlaneseq
      %v1007 = vshrl.u32 %v1006, 7
      %v1008 = vsub.s32 0, %v1007
      %v1009 = vrot.slane %v747, %v1008
      %v1011 = vmul.f32 %v756, %v1009
      %v1012 = vmul.f32 %v757, %v1009
      %v1013 = vmul.f32 %v758, %v1009
      %v1014 = vmul.f32 %v759, %v1009
      %v1015 = vmul.f32 %v760, %v1009
      %v1016 = vmul.f32 %v761, %v1009
      %v1017 = vmul.f32 %v762, %v1009
      %v1018 = vmul.f32 %v763, %v1009
      %v1019 = vmul.f32 %v764, %v1009
      %v1020 = vmul.f32 %v765, %v1009
      %v1021 = vmul.f32 %v766, %v1009
      %v1022 = vmul.f32 %v767, %v1009
      %v1023 = vmul.f32 %v768, %v1009
      %v1024 = vmul.f32 %v769, %v1009
      %v1025 = vmul.f32 %v770, %v1009
      %v1026 = vmul.f32 %v771, %v1009
      %v1027 = vmul.f32 %v772, %v1009
      %v1028 = vmul.f32 %v773, %v1009
      %v1029 = vmul.f32 %v774, %v1009
      %v1030 = vmul.f32 %v775, %v1009
      %v1031 = vmul.f32 %v776, %v1009
      %v1032 = vmul.f32 %v777, %v1009
      %v1033 = vmul.f32 %v778, %v1009
      %v1034 = vmul.f32 %v779, %v1009
      %v1035 = vmul.f32 %v780, %v1009
      %v1036 = vmul.f32 %v781, %v1009
      %v1037 = vmul.f32 %v782, %v1009
      %v1038 = vmul.f32 %v783, %v1009
      %v1039 = vmul.f32 %v784, %v1009
      %v1040 = vmul.f32 %v785, %v1009
      %v1041 = vmul.f32 %v786, %v1009
      %v1042 = vmul.f32 %v787, %v1009
      %v1043 = vmul.f32 %v788, %v1009
      %v1044 = vmul.f32 %v789, %v1009
      %v1045 = vmul.f32 %v790, %v1009
      %v1046 = vmul.f32 %v791, %v1009
      %v1047 = vmul.f32 %v792, %v1009
      %v1048 = vmul.f32 %v793, %v1009
      %v1049 = vmul.f32 %v794, %v1009
      %v1050 = vmul.f32 %v795, %v1009
      %v1051 = vmul.f32 %v796, %v1009
      %v1052 = vmul.f32 %v797, %v1009
      %v1053 = vmul.f32 %v798, %v1009
      %v1054 = vmul.f32 %v799, %v1009
      %v1055 = vmul.f32 %v800, %v1009
      %v1056 = vmul.f32 %v801, %v1009
      %v1057 = vmul.f32 %v802, %v1009
      %v1058 = vmul.f32 %v803, %v1009
      %v1059 = vadd.f32 %v957, %v1011
      %v1060 = vadd.f32 %v958, %v1012
      %v1061 = vadd.f32 %v959, %v1013
      %v1062 = vadd.f32 %v960, %v1014
      %v1063 = vadd.f32 %v961, %v1015
      %v1064 = vadd.f32 %v962, %v1016
      %v1065 = vadd.f32 %v963, %v1017
      %v1066 = vadd.f32 %v964, %v1018
      %v1067 = vadd.f32 %v965, %v1019
      %v1068 = vadd.f32 %v966, %v1020
      %v1069 = vadd.f32 %v967, %v1021
      %v1070 = vadd.f32 %v968, %v1022
      %v1071 = vadd.f32 %v969, %v1023
      %v1072 = vadd.f32 %v970, %v1024
      %v1073 = vadd.f32 %v971, %v1025
      %v1074 = vadd.f32 %v972, %v1026
      %v1075 = vadd.f32 %v973, %v1027
      %v1076 = vadd.f32 %v974, %v1028
      %v1077 = vadd.f32 %v975, %v1029
      %v1078 = vadd.f32 %v976, %v1030
      %v1079 = vadd.f32 %v977, %v1031
      %v1080 = vadd.f32 %v978, %v1032
      %v1081 = vadd.f32 %v979, %v1033
      %v1082 = vadd.f32 %v980, %v1034
      %v1083 = vadd.f32 %v981, %v1035
      %v1084 = vadd.f32 %v982, %v1036
      %v1085 = vadd.f32 %v983, %v1037
      %v1086 = vadd.f32 %v984, %v1038
      %v1087 = vadd.f32 %v985, %v1039
      %v1088 = vadd.f32 %v986, %v1040
      %v1089 = vadd.f32 %v987, %v1041
      %v1090 = vadd.f32 %v988, %v1042
      %v1091 = vadd.f32 %v989, %v1043
      %v1092 = vadd.f32 %v990, %v1044
      %v1093 = vadd.f32 %v991, %v1045
      %v1094 = vadd.f32 %v992, %v1046
      %v1095 = vadd.f32 %v993, %v1047
      %v1096 = vadd.f32 %v994, %v1048
      %v1097 = vadd.f32 %v995, %v1049
      %v1098 = vadd.f32 %v996, %v1050
      %v1099 = vadd.f32 %v997, %v1051
      %v1100 = vadd.f32 %v998, %v1052
      %v1101 = vadd.f32 %v999, %v1053
      %v1102 = vadd.f32 %v1000, %v1054
      %v1103 = vadd.f32 %v1001, %v1055
      %v1104 = vadd.f32 %v1002, %v1056
      %v1105 = vadd.f32 %v1003, %v1057
      %v1106 = vadd.f32 %v1004, %v1058
      %v1107 = vrot.slane %v756, 1
      %v1108 = vrot.slane %v757, 1
      %v1109 = vrot.slane %v758, 1
      %v1110 = vrot.slane %v759, 1
      %v1111 = vrot.slane %v760, 1
      %v1112 = vrot.slane %v761, 1
      %v1113 = vrot.slane %v762, 1
      %v1114 = vrot.slane %v763, 1
      %v1115 = vrot.slane %v764, 1
      %v1116 = vrot.slane %v765, 1
      %v1117 = vrot.slane %v766, 1
      %v1118 = vrot.slane %v767, 1
      %v1119 = vrot.slane %v768, 1
      %v1120 = vrot.slane %v769, 1
      %v1121 = vrot.slane %v770, 1
      %v1122 = vrot.slane %v771, 1
      %v1123 = vrot.slane %v772, 1
      %v1124 = vrot.slane %v773, 1
      %v1125 = vrot.slane %v774, 1
      %v1126 = vrot.slane %v775, 1
      %v1127 = vrot.slane %v776, 1
      %v1128 = vrot.slane %v777, 1
      %v1129 = vrot.slane %v778, 1
      %v1130 = vrot.slane %v779, 1
      %v1131 = vrot.slane %v780, 1
      %v1132 = vrot.slane %v781, 1
      %v1133 = vrot.slane %v782, 1
      %v1134 = vrot.slane %v783, 1
      %v1135 = vrot.slane %v784, 1
      %v1136 = vrot.slane %v785, 1
      %v1137 = vrot.slane %v786, 1
      %v1138 = vrot.slane %v787, 1
      %v1139 = vrot.slane %v788, 1
      %v1140 = vrot.slane %v789, 1
      %v1141 = vrot.slane %v790, 1
      %v1142 = vrot.slane %v791, 1
      %v1143 = vrot.slane %v792, 1
      %v1144 = vrot.slane %v793, 1
      %v1145 = vrot.slane %v794, 1
      %v1146 = vrot.slane %v795, 1
      %v1147 = vrot.slane %v796, 1
      %v1148 = vrot.slane %v797, 1
      %v1149 = vrot.slane %v798, 1
      %v1150 = vrot.slane %v799, 1
      %v1151 = vrot.slane %v800, 1
      %v1152 = vrot.slane %v801, 1
      %v1153 = vrot.slane %v802, 1
      %v1154 = vrot.slane %v803, 1
      %vm1155 = vcmp.lt.s32.totalorder %v853, 7
      %v1156 = vsel %vm1155, %v1153, %v1154
      %v1157 = vsel %vm1155, %v1152, %v1153
      %v1158 = vsel %vm1155, %v1151, %v1152
      %v1159 = vsel %vm1155, %v1150, %v1151
      %v1160 = vsel %vm1155, %v1149, %v1150
      %v1161 = vsel %vm1155, %v1148, %v1149
      %v1162 = vsel %vm1155, %v1147, %v1148
      %v1163 = vsel %vm1155, %v1146, %v1147
      %v1164 = vsel %vm1155, %v1145, %v1146
      %v1165 = vsel %vm1155, %v1144, %v1145
      %v1166 = vsel %vm1155, %v1143, %v1144
      %v1167 = vsel %vm1155, %v1142, %v1143
      %v1168 = vsel %vm1155, %v1141, %v1142
      %v1169 = vsel %vm1155, %v1140, %v1141
      %v1170 = vsel %vm1155, %v1139, %v1140
      %v1171 = vsel %vm1155, %v1138, %v1139
      %v1172 = vsel %vm1155, %v1137, %v1138
      %v1173 = vsel %vm1155, %v1136, %v1137
      %v1174 = vsel %vm1155, %v1135, %v1136
      %v1175 = vsel %vm1155, %v1134, %v1135
      %v1176 = vsel %vm1155, %v1133, %v1134
      %v1177 = vsel %vm1155, %v1132, %v1133
      %v1178 = vsel %vm1155, %v1131, %v1132
      %v1179 = vsel %vm1155, %v1130, %v1131
      %v1180 = vsel %vm1155, %v1129, %v1130
      %v1181 = vsel %vm1155, %v1128, %v1129
      %v1182 = vsel %vm1155, %v1127, %v1128
      %v1183 = vsel %vm1155, %v1126, %v1127
      %v1184 = vsel %vm1155, %v1125, %v1126
      %v1185 = vsel %vm1155, %v1124, %v1125
      %v1186 = vsel %vm1155, %v1123, %v1124
      %v1187 = vsel %vm1155, %v1122, %v1123
      %v1188 = vsel %vm1155, %v1121, %v1122
      %v1189 = vsel %vm1155, %v1120, %v1121
      %v1190 = vsel %vm1155, %v1119, %v1120
      %v1191 = vsel %vm1155, %v1118, %v1119
      %v1192 = vsel %vm1155, %v1117, %v1118
      %v1193 = vsel %vm1155, %v1116, %v1117
      %v1194 = vsel %vm1155, %v1115, %v1116
      %v1195 = vsel %vm1155, %v1114, %v1115
      %v1196 = vsel %vm1155, %v1113, %v1114
      %v1197 = vsel %vm1155, %v1112, %v1113
      %v1198 = vsel %vm1155, %v1111, %v1112
      %v1199 = vsel %vm1155, %v1110, %v1111
      %v1200 = vsel %vm1155, %v1109, %v1110
      %v1201 = vsel %vm1155, %v1108, %v1109
      %v1202 = vsel %vm1155, %v1107, %v1108
      %v1203 = vsel %vm1155, %v1154, %v1107
      %v1205 = vlaneseq
      %v1206 = vshrl.u32 %v1205, 7
      %v1207 = vsub.s32 0, %v1206
      %v1208 = vrot.slane %v748, %v1207
      %v1210 = vmul.f32 %v1202, %v1208
      %v1211 = vmul.f32 %v1201, %v1208
      %v1212 = vmul.f32 %v1200, %v1208
      %v1213 = vmul.f32 %v1199, %v1208
      %v1214 = vmul.f32 %v1198, %v1208
      %v1215 = vmul.f32 %v1197, %v1208
      %v1216 = vmul.f32 %v1196, %v1208
      %v1217 = vmul.f32 %v1195, %v1208
      %v1218 = vmul.f32 %v1194, %v1208
      %v1219 = vmul.f32 %v1193, %v1208
      %v1220 = vmul.f32 %v1192, %v1208
      %v1221 = vmul.f32 %v1191, %v1208
      %v1222 = vmul.f32 %v1190, %v1208
      %v1223 = vmul.f32 %v1189, %v1208
      %v1224 = vmul.f32 %v1188, %v1208
      %v1225 = vmul.f32 %v1187, %v1208
      %v1226 = vmul.f32 %v1186, %v1208
      %v1227 = vmul.f32 %v1185, %v1208
      %v1228 = vmul.f32 %v1184, %v1208
      %v1229 = vmul.f32 %v1183, %v1208
      %v1230 = vmul.f32 %v1182, %v1208
      %v1231 = vmul.f32 %v1181, %v1208
      %v1232 = vmul.f32 %v1180, %v1208
      %v1233 = vmul.f32 %v1179, %v1208
      %v1234 = vmul.f32 %v1178, %v1208
      %v1235 = vmul.f32 %v1177, %v1208
      %v1236 = vmul.f32 %v1176, %v1208
      %v1237 = vmul.f32 %v1175, %v1208
      %v1238 = vmul.f32 %v1174, %v1208
      %v1239 = vmul.f32 %v1173, %v1208
      %v1240 = vmul.f32 %v1172, %v1208
      %v1241 = vmul.f32 %v1171, %v1208
      %v1242 = vmul.f32 %v1170, %v1208
      %v1243 = vmul.f32 %v1169, %v1208
      %v1244 = vmul.f32 %v1168, %v1208
      %v1245 = vmul.f32 %v1167, %v1208
      %v1246 = vmul.f32 %v1166, %v1208
      %v1247 = vmul.f32 %v1165, %v1208
      %v1248 = vmul.f32 %v1164, %v1208
      %v1249 = vmul.f32 %v1163, %v1208
      %v1250 = vmul.f32 %v1162, %v1208
      %v1251 = vmul.f32 %v1161, %v1208
      %v1252 = vmul.f32 %v1160, %v1208
      %v1253 = vmul.f32 %v1159, %v1208
      %v1254 = vmul.f32 %v1158, %v1208
      %v1255 = vmul.f32 %v1157, %v1208
      %v1256 = vmul.f32 %v1156, %v1208
      %v1257 = vmul.f32 %v1203, %v1208
      %v1258 = vadd.f32 %v1059, %v1210
      %v1259 = vadd.f32 %v1060, %v1211
      %v1260 = vadd.f32 %v1061, %v1212
      %v1261 = vadd.f32 %v1062, %v1213
      %v1262 = vadd.f32 %v1063, %v1214
      %v1263 = vadd.f32 %v1064, %v1215
      %v1264 = vadd.f32 %v1065, %v1216
      %v1265 = vadd.f32 %v1066, %v1217
      %v1266 = vadd.f32 %v1067, %v1218
      %v1267 = vadd.f32 %v1068, %v1219
      %v1268 = vadd.f32 %v1069, %v1220
      %v1269 = vadd.f32 %v1070, %v1221
      %v1270 = vadd.f32 %v1071, %v1222
      %v1271 = vadd.f32 %v1072, %v1223
      %v1272 = vadd.f32 %v1073, %v1224
      %v1273 = vadd.f32 %v1074, %v1225
      %v1274 = vadd.f32 %v1075, %v1226
      %v1275 = vadd.f32 %v1076, %v1227
      %v1276 = vadd.f32 %v1077, %v1228
      %v1277 = vadd.f32 %v1078, %v1229
      %v1278 = vadd.f32 %v1079, %v1230
      %v1279 = vadd.f32 %v1080, %v1231
      %v1280 = vadd.f32 %v1081, %v1232
      %v1281 = vadd.f32 %v1082, %v1233
      %v1282 = vadd.f32 %v1083, %v1234
      %v1283 = vadd.f32 %v1084, %v1235
      %v1284 = vadd.f32 %v1085, %v1236
      %v1285 = vadd.f32 %v1086, %v1237
      %v1286 = vadd.f32 %v1087, %v1238
      %v1287 = vadd.f32 %v1088, %v1239
      %v1288 = vadd.f32 %v1089, %v1240
      %v1289 = vadd.f32 %v1090, %v1241
      %v1290 = vadd.f32 %v1091, %v1242
      %v1291 = vadd.f32 %v1092, %v1243
      %v1292 = vadd.f32 %v1093, %v1244
      %v1293 = vadd.f32 %v1094, %v1245
      %v1294 = vadd.f32 %v1095, %v1246
      %v1295 = vadd.f32 %v1096, %v1247
      %v1296 = vadd.f32 %v1097, %v1248
      %v1297 = vadd.f32 %v1098, %v1249
      %v1298 = vadd.f32 %v1099, %v1250
      %v1299 = vadd.f32 %v1100, %v1251
      %v1300 = vadd.f32 %v1101, %v1252
      %v1301 = vadd.f32 %v1102, %v1253
      %v1302 = vadd.f32 %v1103, %v1254
      %v1303 = vadd.f32 %v1104, %v1255
      %v1304 = vadd.f32 %v1105, %v1256
      %v1305 = vadd.f32 %v1106, %v1257
      %v1306 = vld [vmem:[%s395] sm:$0xff]
      %v1307 = vld [vmem:[%s395 + $0x8] sm:$0xff]
      %v1308 = vld [vmem:[%s395 + $0x10] sm:$0xff]
      %v1309 = vld [vmem:[%s395 + $0x18] sm:$0xff]
      %v1310 = vld [vmem:[%s395 + $0x20] sm:$0xff]
      %v1311 = vld [vmem:[%s395 + $0x28] sm:$0xff]
      %v1312 = vld [vmem:[%s395 + $0x30] sm:$0xff]
      %v1313 = vld [vmem:[%s395 + $0x38] sm:$0xff]
      %v1314 = vld [vmem:[%s395 + $0x40] sm:$0xff]
      %v1315 = vld [vmem:[%s395 + $0x48] sm:$0xff]
      %v1316 = vld [vmem:[%s395 + $0x50] sm:$0xff]
      %v1317 = vld [vmem:[%s395 + $0x58] sm:$0xff]
      %v1318 = vld [vmem:[%s395 + $0x60] sm:$0xff]
      %v1319 = vld [vmem:[%s395 + $0x68] sm:$0xff]
      %v1320 = vld [vmem:[%s395 + $0x70] sm:$0xff]
      %v1321 = vld [vmem:[%s395 + $0x78] sm:$0xff]
      %v1322 = vld [vmem:[%s395 + $0x80] sm:$0xff]
      %v1323 = vld [vmem:[%s395 + $0x88] sm:$0xff]
      %v1324 = vld [vmem:[%s395 + $0x90] sm:$0xff]
      %v1325 = vld [vmem:[%s395 + $0x98] sm:$0xff]
      %v1326 = vld [vmem:[%s395 + $0xa0] sm:$0xff]
      %v1327 = vld [vmem:[%s395 + $0xa8] sm:$0xff]
      %v1328 = vld [vmem:[%s395 + $0xb0] sm:$0xff]
      %v1329 = vld [vmem:[%s395 + $0xb8] sm:$0xff]
      %v1330 = vld [vmem:[%s395 + $0xc0] sm:$0xff]
      %v1331 = vld [vmem:[%s395 + $0xc8] sm:$0xff]
      %v1332 = vld [vmem:[%s395 + $0xd0] sm:$0xff]
      %v1333 = vld [vmem:[%s395 + $0xd8] sm:$0xff]
      %v1334 = vld [vmem:[%s395 + $0xe0] sm:$0xff]
      %v1335 = vld [vmem:[%s395 + $0xe8] sm:$0xff]
      %v1336 = vld [vmem:[%s395 + $0xf0] sm:$0xff]
      %v1337 = vld [vmem:[%s395 + $0xf8] sm:$0xff]
      %v1338 = vld [vmem:[%s395 + $0x100] sm:$0xff]
      %v1339 = vld [vmem:[%s395 + $0x108] sm:$0xff]
      %v1340 = vld [vmem:[%s395 + $0x110] sm:$0xff]
      %v1341 = vld [vmem:[%s395 + $0x118] sm:$0xff]
      %v1342 = vld [vmem:[%s395 + $0x120] sm:$0xff]
      %v1343 = vld [vmem:[%s395 + $0x128] sm:$0xff]
      %v1344 = vld [vmem:[%s395 + $0x130] sm:$0xff]
      %v1345 = vld [vmem:[%s395 + $0x138] sm:$0xff]
      %v1346 = vld [vmem:[%s395 + $0x140] sm:$0xff]
      %v1347 = vld [vmem:[%s395 + $0x148] sm:$0xff]
      %v1348 = vld [vmem:[%s395 + $0x150] sm:$0xff]
      %v1349 = vld [vmem:[%s395 + $0x158] sm:$0xff]
      %v1350 = vld [vmem:[%s395 + $0x160] sm:$0xff]
      %v1351 = vld [vmem:[%s395 + $0x168] sm:$0xff]
      %v1352 = vld [vmem:[%s395 + $0x170] sm:$0xff]
      %v1353 = vld [vmem:[%s395 + $0x178] sm:$0xff]
      %v1354 = vrot.slane %v1306, 7
      %v1355 = vrot.slane %v1307, 7
      %v1356 = vrot.slane %v1308, 7
      %v1357 = vrot.slane %v1309, 7
      %v1358 = vrot.slane %v1310, 7
      %v1359 = vrot.slane %v1311, 7
      %v1360 = vrot.slane %v1312, 7
      %v1361 = vrot.slane %v1313, 7
      %v1362 = vrot.slane %v1314, 7
      %v1363 = vrot.slane %v1315, 7
      %v1364 = vrot.slane %v1316, 7
      %v1365 = vrot.slane %v1317, 7
      %v1366 = vrot.slane %v1318, 7
      %v1367 = vrot.slane %v1319, 7
      %v1368 = vrot.slane %v1320, 7
      %v1369 = vrot.slane %v1321, 7
      %v1370 = vrot.slane %v1322, 7
      %v1371 = vrot.slane %v1323, 7
      %v1372 = vrot.slane %v1324, 7
      %v1373 = vrot.slane %v1325, 7
      %v1374 = vrot.slane %v1326, 7
      %v1375 = vrot.slane %v1327, 7
      %v1376 = vrot.slane %v1328, 7
      %v1377 = vrot.slane %v1329, 7
      %v1378 = vrot.slane %v1330, 7
      %v1379 = vrot.slane %v1331, 7
      %v1380 = vrot.slane %v1332, 7
      %v1381 = vrot.slane %v1333, 7
      %v1382 = vrot.slane %v1334, 7
      %v1383 = vrot.slane %v1335, 7
      %v1384 = vrot.slane %v1336, 7
      %v1385 = vrot.slane %v1337, 7
      %v1386 = vrot.slane %v1338, 7
      %v1387 = vrot.slane %v1339, 7
      %v1388 = vrot.slane %v1340, 7
      %v1389 = vrot.slane %v1341, 7
      %v1390 = vrot.slane %v1342, 7
      %v1391 = vrot.slane %v1343, 7
      %v1392 = vrot.slane %v1344, 7
      %v1393 = vrot.slane %v1345, 7
      %v1394 = vrot.slane %v1346, 7
      %v1395 = vrot.slane %v1347, 7
      %v1396 = vrot.slane %v1348, 7
      %v1397 = vrot.slane %v1349, 7
      %v1398 = vrot.slane %v1350, 7
      %v1399 = vrot.slane %v1351, 7
      %v1400 = vrot.slane %v1352, 7
      %v1401 = vrot.slane %v1353, 7
      %v1402 = vsel %vm854, %v1400, %v1401
      %v1403 = vsel %vm854, %v1399, %v1400
      %v1404 = vsel %vm854, %v1398, %v1399
      %v1405 = vsel %vm854, %v1397, %v1398
      %v1406 = vsel %vm854, %v1396, %v1397
      %v1407 = vsel %vm854, %v1395, %v1396
      %v1408 = vsel %vm854, %v1394, %v1395
      %v1409 = vsel %vm854, %v1393, %v1394
      %v1410 = vsel %vm854, %v1392, %v1393
      %v1411 = vsel %vm854, %v1391, %v1392
      %v1412 = vsel %vm854, %v1390, %v1391
      %v1413 = vsel %vm854, %v1389, %v1390
      %v1414 = vsel %vm854, %v1388, %v1389
      %v1415 = vsel %vm854, %v1387, %v1388
      %v1416 = vsel %vm854, %v1386, %v1387
      %v1417 = vsel %vm854, %v1385, %v1386
      %v1418 = vsel %vm854, %v1384, %v1385
      %v1419 = vsel %vm854, %v1383, %v1384
      %v1420 = vsel %vm854, %v1382, %v1383
      %v1421 = vsel %vm854, %v1381, %v1382
      %v1422 = vsel %vm854, %v1380, %v1381
      %v1423 = vsel %vm854, %v1379, %v1380
      %v1424 = vsel %vm854, %v1378, %v1379
      %v1425 = vsel %vm854, %v1377, %v1378
      %v1426 = vsel %vm854, %v1376, %v1377
      %v1427 = vsel %vm854, %v1375, %v1376
      %v1428 = vsel %vm854, %v1374, %v1375
      %v1429 = vsel %vm854, %v1373, %v1374
      %v1430 = vsel %vm854, %v1372, %v1373
      %v1431 = vsel %vm854, %v1371, %v1372
      %v1432 = vsel %vm854, %v1370, %v1371
      %v1433 = vsel %vm854, %v1369, %v1370
      %v1434 = vsel %vm854, %v1368, %v1369
      %v1435 = vsel %vm854, %v1367, %v1368
      %v1436 = vsel %vm854, %v1366, %v1367
      %v1437 = vsel %vm854, %v1365, %v1366
      %v1438 = vsel %vm854, %v1364, %v1365
      %v1439 = vsel %vm854, %v1363, %v1364
      %v1440 = vsel %vm854, %v1362, %v1363
      %v1441 = vsel %vm854, %v1361, %v1362
      %v1442 = vsel %vm854, %v1360, %v1361
      %v1443 = vsel %vm854, %v1359, %v1360
      %v1444 = vsel %vm854, %v1358, %v1359
      %v1445 = vsel %vm854, %v1357, %v1358
      %v1446 = vsel %vm854, %v1356, %v1357
      %v1447 = vsel %vm854, %v1355, %v1356
      %v1448 = vsel %vm854, %v1354, %v1355
      %v1449 = vsel %vm854, %v1401, %v1354
      %v1451 = vlaneseq
      %v1452 = vshrl.u32 %v1451, 7
      %v1453 = vsub.s32 0, %v1452
      %v1454 = vrot.slane %v749, %v1453
      %v1456 = vmul.f32 %v1449, %v1454
      %v1457 = vmul.f32 %v1448, %v1454
      %v1458 = vmul.f32 %v1447, %v1454
      %v1459 = vmul.f32 %v1446, %v1454
      %v1460 = vmul.f32 %v1445, %v1454
      %v1461 = vmul.f32 %v1444, %v1454
      %v1462 = vmul.f32 %v1443, %v1454
      %v1463 = vmul.f32 %v1442, %v1454
      %v1464 = vmul.f32 %v1441, %v1454
      %v1465 = vmul.f32 %v1440, %v1454
      %v1466 = vmul.f32 %v1439, %v1454
      %v1467 = vmul.f32 %v1438, %v1454
      %v1468 = vmul.f32 %v1437, %v1454
      %v1469 = vmul.f32 %v1436, %v1454
      %v1470 = vmul.f32 %v1435, %v1454
      %v1471 = vmul.f32 %v1434, %v1454
      %v1472 = vmul.f32 %v1433, %v1454
      %v1473 = vmul.f32 %v1432, %v1454
      %v1474 = vmul.f32 %v1431, %v1454
      %v1475 = vmul.f32 %v1430, %v1454
      %v1476 = vmul.f32 %v1429, %v1454
      %v1477 = vmul.f32 %v1428, %v1454
      %v1478 = vmul.f32 %v1427, %v1454
      %v1479 = vmul.f32 %v1426, %v1454
      %v1480 = vmul.f32 %v1425, %v1454
      %v1481 = vmul.f32 %v1424, %v1454
      %v1482 = vmul.f32 %v1423, %v1454
      %v1483 = vmul.f32 %v1422, %v1454
      %v1484 = vmul.f32 %v1421, %v1454
      %v1485 = vmul.f32 %v1420, %v1454
      %v1486 = vmul.f32 %v1419, %v1454
      %v1487 = vmul.f32 %v1418, %v1454
      %v1488 = vmul.f32 %v1417, %v1454
      %v1489 = vmul.f32 %v1416, %v1454
      %v1490 = vmul.f32 %v1415, %v1454
      %v1491 = vmul.f32 %v1414, %v1454
      %v1492 = vmul.f32 %v1413, %v1454
      %v1493 = vmul.f32 %v1412, %v1454
      %v1494 = vmul.f32 %v1411, %v1454
      %v1495 = vmul.f32 %v1410, %v1454
      %v1496 = vmul.f32 %v1409, %v1454
      %v1497 = vmul.f32 %v1408, %v1454
      %v1498 = vmul.f32 %v1407, %v1454
      %v1499 = vmul.f32 %v1406, %v1454
      %v1500 = vmul.f32 %v1405, %v1454
      %v1501 = vmul.f32 %v1404, %v1454
      %v1502 = vmul.f32 %v1403, %v1454
      %v1503 = vmul.f32 %v1402, %v1454
      %v1504 = vadd.f32 %v1258, %v1456
      %v1505 = vadd.f32 %v1259, %v1457
      %v1506 = vadd.f32 %v1260, %v1458
      %v1507 = vadd.f32 %v1261, %v1459
      %v1508 = vadd.f32 %v1262, %v1460
      %v1509 = vadd.f32 %v1263, %v1461
      %v1510 = vadd.f32 %v1264, %v1462
      %v1511 = vadd.f32 %v1265, %v1463
      %v1512 = vadd.f32 %v1266, %v1464
      %v1513 = vadd.f32 %v1267, %v1465
      %v1514 = vadd.f32 %v1268, %v1466
      %v1515 = vadd.f32 %v1269, %v1467
      %v1516 = vadd.f32 %v1270, %v1468
      %v1517 = vadd.f32 %v1271, %v1469
      %v1518 = vadd.f32 %v1272, %v1470
      %v1519 = vadd.f32 %v1273, %v1471
      %v1520 = vadd.f32 %v1274, %v1472
      %v1521 = vadd.f32 %v1275, %v1473
      %v1522 = vadd.f32 %v1276, %v1474
      %v1523 = vadd.f32 %v1277, %v1475
      %v1524 = vadd.f32 %v1278, %v1476
      %v1525 = vadd.f32 %v1279, %v1477
      %v1526 = vadd.f32 %v1280, %v1478
      %v1527 = vadd.f32 %v1281, %v1479
      %v1528 = vadd.f32 %v1282, %v1480
      %v1529 = vadd.f32 %v1283, %v1481
      %v1530 = vadd.f32 %v1284, %v1482
      %v1531 = vadd.f32 %v1285, %v1483
      %v1532 = vadd.f32 %v1286, %v1484
      %v1533 = vadd.f32 %v1287, %v1485
      %v1534 = vadd.f32 %v1288, %v1486
      %v1535 = vadd.f32 %v1289, %v1487
      %v1536 = vadd.f32 %v1290, %v1488
      %v1537 = vadd.f32 %v1291, %v1489
      %v1538 = vadd.f32 %v1292, %v1490
      %v1539 = vadd.f32 %v1293, %v1491
      %v1540 = vadd.f32 %v1294, %v1492
      %v1541 = vadd.f32 %v1295, %v1493
      %v1542 = vadd.f32 %v1296, %v1494
      %v1543 = vadd.f32 %v1297, %v1495
      %v1544 = vadd.f32 %v1298, %v1496
      %v1545 = vadd.f32 %v1299, %v1497
      %v1546 = vadd.f32 %v1300, %v1498
      %v1547 = vadd.f32 %v1301, %v1499
      %v1548 = vadd.f32 %v1302, %v1500
      %v1549 = vadd.f32 %v1303, %v1501
      %v1550 = vadd.f32 %v1304, %v1502
      %v1551 = vadd.f32 %v1305, %v1503
      %v1553 = vlaneseq
      %v1554 = vshrl.u32 %v1553, 7
      %v1555 = vsub.s32 0, %v1554
      %v1556 = vrot.slane %v750, %v1555
      %v1558 = vmul.f32 %v1306, %v1556
      %v1559 = vmul.f32 %v1307, %v1556
      %v1560 = vmul.f32 %v1308, %v1556
      %v1561 = vmul.f32 %v1309, %v1556
      %v1562 = vmul.f32 %v1310, %v1556
      %v1563 = vmul.f32 %v1311, %v1556
      %v1564 = vmul.f32 %v1312, %v1556
      %v1565 = vmul.f32 %v1313, %v1556
      %v1566 = vmul.f32 %v1314, %v1556
      %v1567 = vmul.f32 %v1315, %v1556
      %v1568 = vmul.f32 %v1316, %v1556
      %v1569 = vmul.f32 %v1317, %v1556
      %v1570 = vmul.f32 %v1318, %v1556
      %v1571 = vmul.f32 %v1319, %v1556
      %v1572 = vmul.f32 %v1320, %v1556
      %v1573 = vmul.f32 %v1321, %v1556
      %v1574 = vmul.f32 %v1322, %v1556
      %v1575 = vmul.f32 %v1323, %v1556
      %v1576 = vmul.f32 %v1324, %v1556
      %v1577 = vmul.f32 %v1325, %v1556
      %v1578 = vmul.f32 %v1326, %v1556
      %v1579 = vmul.f32 %v1327, %v1556
      %v1580 = vmul.f32 %v1328, %v1556
      %v1581 = vmul.f32 %v1329, %v1556
      %v1582 = vmul.f32 %v1330, %v1556
      %v1583 = vmul.f32 %v1331, %v1556
      %v1584 = vmul.f32 %v1332, %v1556
      %v1585 = vmul.f32 %v1333, %v1556
      %v1586 = vmul.f32 %v1334, %v1556
      %v1587 = vmul.f32 %v1335, %v1556
      %v1588 = vmul.f32 %v1336, %v1556
      %v1589 = vmul.f32 %v1337, %v1556
      %v1590 = vmul.f32 %v1338, %v1556
      %v1591 = vmul.f32 %v1339, %v1556
      %v1592 = vmul.f32 %v1340, %v1556
      %v1593 = vmul.f32 %v1341, %v1556
      %v1594 = vmul.f32 %v1342, %v1556
      %v1595 = vmul.f32 %v1343, %v1556
      %v1596 = vmul.f32 %v1344, %v1556
      %v1597 = vmul.f32 %v1345, %v1556
      %v1598 = vmul.f32 %v1346, %v1556
      %v1599 = vmul.f32 %v1347, %v1556
      %v1600 = vmul.f32 %v1348, %v1556
      %v1601 = vmul.f32 %v1349, %v1556
      %v1602 = vmul.f32 %v1350, %v1556
      %v1603 = vmul.f32 %v1351, %v1556
      %v1604 = vmul.f32 %v1352, %v1556
      %v1605 = vmul.f32 %v1353, %v1556
      %v1606 = vadd.f32 %v1504, %v1558
      %v1607 = vadd.f32 %v1505, %v1559
      %v1608 = vadd.f32 %v1506, %v1560
      %v1609 = vadd.f32 %v1507, %v1561
      %v1610 = vadd.f32 %v1508, %v1562
      %v1611 = vadd.f32 %v1509, %v1563
      %v1612 = vadd.f32 %v1510, %v1564
      %v1613 = vadd.f32 %v1511, %v1565
      %v1614 = vadd.f32 %v1512, %v1566
      %v1615 = vadd.f32 %v1513, %v1567
      %v1616 = vadd.f32 %v1514, %v1568
      %v1617 = vadd.f32 %v1515, %v1569
      %v1618 = vadd.f32 %v1516, %v1570
      %v1619 = vadd.f32 %v1517, %v1571
      %v1620 = vadd.f32 %v1518, %v1572
      %v1621 = vadd.f32 %v1519, %v1573
      %v1622 = vadd.f32 %v1520, %v1574
      %v1623 = vadd.f32 %v1521, %v1575
      %v1624 = vadd.f32 %v1522, %v1576
      %v1625 = vadd.f32 %v1523, %v1577
      %v1626 = vadd.f32 %v1524, %v1578
      %v1627 = vadd.f32 %v1525, %v1579
      %v1628 = vadd.f32 %v1526, %v1580
      %v1629 = vadd.f32 %v1527, %v1581
      %v1630 = vadd.f32 %v1528, %v1582
      %v1631 = vadd.f32 %v1529, %v1583
      %v1632 = vadd.f32 %v1530, %v1584
      %v1633 = vadd.f32 %v1531, %v1585
      %v1634 = vadd.f32 %v1532, %v1586
      %v1635 = vadd.f32 %v1533, %v1587
      %v1636 = vadd.f32 %v1534, %v1588
      %v1637 = vadd.f32 %v1535, %v1589
      %v1638 = vadd.f32 %v1536, %v1590
      %v1639 = vadd.f32 %v1537, %v1591
      %v1640 = vadd.f32 %v1538, %v1592
      %v1641 = vadd.f32 %v1539, %v1593
      %v1642 = vadd.f32 %v1540, %v1594
      %v1643 = vadd.f32 %v1541, %v1595
      %v1644 = vadd.f32 %v1542, %v1596
      %v1645 = vadd.f32 %v1543, %v1597
      %v1646 = vadd.f32 %v1544, %v1598
      %v1647 = vadd.f32 %v1545, %v1599
      %v1648 = vadd.f32 %v1546, %v1600
      %v1649 = vadd.f32 %v1547, %v1601
      %v1650 = vadd.f32 %v1548, %v1602
      %v1651 = vadd.f32 %v1549, %v1603
      %v1652 = vadd.f32 %v1550, %v1604
      %v1653 = vadd.f32 %v1551, %v1605
      %v1654 = vrot.slane %v1306, 1
      %v1655 = vrot.slane %v1307, 1
      %v1656 = vrot.slane %v1308, 1
      %v1657 = vrot.slane %v1309, 1
      %v1658 = vrot.slane %v1310, 1
      %v1659 = vrot.slane %v1311, 1
      %v1660 = vrot.slane %v1312, 1
      %v1661 = vrot.slane %v1313, 1
      %v1662 = vrot.slane %v1314, 1
      %v1663 = vrot.slane %v1315, 1
      %v1664 = vrot.slane %v1316, 1
      %v1665 = vrot.slane %v1317, 1
      %v1666 = vrot.slane %v1318, 1
      %v1667 = vrot.slane %v1319, 1
      %v1668 = vrot.slane %v1320, 1
      %v1669 = vrot.slane %v1321, 1
      %v1670 = vrot.slane %v1322, 1
      %v1671 = vrot.slane %v1323, 1
      %v1672 = vrot.slane %v1324, 1
      %v1673 = vrot.slane %v1325, 1
      %v1674 = vrot.slane %v1326, 1
      %v1675 = vrot.slane %v1327, 1
      %v1676 = vrot.slane %v1328, 1
      %v1677 = vrot.slane %v1329, 1
      %v1678 = vrot.slane %v1330, 1
      %v1679 = vrot.slane %v1331, 1
      %v1680 = vrot.slane %v1332, 1
      %v1681 = vrot.slane %v1333, 1
      %v1682 = vrot.slane %v1334, 1
      %v1683 = vrot.slane %v1335, 1
      %v1684 = vrot.slane %v1336, 1
      %v1685 = vrot.slane %v1337, 1
      %v1686 = vrot.slane %v1338, 1
      %v1687 = vrot.slane %v1339, 1
      %v1688 = vrot.slane %v1340, 1
      %v1689 = vrot.slane %v1341, 1
      %v1690 = vrot.slane %v1342, 1
      %v1691 = vrot.slane %v1343, 1
      %v1692 = vrot.slane %v1344, 1
      %v1693 = vrot.slane %v1345, 1
      %v1694 = vrot.slane %v1346, 1
      %v1695 = vrot.slane %v1347, 1
      %v1696 = vrot.slane %v1348, 1
      %v1697 = vrot.slane %v1349, 1
      %v1698 = vrot.slane %v1350, 1
      %v1699 = vrot.slane %v1351, 1
      %v1700 = vrot.slane %v1352, 1
      %v1701 = vrot.slane %v1353, 1
      %v1702 = vsel %vm1155, %v1700, %v1701
      %v1703 = vsel %vm1155, %v1699, %v1700
      %v1704 = vsel %vm1155, %v1698, %v1699
      %v1705 = vsel %vm1155, %v1697, %v1698
      %v1706 = vsel %vm1155, %v1696, %v1697
      %v1707 = vsel %vm1155, %v1695, %v1696
      %v1708 = vsel %vm1155, %v1694, %v1695
      %v1709 = vsel %vm1155, %v1693, %v1694
      %v1710 = vsel %vm1155, %v1692, %v1693
      %v1711 = vsel %vm1155, %v1691, %v1692
      %v1712 = vsel %vm1155, %v1690, %v1691
      %v1713 = vsel %vm1155, %v1689, %v1690
      %v1714 = vsel %vm1155, %v1688, %v1689
      %v1715 = vsel %vm1155, %v1687, %v1688
      %v1716 = vsel %vm1155, %v1686, %v1687
      %v1717 = vsel %vm1155, %v1685, %v1686
      %v1718 = vsel %vm1155, %v1684, %v1685
      %v1719 = vsel %vm1155, %v1683, %v1684
      %v1720 = vsel %vm1155, %v1682, %v1683
      %v1721 = vsel %vm1155, %v1681, %v1682
      %v1722 = vsel %vm1155, %v1680, %v1681
      %v1723 = vsel %vm1155, %v1679, %v1680
      %v1724 = vsel %vm1155, %v1678, %v1679
      %v1725 = vsel %vm1155, %v1677, %v1678
      %v1726 = vsel %vm1155, %v1676, %v1677
      %v1727 = vsel %vm1155, %v1675, %v1676
      %v1728 = vsel %vm1155, %v1674, %v1675
      %v1729 = vsel %vm1155, %v1673, %v1674
      %v1730 = vsel %vm1155, %v1672, %v1673
      %v1731 = vsel %vm1155, %v1671, %v1672
      %v1732 = vsel %vm1155, %v1670, %v1671
      %v1733 = vsel %vm1155, %v1669, %v1670
      %v1734 = vsel %vm1155, %v1668, %v1669
      %v1735 = vsel %vm1155, %v1667, %v1668
      %v1736 = vsel %vm1155, %v1666, %v1667
      %v1737 = vsel %vm1155, %v1665, %v1666
      %v1738 = vsel %vm1155, %v1664, %v1665
      %v1739 = vsel %vm1155, %v1663, %v1664
      %v1740 = vsel %vm1155, %v1662, %v1663
      %v1741 = vsel %vm1155, %v1661, %v1662
      %v1742 = vsel %vm1155, %v1660, %v1661
      %v1743 = vsel %vm1155, %v1659, %v1660
      %v1744 = vsel %vm1155, %v1658, %v1659
      %v1745 = vsel %vm1155, %v1657, %v1658
      %v1746 = vsel %vm1155, %v1656, %v1657
      %v1747 = vsel %vm1155, %v1655, %v1656
      %v1748 = vsel %vm1155, %v1654, %v1655
      %v1749 = vsel %vm1155, %v1701, %v1654
      %v1751 = vlaneseq
      %v1752 = vshrl.u32 %v1751, 7
      %v1753 = vsub.s32 0, %v1752
      %v1754 = vrot.slane %v751, %v1753
      %v1756 = vmul.f32 %v1748, %v1754
      %v1757 = vmul.f32 %v1747, %v1754
      %v1758 = vmul.f32 %v1746, %v1754
      %v1759 = vmul.f32 %v1745, %v1754
      %v1760 = vmul.f32 %v1744, %v1754
      %v1761 = vmul.f32 %v1743, %v1754
      %v1762 = vmul.f32 %v1742, %v1754
      %v1763 = vmul.f32 %v1741, %v1754
      %v1764 = vmul.f32 %v1740, %v1754
      %v1765 = vmul.f32 %v1739, %v1754
      %v1766 = vmul.f32 %v1738, %v1754
      %v1767 = vmul.f32 %v1737, %v1754
      %v1768 = vmul.f32 %v1736, %v1754
      %v1769 = vmul.f32 %v1735, %v1754
      %v1770 = vmul.f32 %v1734, %v1754
      %v1771 = vmul.f32 %v1733, %v1754
      %v1772 = vmul.f32 %v1732, %v1754
      %v1773 = vmul.f32 %v1731, %v1754
      %v1774 = vmul.f32 %v1730, %v1754
      %v1775 = vmul.f32 %v1729, %v1754
      %v1776 = vmul.f32 %v1728, %v1754
      %v1777 = vmul.f32 %v1727, %v1754
      %v1778 = vmul.f32 %v1726, %v1754
      %v1779 = vmul.f32 %v1725, %v1754
      %v1780 = vmul.f32 %v1724, %v1754
      %v1781 = vmul.f32 %v1723, %v1754
      %v1782 = vmul.f32 %v1722, %v1754
      %v1783 = vmul.f32 %v1721, %v1754
      %v1784 = vmul.f32 %v1720, %v1754
      %v1785 = vmul.f32 %v1719, %v1754
      %v1786 = vmul.f32 %v1718, %v1754
      %v1787 = vmul.f32 %v1717, %v1754
      %v1788 = vmul.f32 %v1716, %v1754
      %v1789 = vmul.f32 %v1715, %v1754
      %v1790 = vmul.f32 %v1714, %v1754
      %v1791 = vmul.f32 %v1713, %v1754
      %v1792 = vmul.f32 %v1712, %v1754
      %v1793 = vmul.f32 %v1711, %v1754
      %v1794 = vmul.f32 %v1710, %v1754
      %v1795 = vmul.f32 %v1709, %v1754
      %v1796 = vmul.f32 %v1708, %v1754
      %v1797 = vmul.f32 %v1707, %v1754
      %v1798 = vmul.f32 %v1706, %v1754
      %v1799 = vmul.f32 %v1705, %v1754
      %v1800 = vmul.f32 %v1704, %v1754
      %v1801 = vmul.f32 %v1703, %v1754
      %v1802 = vmul.f32 %v1702, %v1754
      %v1803 = vmul.f32 %v1749, %v1754
      %v1804 = vadd.f32 %v1606, %v1756
      %v1805 = vadd.f32 %v1607, %v1757
      %v1806 = vadd.f32 %v1608, %v1758
      %v1807 = vadd.f32 %v1609, %v1759
      %v1808 = vadd.f32 %v1610, %v1760
      %v1809 = vadd.f32 %v1611, %v1761
      %v1810 = vadd.f32 %v1612, %v1762
      %v1811 = vadd.f32 %v1613, %v1763
      %v1812 = vadd.f32 %v1614, %v1764
      %v1813 = vadd.f32 %v1615, %v1765
      %v1814 = vadd.f32 %v1616, %v1766
      %v1815 = vadd.f32 %v1617, %v1767
      %v1816 = vadd.f32 %v1618, %v1768
      %v1817 = vadd.f32 %v1619, %v1769
      %v1818 = vadd.f32 %v1620, %v1770
      %v1819 = vadd.f32 %v1621, %v1771
      %v1820 = vadd.f32 %v1622, %v1772
      %v1821 = vadd.f32 %v1623, %v1773
      %v1822 = vadd.f32 %v1624, %v1774
      %v1823 = vadd.f32 %v1625, %v1775
      %v1824 = vadd.f32 %v1626, %v1776
      %v1825 = vadd.f32 %v1627, %v1777
      %v1826 = vadd.f32 %v1628, %v1778
      %v1827 = vadd.f32 %v1629, %v1779
      %v1828 = vadd.f32 %v1630, %v1780
      %v1829 = vadd.f32 %v1631, %v1781
      %v1830 = vadd.f32 %v1632, %v1782
      %v1831 = vadd.f32 %v1633, %v1783
      %v1832 = vadd.f32 %v1634, %v1784
      %v1833 = vadd.f32 %v1635, %v1785
      %v1834 = vadd.f32 %v1636, %v1786
      %v1835 = vadd.f32 %v1637, %v1787
      %v1836 = vadd.f32 %v1638, %v1788
      %v1837 = vadd.f32 %v1639, %v1789
      %v1838 = vadd.f32 %v1640, %v1790
      %v1839 = vadd.f32 %v1641, %v1791
      %v1840 = vadd.f32 %v1642, %v1792
      %v1841 = vadd.f32 %v1643, %v1793
      %v1842 = vadd.f32 %v1644, %v1794
      %v1843 = vadd.f32 %v1645, %v1795
      %v1844 = vadd.f32 %v1646, %v1796
      %v1845 = vadd.f32 %v1647, %v1797
      %v1846 = vadd.f32 %v1648, %v1798
      %v1847 = vadd.f32 %v1649, %v1799
      %v1848 = vadd.f32 %v1650, %v1800
      %v1849 = vadd.f32 %v1651, %v1801
      %v1850 = vadd.f32 %v1652, %v1802
      %v1851 = vadd.f32 %v1653, %v1803
      %s1852 = scalar_lea.vmem [#allocation2], 48
      %v1853 = vld [vmem:[%s1852] sm:$0xff]
      %v1854 = vld [vmem:[%s1852 + $0x8] sm:$0xff]
      %v1855 = vld [vmem:[%s1852 + $0x10] sm:$0xff]
      %v1856 = vld [vmem:[%s1852 + $0x18] sm:$0xff]
      %v1857 = vld [vmem:[%s1852 + $0x20] sm:$0xff]
      %v1858 = vld [vmem:[%s1852 + $0x28] sm:$0xff]
      %v1859 = vld [vmem:[%s1852 + $0x30] sm:$0xff]
      %v1860 = vld [vmem:[%s1852 + $0x38] sm:$0xff]
      %v1861 = vld [vmem:[%s1852 + $0x40] sm:$0xff]
      %v1862 = vld [vmem:[%s1852 + $0x48] sm:$0xff]
      %v1863 = vld [vmem:[%s1852 + $0x50] sm:$0xff]
      %v1864 = vld [vmem:[%s1852 + $0x58] sm:$0xff]
      %v1865 = vld [vmem:[%s1852 + $0x60] sm:$0xff]
      %v1866 = vld [vmem:[%s1852 + $0x68] sm:$0xff]
      %v1867 = vld [vmem:[%s1852 + $0x70] sm:$0xff]
      %v1868 = vld [vmem:[%s1852 + $0x78] sm:$0xff]
      %v1869 = vld [vmem:[%s1852 + $0x80] sm:$0xff]
      %v1870 = vld [vmem:[%s1852 + $0x88] sm:$0xff]
      %v1871 = vld [vmem:[%s1852 + $0x90] sm:$0xff]
      %v1872 = vld [vmem:[%s1852 + $0x98] sm:$0xff]
      %v1873 = vld [vmem:[%s1852 + $0xa0] sm:$0xff]
      %v1874 = vld [vmem:[%s1852 + $0xa8] sm:$0xff]
      %v1875 = vld [vmem:[%s1852 + $0xb0] sm:$0xff]
      %v1876 = vld [vmem:[%s1852 + $0xb8] sm:$0xff]
      %v1877 = vld [vmem:[%s1852 + $0xc0] sm:$0xff]
      %v1878 = vld [vmem:[%s1852 + $0xc8] sm:$0xff]
      %v1879 = vld [vmem:[%s1852 + $0xd0] sm:$0xff]
      %v1880 = vld [vmem:[%s1852 + $0xd8] sm:$0xff]
      %v1881 = vld [vmem:[%s1852 + $0xe0] sm:$0xff]
      %v1882 = vld [vmem:[%s1852 + $0xe8] sm:$0xff]
      %v1883 = vld [vmem:[%s1852 + $0xf0] sm:$0xff]
      %v1884 = vld [vmem:[%s1852 + $0xf8] sm:$0xff]
      %v1885 = vld [vmem:[%s1852 + $0x100] sm:$0xff]
      %v1886 = vld [vmem:[%s1852 + $0x108] sm:$0xff]
      %v1887 = vld [vmem:[%s1852 + $0x110] sm:$0xff]
      %v1888 = vld [vmem:[%s1852 + $0x118] sm:$0xff]
      %v1889 = vld [vmem:[%s1852 + $0x120] sm:$0xff]
      %v1890 = vld [vmem:[%s1852 + $0x128] sm:$0xff]
      %v1891 = vld [vmem:[%s1852 + $0x130] sm:$0xff]
      %v1892 = vld [vmem:[%s1852 + $0x138] sm:$0xff]
      %v1893 = vld [vmem:[%s1852 + $0x140] sm:$0xff]
      %v1894 = vld [vmem:[%s1852 + $0x148] sm:$0xff]
      %v1895 = vld [vmem:[%s1852 + $0x150] sm:$0xff]
      %v1896 = vld [vmem:[%s1852 + $0x158] sm:$0xff]
      %v1897 = vld [vmem:[%s1852 + $0x160] sm:$0xff]
      %v1898 = vld [vmem:[%s1852 + $0x168] sm:$0xff]
      %v1899 = vld [vmem:[%s1852 + $0x170] sm:$0xff]
      %v1900 = vld [vmem:[%s1852 + $0x178] sm:$0xff]
      %v1901 = vrot.slane %v1853, 7
      %v1902 = vrot.slane %v1854, 7
      %v1903 = vrot.slane %v1855, 7
      %v1904 = vrot.slane %v1856, 7
      %v1905 = vrot.slane %v1857, 7
      %v1906 = vrot.slane %v1858, 7
      %v1907 = vrot.slane %v1859, 7
      %v1908 = vrot.slane %v1860, 7
      %v1909 = vrot.slane %v1861, 7
      %v1910 = vrot.slane %v1862, 7
      %v1911 = vrot.slane %v1863, 7
      %v1912 = vrot.slane %v1864, 7
      %v1913 = vrot.slane %v1865, 7
      %v1914 = vrot.slane %v1866, 7
      %v1915 = vrot.slane %v1867, 7
      %v1916 = vrot.slane %v1868, 7
      %v1917 = vrot.slane %v1869, 7
      %v1918 = vrot.slane %v1870, 7
      %v1919 = vrot.slane %v1871, 7
      %v1920 = vrot.slane %v1872, 7
      %v1921 = vrot.slane %v1873, 7
      %v1922 = vrot.slane %v1874, 7
      %v1923 = vrot.slane %v1875, 7
      %v1924 = vrot.slane %v1876, 7
      %v1925 = vrot.slane %v1877, 7
      %v1926 = vrot.slane %v1878, 7
      %v1927 = vrot.slane %v1879, 7
      %v1928 = vrot.slane %v1880, 7
      %v1929 = vrot.slane %v1881, 7
      %v1930 = vrot.slane %v1882, 7
      %v1931 = vrot.slane %v1883, 7
      %v1932 = vrot.slane %v1884, 7
      %v1933 = vrot.slane %v1885, 7
      %v1934 = vrot.slane %v1886, 7
      %v1935 = vrot.slane %v1887, 7
      %v1936 = vrot.slane %v1888, 7
      %v1937 = vrot.slane %v1889, 7
      %v1938 = vrot.slane %v1890, 7
      %v1939 = vrot.slane %v1891, 7
      %v1940 = vrot.slane %v1892, 7
      %v1941 = vrot.slane %v1893, 7
      %v1942 = vrot.slane %v1894, 7
      %v1943 = vrot.slane %v1895, 7
      %v1944 = vrot.slane %v1896, 7
      %v1945 = vrot.slane %v1897, 7
      %v1946 = vrot.slane %v1898, 7
      %v1947 = vrot.slane %v1899, 7
      %v1948 = vrot.slane %v1900, 7
      %v1949 = vsel %vm854, %v1947, %v1948
      %v1950 = vsel %vm854, %v1946, %v1947
      %v1951 = vsel %vm854, %v1945, %v1946
      %v1952 = vsel %vm854, %v1944, %v1945
      %v1953 = vsel %vm854, %v1943, %v1944
      %v1954 = vsel %vm854, %v1942, %v1943
      %v1955 = vsel %vm854, %v1941, %v1942
      %v1956 = vsel %vm854, %v1940, %v1941
      %v1957 = vsel %vm854, %v1939, %v1940
      %v1958 = vsel %vm854, %v1938, %v1939
      %v1959 = vsel %vm854, %v1937, %v1938
      %v1960 = vsel %vm854, %v1936, %v1937
      %v1961 = vsel %vm854, %v1935, %v1936
      %v1962 = vsel %vm854, %v1934, %v1935
      %v1963 = vsel %vm854, %v1933, %v1934
      %v1964 = vsel %vm854, %v1932, %v1933
      %v1965 = vsel %vm854, %v1931, %v1932
      %v1966 = vsel %vm854, %v1930, %v1931
      %v1967 = vsel %vm854, %v1929, %v1930
      %v1968 = vsel %vm854, %v1928, %v1929
      %v1969 = vsel %vm854, %v1927, %v1928
      %v1970 = vsel %vm854, %v1926, %v1927
      %v1971 = vsel %vm854, %v1925, %v1926
      %v1972 = vsel %vm854, %v1924, %v1925
      %v1973 = vsel %vm854, %v1923, %v1924
      %v1974 = vsel %vm854, %v1922, %v1923
      %v1975 = vsel %vm854, %v1921, %v1922
      %v1976 = vsel %vm854, %v1920, %v1921
      %v1977 = vsel %vm854, %v1919, %v1920
      %v1978 = vsel %vm854, %v1918, %v1919
      %v1979 = vsel %vm854, %v1917, %v1918
      %v1980 = vsel %vm854, %v1916, %v1917
      %v1981 = vsel %vm854, %v1915, %v1916
      %v1982 = vsel %vm854, %v1914, %v1915
      %v1983 = vsel %vm854, %v1913, %v1914
      %v1984 = vsel %vm854, %v1912, %v1913
      %v1985 = vsel %vm854, %v1911, %v1912
      %v1986 = vsel %vm854, %v1910, %v1911
      %v1987 = vsel %vm854, %v1909, %v1910
      %v1988 = vsel %vm854, %v1908, %v1909
      %v1989 = vsel %vm854, %v1907, %v1908
      %v1990 = vsel %vm854, %v1906, %v1907
      %v1991 = vsel %vm854, %v1905, %v1906
      %v1992 = vsel %vm854, %v1904, %v1905
      %v1993 = vsel %vm854, %v1903, %v1904
      %v1994 = vsel %vm854, %v1902, %v1903
      %v1995 = vsel %vm854, %v1901, %v1902
      %v1996 = vsel %vm854, %v1948, %v1901
      %v1998 = vlaneseq
      %v1999 = vshrl.u32 %v1998, 7
      %v2000 = vsub.s32 0, %v1999
      %v2001 = vrot.slane %v752, %v2000
      %v2003 = vmul.f32 %v1996, %v2001
      %v2004 = vmul.f32 %v1995, %v2001
      %v2005 = vmul.f32 %v1994, %v2001
      %v2006 = vmul.f32 %v1993, %v2001
      %v2007 = vmul.f32 %v1992, %v2001
      %v2008 = vmul.f32 %v1991, %v2001
      %v2009 = vmul.f32 %v1990, %v2001
      %v2010 = vmul.f32 %v1989, %v2001
      %v2011 = vmul.f32 %v1988, %v2001
      %v2012 = vmul.f32 %v1987, %v2001
      %v2013 = vmul.f32 %v1986, %v2001
      %v2014 = vmul.f32 %v1985, %v2001
      %v2015 = vmul.f32 %v1984, %v2001
      %v2016 = vmul.f32 %v1983, %v2001
      %v2017 = vmul.f32 %v1982, %v2001
      %v2018 = vmul.f32 %v1981, %v2001
      %v2019 = vmul.f32 %v1980, %v2001
      %v2020 = vmul.f32 %v1979, %v2001
      %v2021 = vmul.f32 %v1978, %v2001
      %v2022 = vmul.f32 %v1977, %v2001
      %v2023 = vmul.f32 %v1976, %v2001
      %v2024 = vmul.f32 %v1975, %v2001
      %v2025 = vmul.f32 %v1974, %v2001
      %v2026 = vmul.f32 %v1973, %v2001
      %v2027 = vmul.f32 %v1972, %v2001
      %v2028 = vmul.f32 %v1971, %v2001
      %v2029 = vmul.f32 %v1970, %v2001
      %v2030 = vmul.f32 %v1969, %v2001
      %v2031 = vmul.f32 %v1968, %v2001
      %v2032 = vmul.f32 %v1967, %v2001
      %v2033 = vmul.f32 %v1966, %v2001
      %v2034 = vmul.f32 %v1965, %v2001
      %v2035 = vmul.f32 %v1964, %v2001
      %v2036 = vmul.f32 %v1963, %v2001
      %v2037 = vmul.f32 %v1962, %v2001
      %v2038 = vmul.f32 %v1961, %v2001
      %v2039 = vmul.f32 %v1960, %v2001
      %v2040 = vmul.f32 %v1959, %v2001
      %v2041 = vmul.f32 %v1958, %v2001
      %v2042 = vmul.f32 %v1957, %v2001
      %v2043 = vmul.f32 %v1956, %v2001
      %v2044 = vmul.f32 %v1955, %v2001
      %v2045 = vmul.f32 %v1954, %v2001
      %v2046 = vmul.f32 %v1953, %v2001
      %v2047 = vmul.f32 %v1952, %v2001
      %v2048 = vmul.f32 %v1951, %v2001
      %v2049 = vmul.f32 %v1950, %v2001
      %v2050 = vmul.f32 %v1949, %v2001
      %v2051 = vadd.f32 %v1804, %v2003
      %v2052 = vadd.f32 %v1805, %v2004
      %v2053 = vadd.f32 %v1806, %v2005
      %v2054 = vadd.f32 %v1807, %v2006
      %v2055 = vadd.f32 %v1808, %v2007
      %v2056 = vadd.f32 %v1809, %v2008
      %v2057 = vadd.f32 %v1810, %v2009
      %v2058 = vadd.f32 %v1811, %v2010
      %v2059 = vadd.f32 %v1812, %v2011
      %v2060 = vadd.f32 %v1813, %v2012
      %v2061 = vadd.f32 %v1814, %v2013
      %v2062 = vadd.f32 %v1815, %v2014
      %v2063 = vadd.f32 %v1816, %v2015
      %v2064 = vadd.f32 %v1817, %v2016
      %v2065 = vadd.f32 %v1818, %v2017
      %v2066 = vadd.f32 %v1819, %v2018
      %v2067 = vadd.f32 %v1820, %v2019
      %v2068 = vadd.f32 %v1821, %v2020
      %v2069 = vadd.f32 %v1822, %v2021
      %v2070 = vadd.f32 %v1823, %v2022
      %v2071 = vadd.f32 %v1824, %v2023
      %v2072 = vadd.f32 %v1825, %v2024
      %v2073 = vadd.f32 %v1826, %v2025
      %v2074 = vadd.f32 %v1827, %v2026
      %v2075 = vadd.f32 %v1828, %v2027
      %v2076 = vadd.f32 %v1829, %v2028
      %v2077 = vadd.f32 %v1830, %v2029
      %v2078 = vadd.f32 %v1831, %v2030
      %v2079 = vadd.f32 %v1832, %v2031
      %v2080 = vadd.f32 %v1833, %v2032
      %v2081 = vadd.f32 %v1834, %v2033
      %v2082 = vadd.f32 %v1835, %v2034
      %v2083 = vadd.f32 %v1836, %v2035
      %v2084 = vadd.f32 %v1837, %v2036
      %v2085 = vadd.f32 %v1838, %v2037
      %v2086 = vadd.f32 %v1839, %v2038
      %v2087 = vadd.f32 %v1840, %v2039
      %v2088 = vadd.f32 %v1841, %v2040
      %v2089 = vadd.f32 %v1842, %v2041
      %v2090 = vadd.f32 %v1843, %v2042
      %v2091 = vadd.f32 %v1844, %v2043
      %v2092 = vadd.f32 %v1845, %v2044
      %v2093 = vadd.f32 %v1846, %v2045
      %v2094 = vadd.f32 %v1847, %v2046
      %v2095 = vadd.f32 %v1848, %v2047
      %v2096 = vadd.f32 %v1849, %v2048
      %v2097 = vadd.f32 %v1850, %v2049
      %v2098 = vadd.f32 %v1851, %v2050
      %v2100 = vlaneseq
      %v2101 = vshrl.u32 %v2100, 7
      %v2102 = vsub.s32 0, %v2101
      %v2103 = vrot.slane %v753, %v2102
      %v2105 = vmul.f32 %v1853, %v2103
      %v2106 = vmul.f32 %v1854, %v2103
      %v2107 = vmul.f32 %v1855, %v2103
      %v2108 = vmul.f32 %v1856, %v2103
      %v2109 = vmul.f32 %v1857, %v2103
      %v2110 = vmul.f32 %v1858, %v2103
      %v2111 = vmul.f32 %v1859, %v2103
      %v2112 = vmul.f32 %v1860, %v2103
      %v2113 = vmul.f32 %v1861, %v2103
      %v2114 = vmul.f32 %v1862, %v2103
      %v2115 = vmul.f32 %v1863, %v2103
      %v2116 = vmul.f32 %v1864, %v2103
      %v2117 = vmul.f32 %v1865, %v2103
      %v2118 = vmul.f32 %v1866, %v2103
      %v2119 = vmul.f32 %v1867, %v2103
      %v2120 = vmul.f32 %v1868, %v2103
      %v2121 = vmul.f32 %v1869, %v2103
      %v2122 = vmul.f32 %v1870, %v2103
      %v2123 = vmul.f32 %v1871, %v2103
      %v2124 = vmul.f32 %v1872, %v2103
      %v2125 = vmul.f32 %v1873, %v2103
      %v2126 = vmul.f32 %v1874, %v2103
      %v2127 = vmul.f32 %v1875, %v2103
      %v2128 = vmul.f32 %v1876, %v2103
      %v2129 = vmul.f32 %v1877, %v2103
      %v2130 = vmul.f32 %v1878, %v2103
      %v2131 = vmul.f32 %v1879, %v2103
      %v2132 = vmul.f32 %v1880, %v2103
      %v2133 = vmul.f32 %v1881, %v2103
      %v2134 = vmul.f32 %v1882, %v2103
      %v2135 = vmul.f32 %v1883, %v2103
      %v2136 = vmul.f32 %v1884, %v2103
      %v2137 = vmul.f32 %v1885, %v2103
      %v2138 = vmul.f32 %v1886, %v2103
      %v2139 = vmul.f32 %v1887, %v2103
      %v2140 = vmul.f32 %v1888, %v2103
      %v2141 = vmul.f32 %v1889, %v2103
      %v2142 = vmul.f32 %v1890, %v2103
      %v2143 = vmul.f32 %v1891, %v2103
      %v2144 = vmul.f32 %v1892, %v2103
      %v2145 = vmul.f32 %v1893, %v2103
      %v2146 = vmul.f32 %v1894, %v2103
      %v2147 = vmul.f32 %v1895, %v2103
      %v2148 = vmul.f32 %v1896, %v2103
      %v2149 = vmul.f32 %v1897, %v2103
      %v2150 = vmul.f32 %v1898, %v2103
      %v2151 = vmul.f32 %v1899, %v2103
      %v2152 = vmul.f32 %v1900, %v2103
      %v2153 = vadd.f32 %v2051, %v2105
      %v2154 = vadd.f32 %v2052, %v2106
      %v2155 = vadd.f32 %v2053, %v2107
      %v2156 = vadd.f32 %v2054, %v2108
      %v2157 = vadd.f32 %v2055, %v2109
      %v2158 = vadd.f32 %v2056, %v2110
      %v2159 = vadd.f32 %v2057, %v2111
      %v2160 = vadd.f32 %v2058, %v2112
      %v2161 = vadd.f32 %v2059, %v2113
      %v2162 = vadd.f32 %v2060, %v2114
      %v2163 = vadd.f32 %v2061, %v2115
      %v2164 = vadd.f32 %v2062, %v2116
      %v2165 = vadd.f32 %v2063, %v2117
      %v2166 = vadd.f32 %v2064, %v2118
      %v2167 = vadd.f32 %v2065, %v2119
      %v2168 = vadd.f32 %v2066, %v2120
      %v2169 = vadd.f32 %v2067, %v2121
      %v2170 = vadd.f32 %v2068, %v2122
      %v2171 = vadd.f32 %v2069, %v2123
      %v2172 = vadd.f32 %v2070, %v2124
      %v2173 = vadd.f32 %v2071, %v2125
      %v2174 = vadd.f32 %v2072, %v2126
      %v2175 = vadd.f32 %v2073, %v2127
      %v2176 = vadd.f32 %v2074, %v2128
      %v2177 = vadd.f32 %v2075, %v2129
      %v2178 = vadd.f32 %v2076, %v2130
      %v2179 = vadd.f32 %v2077, %v2131
      %v2180 = vadd.f32 %v2078, %v2132
      %v2181 = vadd.f32 %v2079, %v2133
      %v2182 = vadd.f32 %v2080, %v2134
      %v2183 = vadd.f32 %v2081, %v2135
      %v2184 = vadd.f32 %v2082, %v2136
      %v2185 = vadd.f32 %v2083, %v2137
      %v2186 = vadd.f32 %v2084, %v2138
      %v2187 = vadd.f32 %v2085, %v2139
      %v2188 = vadd.f32 %v2086, %v2140
      %v2189 = vadd.f32 %v2087, %v2141
      %v2190 = vadd.f32 %v2088, %v2142
      %v2191 = vadd.f32 %v2089, %v2143
      %v2192 = vadd.f32 %v2090, %v2144
      %v2193 = vadd.f32 %v2091, %v2145
      %v2194 = vadd.f32 %v2092, %v2146
      %v2195 = vadd.f32 %v2093, %v2147
      %v2196 = vadd.f32 %v2094, %v2148
      %v2197 = vadd.f32 %v2095, %v2149
      %v2198 = vadd.f32 %v2096, %v2150
      %v2199 = vadd.f32 %v2097, %v2151
      %v2200 = vadd.f32 %v2098, %v2152
      %v2201 = vrot.slane %v1853, 1
      %v2202 = vrot.slane %v1854, 1
      %v2203 = vrot.slane %v1855, 1
      %v2204 = vrot.slane %v1856, 1
      %v2205 = vrot.slane %v1857, 1
      %v2206 = vrot.slane %v1858, 1
      %v2207 = vrot.slane %v1859, 1
      %v2208 = vrot.slane %v1860, 1
      %v2209 = vrot.slane %v1861, 1
      %v2210 = vrot.slane %v1862, 1
      %v2211 = vrot.slane %v1863, 1
      %v2212 = vrot.slane %v1864, 1
      %v2213 = vrot.slane %v1865, 1
      %v2214 = vrot.slane %v1866, 1
      %v2215 = vrot.slane %v1867, 1
      %v2216 = vrot.slane %v1868, 1
      %v2217 = vrot.slane %v1869, 1
      %v2218 = vrot.slane %v1870, 1
      %v2219 = vrot.slane %v1871, 1
      %v2220 = vrot.slane %v1872, 1
      %v2221 = vrot.slane %v1873, 1
      %v2222 = vrot.slane %v1874, 1
      %v2223 = vrot.slane %v1875, 1
      %v2224 = vrot.slane %v1876, 1
      %v2225 = vrot.slane %v1877, 1
      %v2226 = vrot.slane %v1878, 1
      %v2227 = vrot.slane %v1879, 1
      %v2228 = vrot.slane %v1880, 1
      %v2229 = vrot.slane %v1881, 1
      %v2230 = vrot.slane %v1882, 1
      %v2231 = vrot.slane %v1883, 1
      %v2232 = vrot.slane %v1884, 1
      %v2233 = vrot.slane %v1885, 1
      %v2234 = vrot.slane %v1886, 1
      %v2235 = vrot.slane %v1887, 1
      %v2236 = vrot.slane %v1888, 1
      %v2237 = vrot.slane %v1889, 1
      %v2238 = vrot.slane %v1890, 1
      %v2239 = vrot.slane %v1891, 1
      %v2240 = vrot.slane %v1892, 1
      %v2241 = vrot.slane %v1893, 1
      %v2242 = vrot.slane %v1894, 1
      %v2243 = vrot.slane %v1895, 1
      %v2244 = vrot.slane %v1896, 1
      %v2245 = vrot.slane %v1897, 1
      %v2246 = vrot.slane %v1898, 1
      %v2247 = vrot.slane %v1899, 1
      %v2248 = vrot.slane %v1900, 1
      %v2249 = vsel %vm1155, %v2247, %v2248
      %v2250 = vsel %vm1155, %v2246, %v2247
      %v2251 = vsel %vm1155, %v2245, %v2246
      %v2252 = vsel %vm1155, %v2244, %v2245
      %v2253 = vsel %vm1155, %v2243, %v2244
      %v2254 = vsel %vm1155, %v2242, %v2243
      %v2255 = vsel %vm1155, %v2241, %v2242
      %v2256 = vsel %vm1155, %v2240, %v2241
      %v2257 = vsel %vm1155, %v2239, %v2240
      %v2258 = vsel %vm1155, %v2238, %v2239
      %v2259 = vsel %vm1155, %v2237, %v2238
      %v2260 = vsel %vm1155, %v2236, %v2237
      %v2261 = vsel %vm1155, %v2235, %v2236
      %v2262 = vsel %vm1155, %v2234, %v2235
      %v2263 = vsel %vm1155, %v2233, %v2234
      %v2264 = vsel %vm1155, %v2232, %v2233
      %v2265 = vsel %vm1155, %v2231, %v2232
      %v2266 = vsel %vm1155, %v2230, %v2231
      %v2267 = vsel %vm1155, %v2229, %v2230
      %v2268 = vsel %vm1155, %v2228, %v2229
      %v2269 = vsel %vm1155, %v2227, %v2228
      %v2270 = vsel %vm1155, %v2226, %v2227
      %v2271 = vsel %vm1155, %v2225, %v2226
      %v2272 = vsel %vm1155, %v2224, %v2225
      %v2273 = vsel %vm1155, %v2223, %v2224
      %v2274 = vsel %vm1155, %v2222, %v2223
      %v2275 = vsel %vm1155, %v2221, %v2222
      %v2276 = vsel %vm1155, %v2220, %v2221
      %v2277 = vsel %vm1155, %v2219, %v2220
      %v2278 = vsel %vm1155, %v2218, %v2219
      %v2279 = vsel %vm1155, %v2217, %v2218
      %v2280 = vsel %vm1155, %v2216, %v2217
      %v2281 = vsel %vm1155, %v2215, %v2216
      %v2282 = vsel %vm1155, %v2214, %v2215
      %v2283 = vsel %vm1155, %v2213, %v2214
      %v2284 = vsel %vm1155, %v2212, %v2213
      %v2285 = vsel %vm1155, %v2211, %v2212
      %v2286 = vsel %vm1155, %v2210, %v2211
      %v2287 = vsel %vm1155, %v2209, %v2210
      %v2288 = vsel %vm1155, %v2208, %v2209
      %v2289 = vsel %vm1155, %v2207, %v2208
      %v2290 = vsel %vm1155, %v2206, %v2207
      %v2291 = vsel %vm1155, %v2205, %v2206
      %v2292 = vsel %vm1155, %v2204, %v2205
      %v2293 = vsel %vm1155, %v2203, %v2204
      %v2294 = vsel %vm1155, %v2202, %v2203
      %v2295 = vsel %vm1155, %v2201, %v2202
      %v2296 = vsel %vm1155, %v2248, %v2201
      %v2298 = vlaneseq
      %v2299 = vshrl.u32 %v2298, 7
      %v2300 = vsub.s32 0, %v2299
      %v2301 = vrot.slane %v754, %v2300
      %v2303 = vmul.f32 %v2295, %v2301
      %v2304 = vmul.f32 %v2294, %v2301
      %v2305 = vmul.f32 %v2293, %v2301
      %v2306 = vmul.f32 %v2292, %v2301
      %v2307 = vmul.f32 %v2291, %v2301
      %v2308 = vmul.f32 %v2290, %v2301
      %v2309 = vmul.f32 %v2289, %v2301
      %v2310 = vmul.f32 %v2288, %v2301
      %v2311 = vmul.f32 %v2287, %v2301
      %v2312 = vmul.f32 %v2286, %v2301
      %v2313 = vmul.f32 %v2285, %v2301
      %v2314 = vmul.f32 %v2284, %v2301
      %v2315 = vmul.f32 %v2283, %v2301
      %v2316 = vmul.f32 %v2282, %v2301
      %v2317 = vmul.f32 %v2281, %v2301
      %v2318 = vmul.f32 %v2280, %v2301
      %v2319 = vmul.f32 %v2279, %v2301
      %v2320 = vmul.f32 %v2278, %v2301
      %v2321 = vmul.f32 %v2277, %v2301
      %v2322 = vmul.f32 %v2276, %v2301
      %v2323 = vmul.f32 %v2275, %v2301
      %v2324 = vmul.f32 %v2274, %v2301
      %v2325 = vmul.f32 %v2273, %v2301
      %v2326 = vmul.f32 %v2272, %v2301
      %v2327 = vmul.f32 %v2271, %v2301
      %v2328 = vmul.f32 %v2270, %v2301
      %v2329 = vmul.f32 %v2269, %v2301
      %v2330 = vmul.f32 %v2268, %v2301
      %v2331 = vmul.f32 %v2267, %v2301
      %v2332 = vmul.f32 %v2266, %v2301
      %v2333 = vmul.f32 %v2265, %v2301
      %v2334 = vmul.f32 %v2264, %v2301
      %v2335 = vmul.f32 %v2263, %v2301
      %v2336 = vmul.f32 %v2262, %v2301
      %v2337 = vmul.f32 %v2261, %v2301
      %v2338 = vmul.f32 %v2260, %v2301
      %v2339 = vmul.f32 %v2259, %v2301
      %v2340 = vmul.f32 %v2258, %v2301
      %v2341 = vmul.f32 %v2257, %v2301
      %v2342 = vmul.f32 %v2256, %v2301
      %v2343 = vmul.f32 %v2255, %v2301
      %v2344 = vmul.f32 %v2254, %v2301
      %v2345 = vmul.f32 %v2253, %v2301
      %v2346 = vmul.f32 %v2252, %v2301
      %v2347 = vmul.f32 %v2251, %v2301
      %v2348 = vmul.f32 %v2250, %v2301
      %v2349 = vmul.f32 %v2249, %v2301
      %v2350 = vmul.f32 %v2296, %v2301
      %v2351 = vadd.f32 %v2153, %v2303
      %v2352 = vadd.f32 %v2154, %v2304
      %v2353 = vadd.f32 %v2155, %v2305
      %v2354 = vadd.f32 %v2156, %v2306
      %v2355 = vadd.f32 %v2157, %v2307
      %v2356 = vadd.f32 %v2158, %v2308
      %v2357 = vadd.f32 %v2159, %v2309
      %v2358 = vadd.f32 %v2160, %v2310
      %v2359 = vadd.f32 %v2161, %v2311
      %v2360 = vadd.f32 %v2162, %v2312
      %v2361 = vadd.f32 %v2163, %v2313
      %v2362 = vadd.f32 %v2164, %v2314
      %v2363 = vadd.f32 %v2165, %v2315
      %v2364 = vadd.f32 %v2166, %v2316
      %v2365 = vadd.f32 %v2167, %v2317
      %v2366 = vadd.f32 %v2168, %v2318
      %v2367 = vadd.f32 %v2169, %v2319
      %v2368 = vadd.f32 %v2170, %v2320
      %v2369 = vadd.f32 %v2171, %v2321
      %v2370 = vadd.f32 %v2172, %v2322
      %v2371 = vadd.f32 %v2173, %v2323
      %v2372 = vadd.f32 %v2174, %v2324
      %v2373 = vadd.f32 %v2175, %v2325
      %v2374 = vadd.f32 %v2176, %v2326
      %v2375 = vadd.f32 %v2177, %v2327
      %v2376 = vadd.f32 %v2178, %v2328
      %v2377 = vadd.f32 %v2179, %v2329
      %v2378 = vadd.f32 %v2180, %v2330
      %v2379 = vadd.f32 %v2181, %v2331
      %v2380 = vadd.f32 %v2182, %v2332
      %v2381 = vadd.f32 %v2183, %v2333
      %v2382 = vadd.f32 %v2184, %v2334
      %v2383 = vadd.f32 %v2185, %v2335
      %v2384 = vadd.f32 %v2186, %v2336
      %v2385 = vadd.f32 %v2187, %v2337
      %v2386 = vadd.f32 %v2188, %v2338
      %v2387 = vadd.f32 %v2189, %v2339
      %v2388 = vadd.f32 %v2190, %v2340
      %v2389 = vadd.f32 %v2191, %v2341
      %v2390 = vadd.f32 %v2192, %v2342
      %v2391 = vadd.f32 %v2193, %v2343
      %v2392 = vadd.f32 %v2194, %v2344
      %v2393 = vadd.f32 %v2195, %v2345
      %v2394 = vadd.f32 %v2196, %v2346
      %v2395 = vadd.f32 %v2197, %v2347
      %v2396 = vadd.f32 %v2198, %v2348
      %v2397 = vadd.f32 %v2199, %v2349
      %v2398 = vadd.f32 %v2200, %v2350
      %v2400 = vlaneseq
      %v2401 = vshrl.u32 %v2400, 7
      %v2402 = vsub.s32 0, %v2401
      %v2403 = vrot.slane %v755, %v2402
      %v2405 = vadd.f32 %v2351, %v2403
      %v2406 = vadd.f32 %v2352, %v2403
      %v2407 = vadd.f32 %v2353, %v2403
      %v2408 = vadd.f32 %v2354, %v2403
      %v2409 = vadd.f32 %v2355, %v2403
      %v2410 = vadd.f32 %v2356, %v2403
      %v2411 = vadd.f32 %v2357, %v2403
      %v2412 = vadd.f32 %v2358, %v2403
      %v2413 = vadd.f32 %v2359, %v2403
      %v2414 = vadd.f32 %v2360, %v2403
      %v2415 = vadd.f32 %v2361, %v2403
      %v2416 = vadd.f32 %v2362, %v2403
      %v2417 = vadd.f32 %v2363, %v2403
      %v2418 = vadd.f32 %v2364, %v2403
      %v2419 = vadd.f32 %v2365, %v2403
      %v2420 = vadd.f32 %v2366, %v2403
      %v2421 = vadd.f32 %v2367, %v2403
      %v2422 = vadd.f32 %v2368, %v2403
      %v2423 = vadd.f32 %v2369, %v2403
      %v2424 = vadd.f32 %v2370, %v2403
      %v2425 = vadd.f32 %v2371, %v2403
      %v2426 = vadd.f32 %v2372, %v2403
      %v2427 = vadd.f32 %v2373, %v2403
      %v2428 = vadd.f32 %v2374, %v2403
      %v2429 = vadd.f32 %v2375, %v2403
      %v2430 = vadd.f32 %v2376, %v2403
      %v2431 = vadd.f32 %v2377, %v2403
      %v2432 = vadd.f32 %v2378, %v2403
      %v2433 = vadd.f32 %v2379, %v2403
      %v2434 = vadd.f32 %v2380, %v2403
      %v2435 = vadd.f32 %v2381, %v2403
      %v2436 = vadd.f32 %v2382, %v2403
      %v2437 = vadd.f32 %v2383, %v2403
      %v2438 = vadd.f32 %v2384, %v2403
      %v2439 = vadd.f32 %v2385, %v2403
      %v2440 = vadd.f32 %v2386, %v2403
      %v2441 = vadd.f32 %v2387, %v2403
      %v2442 = vadd.f32 %v2388, %v2403
      %v2443 = vadd.f32 %v2389, %v2403
      %v2444 = vadd.f32 %v2390, %v2403
      %v2445 = vadd.f32 %v2391, %v2403
      %v2446 = vadd.f32 %v2392, %v2403
      %v2447 = vadd.f32 %v2393, %v2403
      %v2448 = vadd.f32 %v2394, %v2403
      %v2449 = vadd.f32 %v2395, %v2403
      %v2450 = vadd.f32 %v2396, %v2403
      %v2451 = vadd.f32 %v2397, %v2403
      %v2452 = vadd.f32 %v2398, %v2403
      %v2453 = vmax.f32 %v2405, 0.0
      %v2454 = vmax.f32 %v2406, 0.0
      %v2455 = vmax.f32 %v2407, 0.0
      %v2456 = vmax.f32 %v2408, 0.0
      %v2457 = vmax.f32 %v2409, 0.0
      %v2458 = vmax.f32 %v2410, 0.0
      %v2459 = vmax.f32 %v2411, 0.0
      %v2460 = vmax.f32 %v2412, 0.0
      %v2461 = vmax.f32 %v2413, 0.0
      %v2462 = vmax.f32 %v2414, 0.0
      %v2463 = vmax.f32 %v2415, 0.0
      %v2464 = vmax.f32 %v2416, 0.0
      %v2465 = vmax.f32 %v2417, 0.0
      %v2466 = vmax.f32 %v2418, 0.0
      %v2467 = vmax.f32 %v2419, 0.0
      %v2468 = vmax.f32 %v2420, 0.0
      %v2469 = vmax.f32 %v2421, 0.0
      %v2470 = vmax.f32 %v2422, 0.0
      %v2471 = vmax.f32 %v2423, 0.0
      %v2472 = vmax.f32 %v2424, 0.0
      %v2473 = vmax.f32 %v2425, 0.0
      %v2474 = vmax.f32 %v2426, 0.0
      %v2475 = vmax.f32 %v2427, 0.0
      %v2476 = vmax.f32 %v2428, 0.0
      %v2477 = vmax.f32 %v2429, 0.0
      %v2478 = vmax.f32 %v2430, 0.0
      %v2479 = vmax.f32 %v2431, 0.0
      %v2480 = vmax.f32 %v2432, 0.0
      %v2481 = vmax.f32 %v2433, 0.0
      %v2482 = vmax.f32 %v2434, 0.0
      %v2483 = vmax.f32 %v2435, 0.0
      %v2484 = vmax.f32 %v2436, 0.0
      %v2485 = vmax.f32 %v2437, 0.0
      %v2486 = vmax.f32 %v2438, 0.0
      %v2487 = vmax.f32 %v2439, 0.0
      %v2488 = vmax.f32 %v2440, 0.0
      %v2489 = vmax.f32 %v2441, 0.0
      %v2490 = vmax.f32 %v2442, 0.0
      %v2491 = vmax.f32 %v2443, 0.0
      %v2492 = vmax.f32 %v2444, 0.0
      %v2493 = vmax.f32 %v2445, 0.0
      %v2494 = vmax.f32 %v2446, 0.0
      %v2495 = vmax.f32 %v2447, 0.0
      %v2496 = vmax.f32 %v2448, 0.0
      %v2497 = vmax.f32 %v2449, 0.0
      %v2498 = vmax.f32 %v2450, 0.0
      %v2499 = vmax.f32 %v2451, 0.0
      %v2500 = vmax.f32 %v2452, 0.0
      %v2501 = vadd.s32 %v853, 8
      %v2502 = vadd.s32 %v853, 16
      %vm2503 = vcmp.lt.s32.totalorder %v853, 16
      %vm2504 = vcmp.lt.s32.totalorder %v2501, 16
      %vm2505 = vcmp.lt.s32.totalorder %v2502, 16
      %v2506 = vsel %vm2503, 1, 0
      %v2507 = vsel %vm2504, 1, 0
      %v2508 = vsel %vm2505, 1, 0
      %vm2509 = vcmp.eq.s32.totalorder %v2506, 1
      %vm2510 = vcmp.eq.s32.totalorder %v2507, 1
      %vm2511 = vcmp.eq.s32.totalorder %v2508, 1
      %v2512 = vsel %vm2509, %v2453, 0.0
      %v2513 = vsel %vm2510, %v2454, 0.0
      %v2514 = vsel %vm2511, %v2455, 0.0
      %v2515 = vsel %vm2509, %v2456, 0.0
      %v2516 = vsel %vm2510, %v2457, 0.0
      %v2517 = vsel %vm2511, %v2458, 0.0
      %v2518 = vsel %vm2509, %v2459, 0.0
      %v2519 = vsel %vm2510, %v2460, 0.0
      %v2520 = vsel %vm2511, %v2461, 0.0
      %v2521 = vsel %vm2509, %v2462, 0.0
      %v2522 = vsel %vm2510, %v2463, 0.0
      %v2523 = vsel %vm2511, %v2464, 0.0
      %v2524 = vsel %vm2509, %v2465, 0.0
      %v2525 = vsel %vm2510, %v2466, 0.0
      %v2526 = vsel %vm2511, %v2467, 0.0
      %v2527 = vsel %vm2509, %v2468, 0.0
      %v2528 = vsel %vm2510, %v2469, 0.0
      %v2529 = vsel %vm2511, %v2470, 0.0
      %v2530 = vsel %vm2509, %v2471, 0.0
      %v2531 = vsel %vm2510, %v2472, 0.0
      %v2532 = vsel %vm2511, %v2473, 0.0
      %v2533 = vsel %vm2509, %v2474, 0.0
      %v2534 = vsel %vm2510, %v2475, 0.0
      %v2535 = vsel %vm2511, %v2476, 0.0
      %v2536 = vsel %vm2509, %v2477, 0.0
      %v2537 = vsel %vm2510, %v2478, 0.0
      %v2538 = vsel %vm2511, %v2479, 0.0
      %v2539 = vsel %vm2509, %v2480, 0.0
      %v2540 = vsel %vm2510, %v2481, 0.0
      %v2541 = vsel %vm2511, %v2482, 0.0
      %v2542 = vsel %vm2509, %v2483, 0.0
      %v2543 = vsel %vm2510, %v2484, 0.0
      %v2544 = vsel %vm2511, %v2485, 0.0
      %v2545 = vsel %vm2509, %v2486, 0.0
      %v2546 = vsel %vm2510, %v2487, 0.0
      %v2547 = vsel %vm2511, %v2488, 0.0
      %v2548 = vsel %vm2509, %v2489, 0.0
      %v2549 = vsel %vm2510, %v2490, 0.0
      %v2550 = vsel %vm2511, %v2491, 0.0
      %v2551 = vsel %vm2509, %v2492, 0.0
      %v2552 = vsel %vm2510, %v2493, 0.0
      %v2553 = vsel %vm2511, %v2494, 0.0
      %v2554 = vsel %vm2509, %v2495, 0.0
      %v2555 = vsel %vm2510, %v2496, 0.0
      %v2556 = vsel %vm2511, %v2497, 0.0
      %v2557 = vsel %vm2509, %v2498, 0.0
      %v2558 = vsel %vm2510, %v2499, 0.0
      %v2559 = vsel %vm2511, %v2500, 0.0
      %v2560 = vadd.f32 %v2512, %v2513
      %v2561 = vadd.f32 %v2560, %v2514
      %v2562 = vadd.f32 %v2561, %v2515
      %v2563 = vadd.f32 %v2562, %v2516
      %v2564 = vadd.f32 %v2563, %v2517
      %v2565 = vadd.f32 %v2564, %v2518
      %v2566 = vadd.f32 %v2565, %v2519
      %v2567 = vadd.f32 %v2566, %v2520
      %v2568 = vadd.f32 %v2567, %v2521
      %v2569 = vadd.f32 %v2568, %v2522
      %v2570 = vadd.f32 %v2569, %v2523
      %v2571 = vadd.f32 %v2570, %v2524
      %v2572 = vadd.f32 %v2571, %v2525
      %v2573 = vadd.f32 %v2572, %v2526
      %v2574 = vadd.f32 %v2573, %v2527
      %v2575 = vadd.f32 %v2574, %v2528
      %v2576 = vadd.f32 %v2575, %v2529
      %v2577 = vadd.f32 %v2576, %v2530
      %v2578 = vadd.f32 %v2577, %v2531
      %v2579 = vadd.f32 %v2578, %v2532
      %v2580 = vadd.f32 %v2579, %v2533
      %v2581 = vadd.f32 %v2580, %v2534
      %v2582 = vadd.f32 %v2581, %v2535
      %v2583 = vadd.f32 %v2582, %v2536
      %v2584 = vadd.f32 %v2583, %v2537
      %v2585 = vadd.f32 %v2584, %v2538
      %v2586 = vadd.f32 %v2585, %v2539
      %v2587 = vadd.f32 %v2586, %v2540
      %v2588 = vadd.f32 %v2587, %v2541
      %v2589 = vadd.f32 %v2588, %v2542
      %v2590 = vadd.f32 %v2589, %v2543
      %v2591 = vadd.f32 %v2590, %v2544
      %v2592 = vadd.f32 %v2591, %v2545
      %v2593 = vadd.f32 %v2592, %v2546
      %v2594 = vadd.f32 %v2593, %v2547
      %v2595 = vadd.f32 %v2594, %v2548
      %v2596 = vadd.f32 %v2595, %v2549
      %v2597 = vadd.f32 %v2596, %v2550
      %v2598 = vadd.f32 %v2597, %v2551
      %v2599 = vadd.f32 %v2598, %v2552
      %v2600 = vadd.f32 %v2599, %v2553
      %v2601 = vadd.f32 %v2600, %v2554
      %v2602 = vadd.f32 %v2601, %v2555
      %v2603 = vadd.f32 %v2602, %v2556
      %v2604 = vadd.f32 %v2603, %v2557
      %v2605 = vadd.f32 %v2604, %v2558
      %v2606 = vadd.f32 %v2605, %v2559
      %v2607 = vrot.slane %v2606, 4
      %v2608 = vadd.f32 %v2606, %v2607
      %v2609 = vrot.slane %v2608, 2
      %v2610 = vadd.f32 %v2608, %v2609
      %v2611 = vrot.slane %v2610, 1
      %v2612 = vadd.f32 %v2610, %v2611
      %v2613 = vmul.f32 %v2612, 0.00390625
      %v2614 = vpack.c.bf16 %v2613, %v2613
      %v2615 = vld [vmem:[%s5] sm:$0xf]
      %v2616 = vld [vmem:[%s5 + $0x4] sm:$0xf]
      %v2617 = vld [vmem:[%s5 + $0x8] sm:$0xf]
      %v2618 = vld [vmem:[%s5 + $0xc] sm:$0xf]
      %v2619 = vld [vmem:[%s5 + $0x10] sm:$0xf]
      %v2620 = vld [vmem:[%s5 + $0x14] sm:$0xf]
      %v2621 = vld [vmem:[%s5 + $0x18] sm:$0xf]
      %v2622 = vld [vmem:[%s5 + $0x1c] sm:$0xf]
      %v2623 = vld [vmem:[%s5 + $0x20] sm:$0xf]
      %v2624 = vld [vmem:[%s5 + $0x24] sm:$0xf]
      %v2625 = vld [vmem:[%s5 + $0x28] sm:$0xf]
      %v2626 = vld [vmem:[%s5 + $0x2c] sm:$0xf]
      %v2627 = vld [vmem:[%s5 + $0x30] sm:$0xf]
      %v2628 = vld [vmem:[%s5 + $0x34] sm:$0xf]
      %v2629 = vld [vmem:[%s5 + $0x38] sm:$0xf]
      %v2630 = vld [vmem:[%s5 + $0x3c] sm:$0xf]
      %v2631 = vld [vmem:[%s6] sm:$0x1]
      %v2648 = vunpack.c.l.b16 %v2615
      %v2649 = vunpack.c.l.b16 %v2616
      %v2650 = vunpack.c.l.b16 %v2617
      %v2651 = vunpack.c.l.b16 %v2618
      %v2652 = vunpack.c.l.b16 %v2619
      %v2653 = vunpack.c.l.b16 %v2620
      %v2654 = vunpack.c.l.b16 %v2621
      %v2655 = vunpack.c.l.b16 %v2622
      %v2656 = vunpack.c.l.b16 %v2623
      %v2657 = vunpack.c.l.b16 %v2624
      %v2658 = vunpack.c.l.b16 %v2625
      %v2659 = vunpack.c.l.b16 %v2626
      %v2660 = vunpack.c.l.b16 %v2627
      %v2661 = vunpack.c.l.b16 %v2628
      %v2662 = vunpack.c.l.b16 %v2629
      %v2663 = vunpack.c.l.b16 %v2630
      %v2664 = vpack.c.b16 %v2649, %v2648
      %v2665 = vpack.c.b16 %v2651, %v2650
      %v2666 = vpack.c.b16 %v2653, %v2652
      %v2667 = vpack.c.b16 %v2655, %v2654
      %v2668 = vpack.c.b16 %v2657, %v2656
      %v2669 = vpack.c.b16 %v2659, %v2658
      %v2670 = vpack.c.b16 %v2661, %v2660
      %v2671 = vpack.c.b16 %v2663, %v2662
      %2680 = vmatprep.subr.bf16.mxu0 0
      %2681 = vmatpush1.bf16.msra.mxu0 %v2671
      %2682 = vmatprep.subr.bf16.mxu0 0
      %2683 = vmatpush1.bf16.msra.mxu0 %v2670
      %2684 = vmatprep.subr.bf16.mxu0 0
      %2685 = vmatpush1.bf16.msra.mxu0 %v2669
      %2686 = vmatprep.subr.bf16.mxu0 0
      %2687 = vmatpush1.bf16.msra.mxu0 %v2668
      %2688 = vmatprep.subr.bf16.mxu0 0
      %2689 = vmatpush1.bf16.msra.mxu0 %v2667
      %2690 = vmatprep.subr.bf16.mxu0 0
      %2691 = vmatpush1.bf16.msra.mxu0 %v2666
      %2692 = vmatprep.subr.bf16.mxu0 0
      %2693 = vmatpush1.bf16.msra.mxu0 %v2665
      %2694 = vmatprep.subr.bf16.mxu0 0
      %2695 = vmatpush1.bf16.msra.mxu0 %v2664
      %2696 = vmatprep.subr.bf16.mxu0 0
      %2697 = vmatpush2.bf16.msra.mxu0 0
      %2698 = vmatprep.subr.bf16.mxu0 0
      %2699 = vmatpush2.bf16.msra.mxu0 0
      %2700 = vmatprep.subr.bf16.mxu0 0
      %2701 = vmatpush2.bf16.msra.mxu0 0
      %2702 = vmatprep.subr.bf16.mxu0 0
      %2703 = vmatpush2.bf16.msra.mxu0 0
      %2704 = vmatprep.subr.bf16.mxu0 0
      %2705 = vmatpush2.bf16.msra.mxu0 0
      %2706 = vmatprep.subr.bf16.mxu0 0
      %2707 = vmatpush2.bf16.msra.mxu0 0
      %2708 = vmatprep.subr.bf16.mxu0 0
      %2709 = vmatpush2.bf16.msra.mxu0 0
      %2710 = vmatprep.subr.bf16.mxu0 0
      %2711 = vmatpush2.bf16.msra.mxu0 0
      %2712 = vmatprep.mubr.bf16.mxu0 0
      %2713 = vmatmul.mubr.bf16.gmra.mxu0 %v2614
      %v2714 = vpop.f32.mrf.mxu0
      %v2715 = vadd.f32 %v2631, %v2714
      %v2716 = vpop.f32.mrf.mxu0
      %v2717 = vpop.f32.mrf.mxu0
      %v2718 = vpop.f32.mrf.mxu0
      %2719 = vdwg.mxu0
      %v2720 = vmax.f32 %v2715, 0.0
      %v2721 = vpack.c.bf16 %v2720, %v2720
      %v2722 = vld [vmem:[%s7] sm:$0xf]
      %v2723 = vld [vmem:[%s7 + $0x4] sm:$0xf]
      %v2724 = vld [vmem:[%s7 + $0x8] sm:$0xf]
      %v2725 = vld [vmem:[%s7 + $0xc] sm:$0xf]
      %v2726 = vld [vmem:[%s7 + $0x10] sm:$0xf]
      %v2727 = vld [vmem:[%s7 + $0x14] sm:$0xf]
      %v2728 = vld [vmem:[%s7 + $0x18] sm:$0xf]
      %v2729 = vld [vmem:[%s7 + $0x1c] sm:$0xf]
      %v2730 = vld [vmem:[%s7 + $0x20] sm:$0xf]
      %v2731 = vld [vmem:[%s7 + $0x24] sm:$0xf]
      %v2732 = vld [vmem:[%s7 + $0x28] sm:$0xf]
      %v2733 = vld [vmem:[%s7 + $0x2c] sm:$0xf]
      %v2734 = vld [vmem:[%s7 + $0x30] sm:$0xf]
      %v2735 = vld [vmem:[%s7 + $0x34] sm:$0xf]
      %v2736 = vld [vmem:[%s7 + $0x38] sm:$0xf]
      %v2737 = vld [vmem:[%s7 + $0x3c] sm:$0xf]
      %v2738 = vld [vmem:[%s8] sm:$0x1]
      %v2755 = vunpack.c.l.b16 %v2722
      %v2756 = vunpack.c.l.b16 %v2723
      %v2757 = vunpack.c.l.b16 %v2724
      %v2758 = vunpack.c.l.b16 %v2725
      %v2759 = vunpack.c.l.b16 %v2726
      %v2760 = vunpack.c.l.b16 %v2727
      %v2761 = vunpack.c.l.b16 %v2728
      %v2762 = vunpack.c.l.b16 %v2729
      %v2763 = vunpack.c.l.b16 %v2730
      %v2764 = vunpack.c.l.b16 %v2731
      %v2765 = vunpack.c.l.b16 %v2732
      %v2766 = vunpack.c.l.b16 %v2733
      %v2767 = vunpack.c.l.b16 %v2734
      %v2768 = vunpack.c.l.b16 %v2735
      %v2769 = vunpack.c.l.b16 %v2736
      %v2770 = vunpack.c.l.b16 %v2737
      %v2771 = vpack.c.b16 %v2756, %v2755
      %v2772 = vpack.c.b16 %v2758, %v2757
      %v2773 = vpack.c.b16 %v2760, %v2759
      %v2774 = vpack.c.b16 %v2762, %v2761
      %v2775 = vpack.c.b16 %v2764, %v2763
      %v2776 = vpack.c.b16 %v2766, %v2765
      %v2777 = vpack.c.b16 %v2768, %v2767
      %v2778 = vpack.c.b16 %v2770, %v2769
      %2787 = vmatprep.subr.bf16.mxu0 0
      %2788 = vmatpush1.bf16.msra.mxu0 %v2778
      %2789 = vmatprep.subr.bf16.mxu0 0
      %2790 = vmatpush1.bf16.msra.mxu0 %v2777
      %2791 = vmatprep.subr.bf16.mxu0 0
      %2792 = vmatpush1.bf16.msra.mxu0 %v2776
      %2793 = vmatprep.subr.bf16.mxu0 0
      %2794 = vmatpush1.bf16.msra.mxu0 %v2775
      %2795 = vmatprep.subr.bf16.mxu0 0
      %2796 = vmatpush1.bf16.msra.mxu0 %v2774
      %2797 = vmatprep.subr.bf16.mxu0 0
      %2798 = vmatpush1.bf16.msra.mxu0 %v2773
      %2799 = vmatprep.subr.bf16.mxu0 0
      %2800 = vmatpush1.bf16.msra.mxu0 %v2772
      %2801 = vmatprep.subr.bf16.mxu0 0
      %2802 = vmatpush1.bf16.msra.mxu0 %v2771
      %2803 = vmatprep.subr.bf16.mxu0 0
      %2804 = vmatpush2.bf16.msra.mxu0 0
      %2805 = vmatprep.subr.bf16.mxu0 0
      %2806 = vmatpush2.bf16.msra.mxu0 0
      %2807 = vmatprep.subr.bf16.mxu0 0
      %2808 = vmatpush2.bf16.msra.mxu0 0
      %2809 = vmatprep.subr.bf16.mxu0 0
      %2810 = vmatpush2.bf16.msra.mxu0 0
      %2811 = vmatprep.subr.bf16.mxu0 0
      %2812 = vmatpush2.bf16.msra.mxu0 0
      %2813 = vmatprep.subr.bf16.mxu0 0
      %2814 = vmatpush2.bf16.msra.mxu0 0
      %2815 = vmatprep.subr.bf16.mxu0 0
      %2816 = vmatpush2.bf16.msra.mxu0 0
      %2817 = vmatprep.subr.bf16.mxu0 0
      %2818 = vmatpush2.bf16.msra.mxu0 0
      %2819 = vmatprep.mubr.bf16.mxu0 0
      %2820 = vmatmul.mubr.bf16.gmra.mxu0 %v2721
      %v2821 = vpop.f32.mrf.mxu0
      %v2822 = vadd.f32 %v2738, %v2821
      %v2823 = vpop.f32.mrf.mxu0
      %v2824 = vpop.f32.mrf.mxu0
      %v2825 = vpop.f32.mrf.mxu0
      %2826 = vdwg.mxu0
      %v2827 = vxor.u32 %v2822, 2147483648
      %v2828 = vmul.f32 %v2827, 1.442695
      %v2829 = vpow.pop %v2828
      %v2830 = vadd.f32 %v2829, 1.0
      %v2831 = vrcp.pop %v2830
      %v2832 = vmul.f32 1.0, %v2831
      %v2833 = vlaneseq
      %v2834 = vshrl.u32 %v2833, 7
      %v2835 = vsub.s32 0, %v2834
      %v2836 = vrot.slane %v2832, %v2835
      %v2837 = vmul.f32 %v2512, %v2836
      %v2838 = vmul.f32 %v2513, %v2836
      %v2839 = vmul.f32 %v2514, %v2836
      %v2840 = vmul.f32 %v2515, %v2836
      %v2841 = vmul.f32 %v2516, %v2836
      %v2842 = vmul.f32 %v2517, %v2836
      %v2843 = vmul.f32 %v2518, %v2836
      %v2844 = vmul.f32 %v2519, %v2836
      %v2845 = vmul.f32 %v2520, %v2836
      %v2846 = vmul.f32 %v2521, %v2836
      %v2847 = vmul.f32 %v2522, %v2836
      %v2848 = vmul.f32 %v2523, %v2836
      %v2849 = vmul.f32 %v2524, %v2836
      %v2850 = vmul.f32 %v2525, %v2836
      %v2851 = vmul.f32 %v2526, %v2836
      %v2852 = vmul.f32 %v2527, %v2836
      %v2853 = vmul.f32 %v2528, %v2836
      %v2854 = vmul.f32 %v2529, %v2836
      %v2855 = vmul.f32 %v2530, %v2836
      %v2856 = vmul.f32 %v2531, %v2836
      %v2857 = vmul.f32 %v2532, %v2836
      %v2858 = vmul.f32 %v2533, %v2836
      %v2859 = vmul.f32 %v2534, %v2836
      %v2860 = vmul.f32 %v2535, %v2836
      %v2861 = vmul.f32 %v2536, %v2836
      %v2862 = vmul.f32 %v2537, %v2836
      %v2863 = vmul.f32 %v2538, %v2836
      %v2864 = vmul.f32 %v2539, %v2836
      %v2865 = vmul.f32 %v2540, %v2836
      %v2866 = vmul.f32 %v2541, %v2836
      %v2867 = vmul.f32 %v2542, %v2836
      %v2868 = vmul.f32 %v2543, %v2836
      %v2869 = vmul.f32 %v2544, %v2836
      %v2870 = vmul.f32 %v2545, %v2836
      %v2871 = vmul.f32 %v2546, %v2836
      %v2872 = vmul.f32 %v2547, %v2836
      %v2873 = vmul.f32 %v2548, %v2836
      %v2874 = vmul.f32 %v2549, %v2836
      %v2875 = vmul.f32 %v2550, %v2836
      %v2876 = vmul.f32 %v2551, %v2836
      %v2877 = vmul.f32 %v2552, %v2836
      %v2878 = vmul.f32 %v2553, %v2836
      %v2879 = vmul.f32 %v2554, %v2836
      %v2880 = vmul.f32 %v2555, %v2836
      %v2881 = vmul.f32 %v2556, %v2836
      %v2882 = vmul.f32 %v2557, %v2836
      %v2883 = vmul.f32 %v2558, %v2836
      %v2884 = vmul.f32 %v2559, %v2836
      %v2885 = vpack.c.bf16 %v2838, %v2837
      %v2886 = vpack.c.bf16 %v2840, %v2839
      %v2887 = vpack.c.bf16 %v2842, %v2841
      %v2888 = vpack.c.bf16 %v2844, %v2843
      %v2889 = vpack.c.bf16 %v2846, %v2845
      %v2890 = vpack.c.bf16 %v2848, %v2847
      %v2891 = vpack.c.bf16 %v2850, %v2849
      %v2892 = vpack.c.bf16 %v2852, %v2851
      %v2893 = vpack.c.bf16 %v2854, %v2853
      %v2894 = vpack.c.bf16 %v2856, %v2855
      %v2895 = vpack.c.bf16 %v2858, %v2857
      %v2896 = vpack.c.bf16 %v2860, %v2859
      %v2897 = vpack.c.bf16 %v2862, %v2861
      %v2898 = vpack.c.bf16 %v2864, %v2863
      %v2899 = vpack.c.bf16 %v2866, %v2865
      %v2900 = vpack.c.bf16 %v2868, %v2867
      %v2901 = vpack.c.bf16 %v2870, %v2869
      %v2902 = vpack.c.bf16 %v2872, %v2871
      %v2903 = vpack.c.bf16 %v2874, %v2873
      %v2904 = vpack.c.bf16 %v2876, %v2875
      %v2905 = vpack.c.bf16 %v2878, %v2877
      %v2906 = vpack.c.bf16 %v2880, %v2879
      %v2907 = vpack.c.bf16 %v2882, %v2881
      %v2908 = vpack.c.bf16 %v2884, %v2883
      %v2909 = vld [vmem:[%s9] sm:$0xf]
      %v2910 = vld [vmem:[%s9 + $0x4] sm:$0xf]
      %v2911 = vld [vmem:[%s9 + $0x8] sm:$0xf]
      %v2912 = vld [vmem:[%s9 + $0xc] sm:$0xf]
      %v2913 = vld [vmem:[%s9 + $0x10] sm:$0xf]
      %v2914 = vld [vmem:[%s9 + $0x14] sm:$0xf]
      %v2915 = vld [vmem:[%s9 + $0x18] sm:$0xf]
      %v2916 = vld [vmem:[%s9 + $0x1c] sm:$0xf]
      %v2917 = vld [vmem:[%s9 + $0x20] sm:$0xf]
      %v2918 = vld [vmem:[%s9 + $0x24] sm:$0xf]
      %v2919 = vld [vmem:[%s9 + $0x28] sm:$0xf]
      %v2920 = vld [vmem:[%s9 + $0x2c] sm:$0xf]
      %v2921 = vld [vmem:[%s9 + $0x30] sm:$0xf]
      %v2922 = vld [vmem:[%s9 + $0x34] sm:$0xf]
      %v2923 = vld [vmem:[%s9 + $0x38] sm:$0xf]
      %v2924 = vld [vmem:[%s9 + $0x3c] sm:$0xf]
      %v2925 = vld [vmem:[%s10] sm:$0x1]
      %v2927 = vlaneseq
      %v2928 = vshrl.u32 %v2927, 7
      %v2929 = vsub.s32 0, %v2928
      %v2930 = vrot.slane %v2925, %v2929
      %v2948 = vunpack.c.l.b16 %v2909
      %v2949 = vunpack.c.l.b16 %v2910
      %v2950 = vunpack.c.l.b16 %v2911
      %v2951 = vunpack.c.l.b16 %v2912
      %v2952 = vunpack.c.l.b16 %v2913
      %v2953 = vunpack.c.l.b16 %v2914
      %v2954 = vunpack.c.l.b16 %v2915
      %v2955 = vunpack.c.l.b16 %v2916
      %v2956 = vunpack.c.l.b16 %v2917
      %v2957 = vunpack.c.l.b16 %v2918
      %v2958 = vunpack.c.l.b16 %v2919
      %v2959 = vunpack.c.l.b16 %v2920
      %v2960 = vunpack.c.l.b16 %v2921
      %v2961 = vunpack.c.l.b16 %v2922
      %v2962 = vunpack.c.l.b16 %v2923
      %v2963 = vunpack.c.l.b16 %v2924
      %v2964 = vpack.c.b16 %v2949, %v2948
      %v2965 = vpack.c.b16 %v2951, %v2950
      %v2966 = vpack.c.b16 %v2953, %v2952
      %v2967 = vpack.c.b16 %v2955, %v2954
      %v2968 = vpack.c.b16 %v2957, %v2956
      %v2969 = vpack.c.b16 %v2959, %v2958
      %v2970 = vpack.c.b16 %v2961, %v2960
      %v2971 = vpack.c.b16 %v2963, %v2962
      %2980 = vmatprep.subr.bf16.mxu0 0
      %2981 = vmatpush1.bf16.msra.mxu0 %v2971
      %2982 = vmatprep.subr.bf16.mxu0 0
      %2983 = vmatpush1.bf16.msra.mxu0 %v2970
      %2984 = vmatprep.subr.bf16.mxu0 0
      %2985 = vmatpush1.bf16.msra.mxu0 %v2969
      %2986 = vmatprep.subr.bf16.mxu0 0
      %2987 = vmatpush1.bf16.msra.mxu0 %v2968
      %2988 = vmatprep.subr.bf16.mxu0 0
      %2989 = vmatpush1.bf16.msra.mxu0 %v2967
      %2990 = vmatprep.subr.bf16.mxu0 0
      %2991 = vmatpush1.bf16.msra.mxu0 %v2966
      %2992 = vmatprep.subr.bf16.mxu0 0
      %2993 = vmatpush1.bf16.msra.mxu0 %v2965
      %2994 = vmatprep.subr.bf16.mxu0 0
      %2995 = vmatpush1.bf16.msra.mxu0 %v2964
      %2996 = vmatprep.subr.bf16.mxu0 0
      %2997 = vmatpush2.bf16.msra.mxu0 0
      %2998 = vmatprep.subr.bf16.mxu0 0
      %2999 = vmatpush2.bf16.msra.mxu0 0
      %3000 = vmatprep.subr.bf16.mxu0 0
      %3001 = vmatpush2.bf16.msra.mxu0 0
      %3002 = vmatprep.subr.bf16.mxu0 0
      %3003 = vmatpush2.bf16.msra.mxu0 0
      %3004 = vmatprep.subr.bf16.mxu0 0
      %3005 = vmatpush2.bf16.msra.mxu0 0
      %3006 = vmatprep.subr.bf16.mxu0 0
      %3007 = vmatpush2.bf16.msra.mxu0 0
      %3008 = vmatprep.subr.bf16.mxu0 0
      %3009 = vmatpush2.bf16.msra.mxu0 0
      %3010 = vmatprep.subr.bf16.mxu0 0
      %3011 = vmatpush2.bf16.msra.mxu0 0
      %3012 = vmatprep.mubr.bf16.mxu0 0
      %3013 = vmatmul.mubr.bf16.gmra.mxu0 %v2885
      %v3014 = vpop.f32.mrf.mxu0
      %v3015 = vadd.f32 %v2930, %v3014
      %v3016 = vpop.f32.mrf.mxu0
      %v3017 = vpop.f32.mrf.mxu0
      %v3018 = vadd.f32 %v2930, %v3017
      %v3019 = vpop.f32.mrf.mxu0
      %3020 = vmatprep.mubr.bf16.mxu0 0
      %3021 = vmatmul.mubr.bf16.gmra.mxu0 %v2886
      %v3022 = vpop.f32.mrf.mxu0
      %v3023 = vpop.f32.mrf.mxu0
      %v3024 = vpop.f32.mrf.mxu0
      %v3025 = vadd.f32 %v2930, %v3024
      %v3026 = vpop.f32.mrf.mxu0
      %3027 = vmatprep.mubr.bf16.mxu0 0
      %3028 = vmatmul.mubr.bf16.gmra.mxu0 %v2887
      %v3029 = vpop.f32.mrf.mxu0
      %v3030 = vadd.f32 %v2930, %v3029
      %v3031 = vpop.f32.mrf.mxu0
      %v3032 = vpop.f32.mrf.mxu0
      %v3033 = vpop.f32.mrf.mxu0
      %3034 = vmatprep.mubr.bf16.mxu0 0
      %3035 = vmatmul.mubr.bf16.gmra.mxu0 %v2888
      %v3036 = vpop.f32.mrf.mxu0
      %v3037 = vadd.f32 %v2930, %v3036
      %v3038 = vpop.f32.mrf.mxu0
      %v3039 = vpop.f32.mrf.mxu0
      %v3040 = vadd.f32 %v2930, %v3039
      %v3041 = vpop.f32.mrf.mxu0
      %3042 = vmatprep.mubr.bf16.mxu0 0
      %3043 = vmatmul.mubr.bf16.gmra.mxu0 %v2889
      %v3044 = vpop.f32.mrf.mxu0
      %v3045 = vpop.f32.mrf.mxu0
      %v3046 = vpop.f32.mrf.mxu0
      %v3047 = vadd.f32 %v2930, %v3046
      %v3048 = vpop.f32.mrf.mxu0
      %3049 = vmatprep.mubr.bf16.mxu0 0
      %3050 = vmatmul.mubr.bf16.gmra.mxu0 %v2890
      %v3051 = vpop.f32.mrf.mxu0
      %v3052 = vadd.f32 %v2930, %v3051
      %v3053 = vpop.f32.mrf.mxu0
      %v3054 = vpop.f32.mrf.mxu0
      %v3055 = vpop.f32.mrf.mxu0
      %3056 = vmatprep.mubr.bf16.mxu0 0
      %3057 = vmatmul.mubr.bf16.gmra.mxu0 %v2891
      %v3058 = vpop.f32.mrf.mxu0
      %v3059 = vadd.f32 %v2930, %v3058
      %v3060 = vpop.f32.mrf.mxu0
      %v3061 = vpop.f32.mrf.mxu0
      %v3062 = vadd.f32 %v2930, %v3061
      %v3063 = vpop.f32.mrf.mxu0
      %3064 = vmatprep.mubr.bf16.mxu0 0
      %3065 = vmatmul.mubr.bf16.gmra.mxu0 %v2892
      %v3066 = vpop.f32.mrf.mxu0
      %v3067 = vpop.f32.mrf.mxu0
      %v3068 = vpop.f32.mrf.mxu0
      %v3069 = vadd.f32 %v2930, %v3068
      %v3070 = vpop.f32.mrf.mxu0
      %3071 = vmatprep.mubr.bf16.mxu0 0
      %3072 = vmatmul.mubr.bf16.gmra.mxu0 %v2893
      %v3073 = vpop.f32.mrf.mxu0
      %v3074 = vadd.f32 %v2930, %v3073
      %v3075 = vpop.f32.mrf.mxu0
      %v3076 = vpop.f32.mrf.mxu0
      %v3077 = vpop.f32.mrf.mxu0
      %3078 = vmatprep.mubr.bf16.mxu0 0
      %3079 = vmatmul.mubr.bf16.gmra.mxu0 %v2894
      %v3080 = vpop.f32.mrf.mxu0
      %v3081 = vadd.f32 %v2930, %v3080
      %v3082 = vpop.f32.mrf.mxu0
      %v3083 = vpop.f32.mrf.mxu0
      %v3084 = vadd.f32 %v2930, %v3083
      %v3085 = vpop.f32.mrf.mxu0
      %3086 = vmatprep.mubr.bf16.mxu0 0
      %3087 = vmatmul.mubr.bf16.gmra.mxu0 %v2895
      %v3088 = vpop.f32.mrf.mxu0
      %v3089 = vpop.f32.mrf.mxu0
      %v3090 = vpop.f32.mrf.mxu0
      %v3091 = vadd.f32 %v2930, %v3090
      %v3092 = vpop.f32.mrf.mxu0
      %3093 = vmatprep.mubr.bf16.mxu0 0
      %3094 = vmatmul.mubr.bf16.gmra.mxu0 %v2896
      %v3095 = vpop.f32.mrf.mxu0
      %v3096 = vadd.f32 %v2930, %v3095
      %v3097 = vpop.f32.mrf.mxu0
      %v3098 = vpop.f32.mrf.mxu0
      %v3099 = vpop.f32.mrf.mxu0
      %3100 = vmatprep.mubr.bf16.mxu0 0
      %3101 = vmatmul.mubr.bf16.gmra.mxu0 %v2897
      %v3102 = vpop.f32.mrf.mxu0
      %v3103 = vadd.f32 %v2930, %v3102
      %v3104 = vpop.f32.mrf.mxu0
      %v3105 = vpop.f32.mrf.mxu0
      %v3106 = vadd.f32 %v2930, %v3105
      %v3107 = vpop.f32.mrf.mxu0
      %3108 = vmatprep.mubr.bf16.mxu0 0
      %3109 = vmatmul.mubr.bf16.gmra.mxu0 %v2898
      %v3110 = vpop.f32.mrf.mxu0
      %v3111 = vpop.f32.mrf.mxu0
      %v3112 = vpop.f32.mrf.mxu0
      %v3113 = vadd.f32 %v2930, %v3112
      %v3114 = vpop.f32.mrf.mxu0
      %3115 = vmatprep.mubr.bf16.mxu0 0
      %3116 = vmatmul.mubr.bf16.gmra.mxu0 %v2899
      %v3117 = vpop.f32.mrf.mxu0
      %v3118 = vadd.f32 %v2930, %v3117
      %v3119 = vpop.f32.mrf.mxu0
      %v3120 = vpop.f32.mrf.mxu0
      %v3121 = vpop.f32.mrf.mxu0
      %3122 = vmatprep.mubr.bf16.mxu0 0
      %3123 = vmatmul.mubr.bf16.gmra.mxu0 %v2900
      %v3124 = vpop.f32.mrf.mxu0
      %v3125 = vadd.f32 %v2930, %v3124
      %v3126 = vpop.f32.mrf.mxu0
      %v3127 = vpop.f32.mrf.mxu0
      %v3128 = vadd.f32 %v2930, %v3127
      %v3129 = vpop.f32.mrf.mxu0
      %3130 = vmatprep.mubr.bf16.mxu0 0
      %3131 = vmatmul.mubr.bf16.gmra.mxu0 %v2901
      %v3132 = vpop.f32.mrf.mxu0
      %v3133 = vpop.f32.mrf.mxu0
      %v3134 = vpop.f32.mrf.mxu0
      %v3135 = vadd.f32 %v2930, %v3134
      %v3136 = vpop.f32.mrf.mxu0
      %3137 = vmatprep.mubr.bf16.mxu0 0
      %3138 = vmatmul.mubr.bf16.gmra.mxu0 %v2902
      %v3139 = vpop.f32.mrf.mxu0
      %v3140 = vadd.f32 %v2930, %v3139
      %v3141 = vpop.f32.mrf.mxu0
      %v3142 = vpop.f32.mrf.mxu0
      %v3143 = vpop.f32.mrf.mxu0
      %3144 = vmatprep.mubr.bf16.mxu0 0
      %3145 = vmatmul.mubr.bf16.gmra.mxu0 %v2903
      %v3146 = vpop.f32.mrf.mxu0
      %v3147 = vadd.f32 %v2930, %v3146
      %v3148 = vpop.f32.mrf.mxu0
      %v3149 = vpop.f32.mrf.mxu0
      %v3150 = vadd.f32 %v2930, %v3149
      %v3151 = vpop.f32.mrf.mxu0
      %3152 = vmatprep.mubr.bf16.mxu0 0
      %3153 = vmatmul.mubr.bf16.gmra.mxu0 %v2904
      %v3154 = vpop.f32.mrf.mxu0
      %v3155 = vpop.f32.mrf.mxu0
      %v3156 = vpop.f32.mrf.mxu0
      %v3157 = vadd.f32 %v2930, %v3156
      %v3158 = vpop.f32.mrf.mxu0
      %3159 = vmatprep.mubr.bf16.mxu0 0
      %3160 = vmatmul.mubr.bf16.gmra.mxu0 %v2905
      %v3161 = vpop.f32.mrf.mxu0
      %v3162 = vadd.f32 %v2930, %v3161
      %v3163 = vpop.f32.mrf.mxu0
      %v3164 = vpop.f32.mrf.mxu0
      %v3165 = vpop.f32.mrf.mxu0
      %3166 = vmatprep.mubr.bf16.mxu0 0
      %3167 = vmatmul.mubr.bf16.gmra.mxu0 %v2906
      %v3168 = vpop.f32.mrf.mxu0
      %v3169 = vadd.f32 %v2930, %v3168
      %v3170 = vpop.f32.mrf.mxu0
      %v3171 = vpop.f32.mrf.mxu0
      %v3172 = vadd.f32 %v2930, %v3171
      %v3173 = vpop.f32.mrf.mxu0
      %3174 = vmatprep.mubr.bf16.mxu0 0
      %3175 = vmatmul.mubr.bf16.gmra.mxu0 %v2907
      %v3176 = vpop.f32.mrf.mxu0
      %v3177 = vpop.f32.mrf.mxu0
      %v3178 = vpop.f32.mrf.mxu0
      %v3179 = vadd.f32 %v2930, %v3178
      %v3180 = vpop.f32.mrf.mxu0
      %3181 = vmatprep.mubr.bf16.mxu0 0
      %3182 = vmatmul.mubr.bf16.gmra.mxu0 %v2908
      %v3183 = vpop.f32.mrf.mxu0
      %v3184 = vadd.f32 %v2930, %v3183
      %v3185 = vpop.f32.mrf.mxu0
      %v3186 = vpop.f32.mrf.mxu0
      %v3187 = vpop.f32.mrf.mxu0
      %3188 = vdwg.mxu0
      %vm3189 = vcmask 64512
      %3190 = vst.msk [vmem:[%s386] sm:$0xff] %vm3189, %v3015
      %3191 = vst.msk [vmem:[%s386 + $0x8] sm:$0xff] %vm3189, %v3018
      %3192 = vst.msk [vmem:[%s386 + $0x10] sm:$0xff] %vm3189, %v3025
      %3193 = vst.msk [vmem:[%s386 + $0x18] sm:$0xff] %vm3189, %v3030
      %3194 = vst.msk [vmem:[%s386 + $0x20] sm:$0xff] %vm3189, %v3037
      %3195 = vst.msk [vmem:[%s386 + $0x28] sm:$0xff] %vm3189, %v3040
      %3196 = vst.msk [vmem:[%s386 + $0x30] sm:$0xff] %vm3189, %v3047
      %3197 = vst.msk [vmem:[%s386 + $0x38] sm:$0xff] %vm3189, %v3052
      %3198 = vst.msk [vmem:[%s386 + $0x40] sm:$0xff] %vm3189, %v3059
      %3199 = vst.msk [vmem:[%s386 + $0x48] sm:$0xff] %vm3189, %v3062
      %3200 = vst.msk [vmem:[%s386 + $0x50] sm:$0xff] %vm3189, %v3069
      %3201 = vst.msk [vmem:[%s386 + $0x58] sm:$0xff] %vm3189, %v3074
      %3202 = vst.msk [vmem:[%s386 + $0x60] sm:$0xff] %vm3189, %v3081
      %3203 = vst.msk [vmem:[%s386 + $0x68] sm:$0xff] %vm3189, %v3084
      %3204 = vst.msk [vmem:[%s386 + $0x70] sm:$0xff] %vm3189, %v3091
      %3205 = vst.msk [vmem:[%s386 + $0x78] sm:$0xff] %vm3189, %v3096
      %3206 = vst.msk [vmem:[%s386 + $0x80] sm:$0xff] %vm3189, %v3103
      %3207 = vst.msk [vmem:[%s386 + $0x88] sm:$0xff] %vm3189, %v3106
      %3208 = vst.msk [vmem:[%s386 + $0x90] sm:$0xff] %vm3189, %v3113
      %3209 = vst.msk [vmem:[%s386 + $0x98] sm:$0xff] %vm3189, %v3118
      %3210 = vst.msk [vmem:[%s386 + $0xa0] sm:$0xff] %vm3189, %v3125
      %3211 = vst.msk [vmem:[%s386 + $0xa8] sm:$0xff] %vm3189, %v3128
      %3212 = vst.msk [vmem:[%s386 + $0xb0] sm:$0xff] %vm3189, %v3135
      %3213 = vst.msk [vmem:[%s386 + $0xb8] sm:$0xff] %vm3189, %v3140
      %3214 = vst.msk [vmem:[%s386 + $0xc0] sm:$0xff] %vm3189, %v3147
      %3215 = vst.msk [vmem:[%s386 + $0xc8] sm:$0xff] %vm3189, %v3150
      %3216 = vst.msk [vmem:[%s386 + $0xd0] sm:$0xff] %vm3189, %v3157
      %3217 = vst.msk [vmem:[%s386 + $0xd8] sm:$0xff] %vm3189, %v3162
      %3218 = vst.msk [vmem:[%s386 + $0xe0] sm:$0xff] %vm3189, %v3169
      %3219 = vst.msk [vmem:[%s386 + $0xe8] sm:$0xff] %vm3189, %v3172
      %3220 = vst.msk [vmem:[%s386 + $0xf0] sm:$0xff] %vm3189, %v3179
      %3221 = vst.msk [vmem:[%s386 + $0xf8] sm:$0xff] %vm3189, %v3184
      %p3222 = scmp.lt.s32.totalorder %s22, 1
      %s3223 = scalar_select %p3222, %s22, 1
      %s3224 = smul.addr %s3223, 32
      %s3225 = smul.addr %s3224, 8
      %s3226 = scalar_lea.vmem %s11, %s3225
      // Predicated region
      $region65: #{mbconv2d_forward.1} parent=63 // pred_check
        %p3227 = pneg %p276
      $region66: #{mbconv2d_forward.1} parent=63 // pred_check_branch
        %3229 = sbr.rel (%p3227) target = $region68
      $region67: #{mbconv2d_forward.1} parent=63 // pred_region
        _
      $region68: #{mbconv2d_forward.1} parent=63 // pred_fallthru
        _
    $region64: #{mbconv2d_forward.1} parent=5 // pred_fallthru
      _
    %p3230 = scmp.le.s32.totalorder 2, %s17
    // Predicated region
    $region69: #{mbconv2d_forward.1} parent=5 // pred_check
      %p3231 = pneg %p3230
    $region70: #{mbconv2d_forward.1} parent=5 // pred_check_branch
      %3233 = sbr.rel (%p3231) target = $region72
    $region71: #{mbconv2d_forward.1} parent=5 // pred_region
      %s3234 = ssub.s32 %s17, 2
      // Predicated region
      $region73: #{mbconv2d_forward.1} parent=71 // pred_check
        %p3235 = pneg %p282
      $region74: #{mbconv2d_forward.1} parent=71 // pred_check_branch
        %3237 = sbr.rel (%p3235) target = $region76
      $region75: #{mbconv2d_forward.1} parent=71 // pred_region
        %p3238 = scmp.lt.s32.totalorder %s23, 1
        %s3239 = scalar_select %p3238, %s23, 1
        %s3240 = smul.addr %s3239, 32
        %s3241 = smul.addr %s3240, 8
        %s3242 = scalar_lea.vmem %s11, %s3241
      $region76: #{mbconv2d_forward.1} parent=71 // pred_fallthru
        _
    $region72: #{mbconv2d_forward.1} parent=5 // pred_fallthru
      _
  $region6: #{mbconv2d_forward.1} parent=0 // loop_footer
    %s21 = sadd.s32 1, %s17
  $region7: #{mbconv2d_forward.1} parent=0 // loop_footer_branch
    %16 = sbr.rel target = $region3
  $region8: #{mbconv2d_forward.1} parent=0 // loop_exit
    _

</llo_original>
